<compile_context>
chip_gen: v7x
topology: tpu7x:2x2x1
jax: 0.10.0
libtpu: 0.0.40
codegen_flags: <defaults>
</compile_context>

<pallas_src>
import functools

import numpy as np

import jax
import jax.numpy as jnp
from jax.experimental import pallas as pl
from jax.experimental.pallas import tpu as pltpu


# ----------------------------------------------------------------------------
# Pallas kernel: the full encoder for NB samples per grid step.
# Activation layout: rows = (sample, height) flattened -> (NB*H, W*C).
# Each stage:  a <- relu?( gather?( sum_dy shift_dy(a) @ B_dy ) + bias )
# where shift_dy = pltpu.roll along the sublane axis + zero-padding row mask
# (replaces the 0/1 "S" matmuls), and gather is a single 0/1 row-select
# matmul, present only for stages that reduce the vertical row count.
# ----------------------------------------------------------------------------
def _encoder_kernel(stage_meta, x_ref, *refs):
    out_ref = refs[-1]
    wrefs = refs[:-1]
    a = x_ref[0]                                   # (NB*H0, W0*C0), float32
    i = 0
    for kh, pad, h_in, relu, has_gather in stage_meta:   # static Python unroll
        b_ref = wrefs[i]; i += 1
        g_ref = None
        if has_gather:
            g_ref = wrefs[i]; i += 1
        bias_ref = wrefs[i]; i += 1

        rows = a.shape[0]
        if pad > 0:    # per-sample row index, for the zero-padding mask
            y = jax.lax.broadcasted_iota(jnp.int32, (rows, 1), 0) % h_in

        acc = None
        for dy in range(kh):                       # static unroll, kh <= 4
            d = dy - pad                           # vertical offset of this tap
            shifted = a if d == 0 else pltpu.roll(a, (-d) % rows, axis=0)
            # Zero rows whose in-sample source row lands in the zero padding
            # (this also kills the cross-sample rows the circular roll drags
            # in).  For pad==0 stages the roll only bleeds across samples on
            # rows that the gather discards, so no mask is needed there.
            if d < 0:
                shifted = jnp.where(y >= -d, shifted, 0.0)
            elif d > 0 and pad > 0:
                shifted = jnp.where(y < h_in - d, shifted, 0.0)
            term = jnp.dot(shifted.astype(b_ref.dtype), b_ref[dy],
                           preferred_element_type=jnp.float32)
            acc = term if acc is None else acc + term
        a = acc
        if has_gather:                             # vertical stride / flatten
            a = jnp.dot(g_ref[...], a, preferred_element_type=jnp.float32)
        a = a + bias_ref[...]
        if relu:
            a = jnp.maximum(a, 0.0)
    out_ref[0] = a.astype(out_ref.dtype)           # (NB, latent)


def conv_encoder_forward(enc, x):
    """enc: output of prepare_encoder. x: (N, C, H, W) float32."""
    stages, nb, latent = enc["stages"], enc["nb"], enc["latent"]
    N, C, H, W = x.shape
    g = pl.cdiv(N, nb)
    n_pad = g * nb
    # One-time layout prep (channels-last, NB samples stacked along rows).
    # TODO(synk): for large N/img_size accept channels-last input directly to
    # avoid this extra HBM round-trip outside the kernel.
    x2d = jnp.transpose(x, (0, 2, 3, 1)).reshape(N, H, W * C)
    if n_pad != N:
        x2d = jnp.concatenate(
            [x2d, jnp.zeros((n_pad - N, H, W * C), x2d.dtype)], axis=0)
    x3d = x2d.reshape(g, nb * H, W * C)

    stage_meta = tuple((int(st["kh"]), int(st["pad"]), int(st["h_in"]),
                        bool(st["relu"]), "G" in st) for st in stages)

    inputs = [x3d]
    in_specs = [pl.BlockSpec((1, nb * H, W * C), lambda n: (n, 0, 0))]
    # Constant index_maps -> each weight operand is DMA'd once for the whole
    # grid.  (pl.Buffered(1) / a packed weight scratch would additionally drop
    # the redundant double-buffer reservation; only worth it at larger configs.)
    for st in stages:
        inputs.append(st["B"])
        in_specs.append(pl.BlockSpec(st["B"].shape, lambda n: (0, 0, 0)))
        if "G" in st:
            inputs.append(st["G"])
            in_specs.append(pl.BlockSpec(st["G"].shape, lambda n: (0, 0)))
        inputs.append(st["bias"])
        in_specs.append(pl.BlockSpec(st["bias"].shape, lambda n: (0, 0)))

    out = pl.pallas_call(
        functools.partial(_encoder_kernel, stage_meta),
        out_shape=jax.ShapeDtypeStruct((g, nb, latent), jnp.float32),
        grid=(g,),
        in_specs=in_specs,
        out_specs=pl.BlockSpec((1, nb, latent), lambda n: (n, 0, 0)),
        compiler_params=pltpu.CompilerParams(dimension_semantics=("parallel",)),
    )(*inputs)
    return out.reshape(n_pad, latent)[:N]


# ----------------------------------------------------------------------------
# Host-side stage builders (one-time parameter preparation).
# ----------------------------------------------------------------------------
def _build_conv_stage(w_np, bias_np, H, W, stride, pad, relu, nb, dtype):
    """w_np: (Cout, Cin, kh, kw), any per-channel scale already folded in.

    Builds per-dy block-Toeplitz matrices B (horizontal shift, stride, padding
    and the channel contraction), a broadcast bias row, and -- only when the
    stage reduces the row count -- a 0/1 row-gather matrix G for a block of
    nb samples stacked along rows.  Returns (stage_dict, Ho, Wo, Cout).
    """
    Cout, Cin, kh, kw = w_np.shape
    Ho = (H + 2 * pad - kh) // stride + 1
    Wo = (W + 2 * pad - kw) // stride + 1
    B = np.zeros((kh, W * Cin, Wo * Cout), np.float32)
    for dy in range(kh):
        for xo in range(Wo):
            for dx in range(kw):
                w = stride * xo + dx - pad
                if 0 <= w < W:
                    B[dy, w * Cin:(w + 1) * Cin, xo * Cout:(xo + 1) * Cout] = \
                        w_np[:, :, dy, dx].T
    bias = np.tile(bias_np.reshape(1, Cout).astype(np.float32), (1, Wo))
    st = dict(B=jnp.asarray(B, dtype=dtype), bias=jnp.asarray(bias),
              kh=int(kh), pad=int(pad), h_in=int(H), relu=bool(relu))
    if Ho != H:        # vertical stride / flatten -> one 0/1 row-gather matmul
        G = np.zeros((nb * Ho, nb * H), np.float32)
        for n in range(nb):
            for yo in range(Ho):
                G[n * Ho + yo, n * H + stride * yo] = 1.0
        st["G"] = jnp.asarray(G)
    return st, Ho, Wo, Cout


def prepare_encoder(params, input_dim, img_size, nb=8, conv_dtype=jnp.bfloat16):
    """Fold BN + bias into weights, fold the 1x1 to_latent conv into the final
    Linear, and build the per-stage B / gather / bias operands."""
    k_size = params["k_size"]
    stages = []
    H = W = img_size
    C = input_dim
    for blk in params["blocks"]:
        w1 = np.asarray(blk["w1"]); b1 = np.asarray(blk["b1"])
        bn_s = np.asarray(blk["bn_s"]); bn_t = np.asarray(blk["bn_t"])
        w1_folded = w1 * bn_s[:, None, None, None]            # fold BN scale
        shift1 = b1 * bn_s + bn_t                             # fold bias + BN shift
        st, H, W, C = _build_conv_stage(w1_folded, shift1, H, W,
                                        stride=1, pad=1, relu=True,
                                        nb=nb, dtype=conv_dtype)
        stages.append(st)
        wd = np.asarray(blk["wd"]); bd = np.asarray(blk["bd"])
        st, H, W, C = _build_conv_stage(wd, bd, H, W,
                                        stride=k_size, pad=1, relu=False,
                                        nb=nb, dtype=conv_dtype)
        stages.append(st)
    # Fold the 1x1 to_latent conv into the Linear (composition of linear maps),
    # then express Flatten+Linear as one "conv" whose kernel covers the whole
    # remaining spatial grid (column order == PyTorch NCHW flatten).
    tl = params["to_latent"]
    wc = np.asarray(tl["w_conv"])[:, :, 0, 0]                 # (mid, C)
    bc = np.asarray(tl["b_conv"])                             # (mid,)
    wl = np.asarray(tl["w_lin"]); bl = np.asarray(tl["b_lin"])
    latent = wl.shape[0]
    mid = wc.shape[0]
    wl_r = wl.reshape(latent, mid, H, W)
    w_comb = np.einsum("omhw,mc->ochw", wl_r, wc)             # (latent, C, H, W)
    b_comb = bl + np.einsum("omhw,m->o", wl_r, bc)
    # Final (linear) stage kept in f32 for accuracy, per the review.
    st, Ho, Wo, _ = _build_conv_stage(w_comb, b_comb, H, W,
                                      stride=1, pad=0, relu=False,
                                      nb=nb, dtype=jnp.float32)
    assert Ho == 1 and Wo == 1
    stages.append(st)
    return dict(stages=stages, nb=int(nb), latent=int(latent))


# ----------------------------------------------------------------------------
# Parameter init (deterministic, PyTorch-default-style shapes/ranges)
# ----------------------------------------------------------------------------
def init_conv_params(key, cout, cin, kh, kw):
    k1, k2 = jax.random.split(key)
    bound = 1.0 / np.sqrt(cin * kh * kw)
    w = jax.random.uniform(k1, (cout, cin, kh, kw), jnp.float32, -bound, bound)
    b = jax.random.uniform(k2, (cout,), jnp.float32, -bound, bound)
    return w, b


def init_bn_params(c):
    # PyTorch defaults: gamma=1, beta=0, running_mean=0, running_var=1, eps=1e-5
    gamma = jnp.ones((c,), jnp.float32)
    beta = jnp.zeros((c,), jnp.float32)
    r_mean = jnp.zeros((c,), jnp.float32)
    r_var = jnp.ones((c,), jnp.float32)
    eps = 1e-5
    scale = gamma / jnp.sqrt(r_var + eps)
    shift = beta - r_mean * scale
    return scale, shift


def init_encoder_params(key, input_dim, latent_dim, num_blocks, hidden_c,
                        img_size, k_size):
    hidden_size = int(img_size / k_size ** num_blocks)
    assert hidden_size >= 1
    params = {"blocks": []}
    current_hidden = hidden_c
    in_c = input_dim
    for i in range(1, num_blocks + 1):
        out_c = hidden_c if i == 1 else current_hidden * 2
        if i > 1:
            current_hidden *= 2
        key, k_conv, k_down = jax.random.split(key, 3)
        w1, b1 = init_conv_params(k_conv, out_c, in_c, 3, 3)      # ConvBlock conv
        bn_s, bn_t = init_bn_params(out_c)                        # BatchNorm2d (eval)
        wd, bd = init_conv_params(k_down, out_c, out_c,
                                  1 + k_size, 1 + k_size)         # downsample conv
        params["blocks"].append(dict(w1=w1, b1=b1, bn_s=bn_s, bn_t=bn_t,
                                     wd=wd, bd=bd))
        in_c = out_c
    key, k_lat, k_lin = jax.random.split(key, 3)
    w_lat, b_lat = init_conv_params(k_lat, latent_dim, current_hidden, 1, 1)
    lin_in = latent_dim * hidden_size * hidden_size
    k1, k2 = jax.random.split(k_lin)
    bound = 1.0 / np.sqrt(lin_in)
    w_lin = jax.random.uniform(k1, (latent_dim, lin_in), jnp.float32, -bound, bound)
    b_lin = jax.random.uniform(k2, (latent_dim,), jnp.float32, -bound, bound)
    params["to_latent"] = dict(w_conv=w_lat, b_conv=b_lat, w_lin=w_lin, b_lin=b_lin)
    params["k_size"] = k_size
    return params


# ----------------------------------------------------------------------------
# Pure-JAX reference (lax.conv, f32) for the correctness check
# ----------------------------------------------------------------------------
def _ref_conv(x, w, b, stride, pad):
    out = jax.lax.conv_general_dilated(
        x, w, (stride, stride), [(pad, pad), (pad, pad)],
        dimension_numbers=("NCHW", "OIHW", "NCHW"))
    return out + b[None, :, None, None]


def conv_encoder_reference(params, x):
    k_size = params["k_size"]
    h = x
    for blk in params["blocks"]:
        h = _ref_conv(h, blk["w1"], blk["b1"], 1, 1)
        h = h * blk["bn_s"][None, :, None, None] + blk["bn_t"][None, :, None, None]
        h = jnp.maximum(h, 0.0)
        h = _ref_conv(h, blk["wd"], blk["bd"], k_size, 1)
    tl = params["to_latent"]
    h = _ref_conv(h, tl["w_conv"], tl["b_conv"], 1, 0)
    flat = h.reshape(h.shape[0], -1)
    return flat @ tl["w_lin"].T + tl["b_lin"]


# ----------------------------------------------------------------------------
if __name__ == "__main__":
    # ConvEncoder(input_dim=4, latent_dim=32, num_blocks=2, hidden_c=8,
    #             img_size=16, k_size=2).  batch=16, NB=8 -> grid of 2 steps
    # so both v7x TensorCores get work and each matmul has M = 128 rows.
    input_dim, latent_dim, num_blocks, hidden_c, img_size, k_size = 4, 32, 2, 8, 16, 2
    batch, nb = 16, 8

    key = jax.random.PRNGKey(0)
    k_params, k_x = jax.random.split(key)
    params = init_encoder_params(k_params, input_dim, latent_dim, num_blocks,
                                 hidden_c, img_size, k_size)
    x = jax.random.normal(k_x, (batch, input_dim, img_size, img_size), jnp.float32)

    enc = prepare_encoder(params, input_dim, img_size, nb=nb)   # one-time prep
    out = jax.block_until_ready(conv_encoder_forward(enc, x))

    ref = jax.block_until_ready(conv_encoder_reference(params, x))

    assert out.shape == (batch, latent_dim), out.shape
    max_err = float(jnp.max(jnp.abs(out - ref)))
    # bf16 conv stages (f32 accumulation, f32 final linear): ~1e-3 observed.
    assert jnp.allclose(out, ref, atol=2e-2, rtol=2e-2), max_err
    print("KERNEL_OK")
</pallas_src>

<mosaic_0001>
module attributes {stable_mosaic.version = 11 : i64} {
  func.func @_encoder_kernel(%arg0: i32, %arg1: memref<1x128x64xf32, #tpu.memory_space<vmem>>, %arg2: memref<3x64x128xbf16, #tpu.memory_space<vmem>>, %arg3: memref<1x128xf32, #tpu.memory_space<vmem>>, %arg4: memref<3x128x64xbf16, #tpu.memory_space<vmem>>, %arg5: memref<64x128xf32, #tpu.memory_space<vmem>>, %arg6: memref<1x64xf32, #tpu.memory_space<vmem>>, %arg7: memref<3x64x128xbf16, #tpu.memory_space<vmem>>, %arg8: memref<1x128xf32, #tpu.memory_space<vmem>>, %arg9: memref<3x128x64xbf16, #tpu.memory_space<vmem>>, %arg10: memref<32x64xf32, #tpu.memory_space<vmem>>, %arg11: memref<1x64xf32, #tpu.memory_space<vmem>>, %arg12: memref<4x64x32xf32, #tpu.memory_space<vmem>>, %arg13: memref<8x32xf32, #tpu.memory_space<vmem>>, %arg14: memref<1x32xf32, #tpu.memory_space<vmem>>, %arg15: memref<1x8x32xf32, #tpu.memory_space<vmem>>) attributes {dimension_semantics = [#tpu.dimension_semantics<parallel>], iteration_bounds = array<i64: 2>, scalar_prefetch = 0 : i64, scratch_operands = 0 : i64, tpu.core_type = #tpu.core_type<tc>, window_params = [{transform_indices = @transform_0, window_bounds = array<i64: 1, 128, 64>}, {pipeline_mode = #tpu.pipeline_mode<synchronous>, transform_indices = @transform_1, window_bounds = array<i64: 3, 64, 128>}, {pipeline_mode = #tpu.pipeline_mode<synchronous>, transform_indices = @transform_2, window_bounds = array<i64: 1, 128>}, {pipeline_mode = #tpu.pipeline_mode<synchronous>, transform_indices = @transform_3, window_bounds = array<i64: 3, 128, 64>}, {pipeline_mode = #tpu.pipeline_mode<synchronous>, transform_indices = @transform_4, window_bounds = array<i64: 64, 128>}, {pipeline_mode = #tpu.pipeline_mode<synchronous>, transform_indices = @transform_5, window_bounds = array<i64: 1, 64>}, {pipeline_mode = #tpu.pipeline_mode<synchronous>, transform_indices = @transform_6, window_bounds = array<i64: 3, 64, 128>}, {pipeline_mode = #tpu.pipeline_mode<synchronous>, transform_indices = @transform_7, window_bounds = array<i64: 1, 128>}, {pipeline_mode = #tpu.pipeline_mode<synchronous>, transform_indices = @transform_8, window_bounds = array<i64: 3, 128, 64>}, {pipeline_mode = #tpu.pipeline_mode<synchronous>, transform_indices = @transform_9, window_bounds = array<i64: 32, 64>}, {pipeline_mode = #tpu.pipeline_mode<synchronous>, transform_indices = @transform_10, window_bounds = array<i64: 1, 64>}, {pipeline_mode = #tpu.pipeline_mode<synchronous>, transform_indices = @transform_11, window_bounds = array<i64: 4, 64, 32>}, {pipeline_mode = #tpu.pipeline_mode<synchronous>, transform_indices = @transform_12, window_bounds = array<i64: 8, 32>}, {pipeline_mode = #tpu.pipeline_mode<synchronous>, transform_indices = @transform_13, window_bounds = array<i64: 1, 32>}, {transform_indices = @transform_14, window_bounds = array<i64: 1, 8, 32>}]} {
    %c0 = arith.constant 0 : index
    %c0_0 = arith.constant 0 : index
    %c0_1 = arith.constant 0 : index
    %0 = vector.load %arg1[%c0, %c0_0, %c0_1] : memref<1x128x64xf32, #tpu.memory_space<vmem>>, vector<1x128x64xf32>
    %1 = vector.shape_cast %0 : vector<1x128x64xf32> to vector<128x64xf32>
    %2 = tpu.iota {dimensions = array<i32: 0>} : vector<128x1xi32>
    %c16_i32 = arith.constant 16 : i32
    %c0_i32 = arith.constant 0 : i32
    %3 = arith.cmpi eq, %c16_i32, %c0_i32 : i32
    %c1_i32 = arith.constant 1 : i32
    %4 = arith.select %3, %c1_i32, %c16_i32 : i32
    %5 = vector.broadcast %4 : i32 to vector<128x1xi32>
    %6 = arith.remsi %2, %5 : vector<128x1xi32>
    %c0_i32_2 = arith.constant 0 : i32
    %7 = vector.broadcast %c0_i32_2 : i32 to vector<128x1xi32>
    %8 = arith.cmpi ne, %6, %7 : vector<128x1xi32>
    %c0_i32_3 = arith.constant 0 : i32
    %9 = vector.broadcast %c0_i32_3 : i32 to vector<128x1xi32>
    %10 = arith.cmpi slt, %6, %9 : vector<128x1xi32>
    %c0_i32_4 = arith.constant 0 : i32
    %11 = arith.cmpi slt, %4, %c0_i32_4 : i32
    %12 = vector.broadcast %11 : i1 to vector<128x1xi1>
    %13 = vector.broadcast %12 : vector<128x1xi1> to vector<128x1xi1>
    %14 = arith.xori %10, %13 : vector<128x1xi1>
    %15 = arith.andi %14, %8 : vector<128x1xi1>
    %16 = vector.broadcast %4 : i32 to vector<128x1xi32>
    %17 = arith.addi %6, %16 : vector<128x1xi32>
    %18 = arith.select %15, %17, %6 : vector<128x1xi1>, vector<128x1xi32>
    %c1_i32_5 = arith.constant 1 : i32
    %19 = tpu.dynamic_rotate %1 by %c1_i32_5 dim 0 : vector<128x64xf32>, i32 -> vector<128x64xf32>
    %c1_i32_6 = arith.constant 1 : i32
    %20 = vector.broadcast %c1_i32_6 : i32 to vector<128x1xi32>
    %21 = arith.cmpi sge, %18, %20 : vector<128x1xi32>
    %cst = arith.constant 0.000000e+00 : f32
    %22 = vector.shape_cast %21 : vector<128x1xi1> to vector<128x1xi1>
    %23 = vector.broadcast %22 : vector<128x1xi1> to vector<128x64xi1>
    %24 = vector.broadcast %cst : f32 to vector<128x64xf32>
    %25 = arith.select %23, %19, %24 : vector<128x64xi1>, vector<128x64xf32>
    %26 = arith.truncf %25 : vector<128x64xf32> to vector<128x64xbf16>
    %c0_7 = arith.constant 0 : index
    %c0_8 = arith.constant 0 : index
    %c0_9 = arith.constant 0 : index
    %27 = vector.load %arg2[%c0_7, %c0_8, %c0_9] : memref<3x64x128xbf16, #tpu.memory_space<vmem>>, vector<1x64x128xbf16>
    %28 = vector.shape_cast %27 : vector<1x64x128xbf16> to vector<64x128xbf16>
    %cst_10 = arith.constant dense<0.000000e+00> : vector<128x128xf32>
    %29 = tpu.matmul %26, %28, %cst_10 {dimension_numbers = #tpu.dot_dimension_numbers<[1], [0], [0], [1], [0, 0, 1, 1], [], []>} : vector<128x64xbf16>, vector<64x128xbf16>, vector<128x128xf32> -> vector<128x128xf32>
    %30 = arith.truncf %1 : vector<128x64xf32> to vector<128x64xbf16>
    %c1 = arith.constant 1 : index
    %c0_11 = arith.constant 0 : index
    %c0_12 = arith.constant 0 : index
    %31 = vector.load %arg2[%c1, %c0_11, %c0_12] : memref<3x64x128xbf16, #tpu.memory_space<vmem>>, vector<1x64x128xbf16>
    %32 = vector.shape_cast %31 : vector<1x64x128xbf16> to vector<64x128xbf16>
    %cst_13 = arith.constant dense<0.000000e+00> : vector<128x128xf32>
    %33 = tpu.matmul %30, %32, %cst_13 {dimension_numbers = #tpu.dot_dimension_numbers<[1], [0], [0], [1], [0, 0, 1, 1], [], []>} : vector<128x64xbf16>, vector<64x128xbf16>, vector<128x128xf32> -> vector<128x128xf32>
    %34 = arith.addf %29, %33 : vector<128x128xf32>
    %c127_i32 = arith.constant 127 : i32
    %35 = tpu.dynamic_rotate %1 by %c127_i32 dim 0 : vector<128x64xf32>, i32 -> vector<128x64xf32>
    %c15_i32 = arith.constant 15 : i32
    %36 = vector.broadcast %c15_i32 : i32 to vector<128x1xi32>
    %37 = arith.cmpi slt, %18, %36 : vector<128x1xi32>
    %cst_14 = arith.constant 0.000000e+00 : f32
    %38 = vector.shape_cast %37 : vector<128x1xi1> to vector<128x1xi1>
    %39 = vector.broadcast %38 : vector<128x1xi1> to vector<128x64xi1>
    %40 = vector.broadcast %cst_14 : f32 to vector<128x64xf32>
    %41 = arith.select %39, %35, %40 : vector<128x64xi1>, vector<128x64xf32>
    %42 = arith.truncf %41 : vector<128x64xf32> to vector<128x64xbf16>
    %c2 = arith.constant 2 : index
    %c0_15 = arith.constant 0 : index
    %c0_16 = arith.constant 0 : index
    %43 = vector.load %arg2[%c2, %c0_15, %c0_16] : memref<3x64x128xbf16, #tpu.memory_space<vmem>>, vector<1x64x128xbf16>
    %44 = vector.shape_cast %43 : vector<1x64x128xbf16> to vector<64x128xbf16>
    %cst_17 = arith.constant dense<0.000000e+00> : vector<128x128xf32>
    %45 = tpu.matmul %42, %44, %cst_17 {dimension_numbers = #tpu.dot_dimension_numbers<[1], [0], [0], [1], [0, 0, 1, 1], [], []>} : vector<128x64xbf16>, vector<64x128xbf16>, vector<128x128xf32> -> vector<128x128xf32>
    %46 = arith.addf %34, %45 : vector<128x128xf32>
    %c0_18 = arith.constant 0 : index
    %c0_19 = arith.constant 0 : index
    %47 = vector.load %arg3[%c0_18, %c0_19] : memref<1x128xf32, #tpu.memory_space<vmem>>, vector<1x128xf32>
    %48 = vector.broadcast %47 : vector<1x128xf32> to vector<128x128xf32>
    %49 = arith.addf %46, %48 : vector<128x128xf32>
    %cst_20 = arith.constant 0.000000e+00 : f32
    %50 = vector.broadcast %cst_20 : f32 to vector<128x128xf32>
    %51 = arith.maximumf %49, %50 : vector<128x128xf32>
    %52 = tpu.iota {dimensions = array<i32: 0>} : vector<128x1xi32>
    %c16_i32_21 = arith.constant 16 : i32
    %c0_i32_22 = arith.constant 0 : i32
    %53 = arith.cmpi eq, %c16_i32_21, %c0_i32_22 : i32
    %c1_i32_23 = arith.constant 1 : i32
    %54 = arith.select %53, %c1_i32_23, %c16_i32_21 : i32
    %55 = vector.broadcast %54 : i32 to vector<128x1xi32>
    %56 = arith.remsi %52, %55 : vector<128x1xi32>
    %c0_i32_24 = arith.constant 0 : i32
    %57 = vector.broadcast %c0_i32_24 : i32 to vector<128x1xi32>
    %58 = arith.cmpi ne, %56, %57 : vector<128x1xi32>
    %c0_i32_25 = arith.constant 0 : i32
    %59 = vector.broadcast %c0_i32_25 : i32 to vector<128x1xi32>
    %60 = arith.cmpi slt, %56, %59 : vector<128x1xi32>
    %c0_i32_26 = arith.constant 0 : i32
    %61 = arith.cmpi slt, %54, %c0_i32_26 : i32
    %62 = vector.broadcast %61 : i1 to vector<128x1xi1>
    %63 = vector.broadcast %62 : vector<128x1xi1> to vector<128x1xi1>
    %64 = arith.xori %60, %63 : vector<128x1xi1>
    %65 = arith.andi %64, %58 : vector<128x1xi1>
    %66 = vector.broadcast %54 : i32 to vector<128x1xi32>
    %67 = arith.addi %56, %66 : vector<128x1xi32>
    %68 = arith.select %65, %67, %56 : vector<128x1xi1>, vector<128x1xi32>
    %c1_i32_27 = arith.constant 1 : i32
    %69 = tpu.dynamic_rotate %51 by %c1_i32_27 dim 0 : vector<128x128xf32>, i32 -> vector<128x128xf32>
    %c1_i32_28 = arith.constant 1 : i32
    %70 = vector.broadcast %c1_i32_28 : i32 to vector<128x1xi32>
    %71 = arith.cmpi sge, %68, %70 : vector<128x1xi32>
    %cst_29 = arith.constant 0.000000e+00 : f32
    %72 = vector.shape_cast %71 : vector<128x1xi1> to vector<128x1xi1>
    %73 = vector.broadcast %72 : vector<128x1xi1> to vector<128x128xi1>
    %74 = vector.broadcast %cst_29 : f32 to vector<128x128xf32>
    %75 = arith.select %73, %69, %74 : vector<128x128xi1>, vector<128x128xf32>
    %76 = arith.truncf %75 : vector<128x128xf32> to vector<128x128xbf16>
    %c0_30 = arith.constant 0 : index
    %c0_31 = arith.constant 0 : index
    %c0_32 = arith.constant 0 : index
    %77 = vector.load %arg4[%c0_30, %c0_31, %c0_32] : memref<3x128x64xbf16, #tpu.memory_space<vmem>>, vector<1x128x64xbf16>
    %78 = vector.shape_cast %77 : vector<1x128x64xbf16> to vector<128x64xbf16>
    %cst_33 = arith.constant dense<0.000000e+00> : vector<128x64xf32>
    %79 = tpu.matmul %76, %78, %cst_33 {dimension_numbers = #tpu.dot_dimension_numbers<[1], [0], [0], [1], [0, 0, 1, 1], [], []>} : vector<128x128xbf16>, vector<128x64xbf16>, vector<128x64xf32> -> vector<128x64xf32>
    %80 = arith.truncf %51 : vector<128x128xf32> to vector<128x128xbf16>
    %c1_34 = arith.constant 1 : index
    %c0_35 = arith.constant 0 : index
    %c0_36 = arith.constant 0 : index
    %81 = vector.load %arg4[%c1_34, %c0_35, %c0_36] : memref<3x128x64xbf16, #tpu.memory_space<vmem>>, vector<1x128x64xbf16>
    %82 = vector.shape_cast %81 : vector<1x128x64xbf16> to vector<128x64xbf16>
    %cst_37 = arith.constant dense<0.000000e+00> : vector<128x64xf32>
    %83 = tpu.matmul %80, %82, %cst_37 {dimension_numbers = #tpu.dot_dimension_numbers<[1], [0], [0], [1], [0, 0, 1, 1], [], []>} : vector<128x128xbf16>, vector<128x64xbf16>, vector<128x64xf32> -> vector<128x64xf32>
    %84 = arith.addf %79, %83 : vector<128x64xf32>
    %c127_i32_38 = arith.constant 127 : i32
    %85 = tpu.dynamic_rotate %51 by %c127_i32_38 dim 0 : vector<128x128xf32>, i32 -> vector<128x128xf32>
    %c15_i32_39 = arith.constant 15 : i32
    %86 = vector.broadcast %c15_i32_39 : i32 to vector<128x1xi32>
    %87 = arith.cmpi slt, %68, %86 : vector<128x1xi32>
    %cst_40 = arith.constant 0.000000e+00 : f32
    %88 = vector.shape_cast %87 : vector<128x1xi1> to vector<128x1xi1>
    %89 = vector.broadcast %88 : vector<128x1xi1> to vector<128x128xi1>
    %90 = vector.broadcast %cst_40 : f32 to vector<128x128xf32>
    %91 = arith.select %89, %85, %90 : vector<128x128xi1>, vector<128x128xf32>
    %92 = arith.truncf %91 : vector<128x128xf32> to vector<128x128xbf16>
    %c2_41 = arith.constant 2 : index
    %c0_42 = arith.constant 0 : index
    %c0_43 = arith.constant 0 : index
    %93 = vector.load %arg4[%c2_41, %c0_42, %c0_43] : memref<3x128x64xbf16, #tpu.memory_space<vmem>>, vector<1x128x64xbf16>
    %94 = vector.shape_cast %93 : vector<1x128x64xbf16> to vector<128x64xbf16>
    %cst_44 = arith.constant dense<0.000000e+00> : vector<128x64xf32>
    %95 = tpu.matmul %92, %94, %cst_44 {dimension_numbers = #tpu.dot_dimension_numbers<[1], [0], [0], [1], [0, 0, 1, 1], [], []>} : vector<128x128xbf16>, vector<128x64xbf16>, vector<128x64xf32> -> vector<128x64xf32>
    %96 = arith.addf %84, %95 : vector<128x64xf32>
    %c0_45 = arith.constant 0 : index
    %c0_46 = arith.constant 0 : index
    %97 = vector.load %arg5[%c0_45, %c0_46] : memref<64x128xf32, #tpu.memory_space<vmem>>, vector<64x128xf32>
    %cst_47 = arith.constant dense<0.000000e+00> : vector<64x64xf32>
    %98 = tpu.matmul %97, %96, %cst_47 {dimension_numbers = #tpu.dot_dimension_numbers<[1], [0], [0], [1], [0, 0, 1, 1], [], []>} : vector<64x128xf32>, vector<128x64xf32>, vector<64x64xf32> -> vector<64x64xf32>
    %c0_48 = arith.constant 0 : index
    %c0_49 = arith.constant 0 : index
    %99 = vector.load %arg6[%c0_48, %c0_49] : memref<1x64xf32, #tpu.memory_space<vmem>>, vector<1x64xf32>
    %100 = vector.broadcast %99 : vector<1x64xf32> to vector<64x64xf32>
    %101 = arith.addf %98, %100 : vector<64x64xf32>
    %102 = tpu.iota {dimensions = array<i32: 0>} : vector<64x1xi32>
    %c8_i32 = arith.constant 8 : i32
    %c0_i32_50 = arith.constant 0 : i32
    %103 = arith.cmpi eq, %c8_i32, %c0_i32_50 : i32
    %c1_i32_51 = arith.constant 1 : i32
    %104 = arith.select %103, %c1_i32_51, %c8_i32 : i32
    %105 = vector.broadcast %104 : i32 to vector<64x1xi32>
    %106 = arith.remsi %102, %105 : vector<64x1xi32>
    %c0_i32_52 = arith.constant 0 : i32
    %107 = vector.broadcast %c0_i32_52 : i32 to vector<64x1xi32>
    %108 = arith.cmpi ne, %106, %107 : vector<64x1xi32>
    %c0_i32_53 = arith.constant 0 : i32
    %109 = vector.broadcast %c0_i32_53 : i32 to vector<64x1xi32>
    %110 = arith.cmpi slt, %106, %109 : vector<64x1xi32>
    %c0_i32_54 = arith.constant 0 : i32
    %111 = arith.cmpi slt, %104, %c0_i32_54 : i32
    %112 = vector.broadcast %111 : i1 to vector<64x1xi1>
    %113 = vector.broadcast %112 : vector<64x1xi1> to vector<64x1xi1>
    %114 = arith.xori %110, %113 : vector<64x1xi1>
    %115 = arith.andi %114, %108 : vector<64x1xi1>
    %116 = vector.broadcast %104 : i32 to vector<64x1xi32>
    %117 = arith.addi %106, %116 : vector<64x1xi32>
    %118 = arith.select %115, %117, %106 : vector<64x1xi1>, vector<64x1xi32>
    %c1_i32_55 = arith.constant 1 : i32
    %119 = tpu.dynamic_rotate %101 by %c1_i32_55 dim 0 : vector<64x64xf32>, i32 -> vector<64x64xf32>
    %c1_i32_56 = arith.constant 1 : i32
    %120 = vector.broadcast %c1_i32_56 : i32 to vector<64x1xi32>
    %121 = arith.cmpi sge, %118, %120 : vector<64x1xi32>
    %cst_57 = arith.constant 0.000000e+00 : f32
    %122 = vector.shape_cast %121 : vector<64x1xi1> to vector<64x1xi1>
    %123 = vector.broadcast %122 : vector<64x1xi1> to vector<64x64xi1>
    %124 = vector.broadcast %cst_57 : f32 to vector<64x64xf32>
    %125 = arith.select %123, %119, %124 : vector<64x64xi1>, vector<64x64xf32>
    %126 = arith.truncf %125 : vector<64x64xf32> to vector<64x64xbf16>
    %c0_58 = arith.constant 0 : index
    %c0_59 = arith.constant 0 : index
    %c0_60 = arith.constant 0 : index
    %127 = vector.load %arg7[%c0_58, %c0_59, %c0_60] : memref<3x64x128xbf16, #tpu.memory_space<vmem>>, vector<1x64x128xbf16>
    %128 = vector.shape_cast %127 : vector<1x64x128xbf16> to vector<64x128xbf16>
    %cst_61 = arith.constant dense<0.000000e+00> : vector<64x128xf32>
    %129 = tpu.matmul %126, %128, %cst_61 {dimension_numbers = #tpu.dot_dimension_numbers<[1], [0], [0], [1], [0, 0, 1, 1], [], []>} : vector<64x64xbf16>, vector<64x128xbf16>, vector<64x128xf32> -> vector<64x128xf32>
    %130 = arith.truncf %101 : vector<64x64xf32> to vector<64x64xbf16>
    %c1_62 = arith.constant 1 : index
    %c0_63 = arith.constant 0 : index
    %c0_64 = arith.constant 0 : index
    %131 = vector.load %arg7[%c1_62, %c0_63, %c0_64] : memref<3x64x128xbf16, #tpu.memory_space<vmem>>, vector<1x64x128xbf16>
    %132 = vector.shape_cast %131 : vector<1x64x128xbf16> to vector<64x128xbf16>
    %cst_65 = arith.constant dense<0.000000e+00> : vector<64x128xf32>
    %133 = tpu.matmul %130, %132, %cst_65 {dimension_numbers = #tpu.dot_dimension_numbers<[1], [0], [0], [1], [0, 0, 1, 1], [], []>} : vector<64x64xbf16>, vector<64x128xbf16>, vector<64x128xf32> -> vector<64x128xf32>
    %134 = arith.addf %129, %133 : vector<64x128xf32>
    %c63_i32 = arith.constant 63 : i32
    %135 = tpu.dynamic_rotate %101 by %c63_i32 dim 0 : vector<64x64xf32>, i32 -> vector<64x64xf32>
    %c7_i32 = arith.constant 7 : i32
    %136 = vector.broadcast %c7_i32 : i32 to vector<64x1xi32>
    %137 = arith.cmpi slt, %118, %136 : vector<64x1xi32>
    %cst_66 = arith.constant 0.000000e+00 : f32
    %138 = vector.shape_cast %137 : vector<64x1xi1> to vector<64x1xi1>
    %139 = vector.broadcast %138 : vector<64x1xi1> to vector<64x64xi1>
    %140 = vector.broadcast %cst_66 : f32 to vector<64x64xf32>
    %141 = arith.select %139, %135, %140 : vector<64x64xi1>, vector<64x64xf32>
    %142 = arith.truncf %141 : vector<64x64xf32> to vector<64x64xbf16>
    %c2_67 = arith.constant 2 : index
    %c0_68 = arith.constant 0 : index
    %c0_69 = arith.constant 0 : index
    %143 = vector.load %arg7[%c2_67, %c0_68, %c0_69] : memref<3x64x128xbf16, #tpu.memory_space<vmem>>, vector<1x64x128xbf16>
    %144 = vector.shape_cast %143 : vector<1x64x128xbf16> to vector<64x128xbf16>
    %cst_70 = arith.constant dense<0.000000e+00> : vector<64x128xf32>
    %145 = tpu.matmul %142, %144, %cst_70 {dimension_numbers = #tpu.dot_dimension_numbers<[1], [0], [0], [1], [0, 0, 1, 1], [], []>} : vector<64x64xbf16>, vector<64x128xbf16>, vector<64x128xf32> -> vector<64x128xf32>
    %146 = arith.addf %134, %145 : vector<64x128xf32>
    %c0_71 = arith.constant 0 : index
    %c0_72 = arith.constant 0 : index
    %147 = vector.load %arg8[%c0_71, %c0_72] : memref<1x128xf32, #tpu.memory_space<vmem>>, vector<1x128xf32>
    %148 = vector.broadcast %147 : vector<1x128xf32> to vector<64x128xf32>
    %149 = arith.addf %146, %148 : vector<64x128xf32>
    %cst_73 = arith.constant 0.000000e+00 : f32
    %150 = vector.broadcast %cst_73 : f32 to vector<64x128xf32>
    %151 = arith.maximumf %149, %150 : vector<64x128xf32>
    %152 = tpu.iota {dimensions = array<i32: 0>} : vector<64x1xi32>
    %c8_i32_74 = arith.constant 8 : i32
    %c0_i32_75 = arith.constant 0 : i32
    %153 = arith.cmpi eq, %c8_i32_74, %c0_i32_75 : i32
    %c1_i32_76 = arith.constant 1 : i32
    %154 = arith.select %153, %c1_i32_76, %c8_i32_74 : i32
    %155 = vector.broadcast %154 : i32 to vector<64x1xi32>
    %156 = arith.remsi %152, %155 : vector<64x1xi32>
    %c0_i32_77 = arith.constant 0 : i32
    %157 = vector.broadcast %c0_i32_77 : i32 to vector<64x1xi32>
    %158 = arith.cmpi ne, %156, %157 : vector<64x1xi32>
    %c0_i32_78 = arith.constant 0 : i32
    %159 = vector.broadcast %c0_i32_78 : i32 to vector<64x1xi32>
    %160 = arith.cmpi slt, %156, %159 : vector<64x1xi32>
    %c0_i32_79 = arith.constant 0 : i32
    %161 = arith.cmpi slt, %154, %c0_i32_79 : i32
    %162 = vector.broadcast %161 : i1 to vector<64x1xi1>
    %163 = vector.broadcast %162 : vector<64x1xi1> to vector<64x1xi1>
    %164 = arith.xori %160, %163 : vector<64x1xi1>
    %165 = arith.andi %164, %158 : vector<64x1xi1>
    %166 = vector.broadcast %154 : i32 to vector<64x1xi32>
    %167 = arith.addi %156, %166 : vector<64x1xi32>
    %168 = arith.select %165, %167, %156 : vector<64x1xi1>, vector<64x1xi32>
    %c1_i32_80 = arith.constant 1 : i32
    %169 = tpu.dynamic_rotate %151 by %c1_i32_80 dim 0 : vector<64x128xf32>, i32 -> vector<64x128xf32>
    %c1_i32_81 = arith.constant 1 : i32
    %170 = vector.broadcast %c1_i32_81 : i32 to vector<64x1xi32>
    %171 = arith.cmpi sge, %168, %170 : vector<64x1xi32>
    %cst_82 = arith.constant 0.000000e+00 : f32
    %172 = vector.shape_cast %171 : vector<64x1xi1> to vector<64x1xi1>
    %173 = vector.broadcast %172 : vector<64x1xi1> to vector<64x128xi1>
    %174 = vector.broadcast %cst_82 : f32 to vector<64x128xf32>
    %175 = arith.select %173, %169, %174 : vector<64x128xi1>, vector<64x128xf32>
    %176 = arith.truncf %175 : vector<64x128xf32> to vector<64x128xbf16>
    %c0_83 = arith.constant 0 : index
    %c0_84 = arith.constant 0 : index
    %c0_85 = arith.constant 0 : index
    %177 = vector.load %arg9[%c0_83, %c0_84, %c0_85] : memref<3x128x64xbf16, #tpu.memory_space<vmem>>, vector<1x128x64xbf16>
    %178 = vector.shape_cast %177 : vector<1x128x64xbf16> to vector<128x64xbf16>
    %cst_86 = arith.constant dense<0.000000e+00> : vector<64x64xf32>
    %179 = tpu.matmul %176, %178, %cst_86 {dimension_numbers = #tpu.dot_dimension_numbers<[1], [0], [0], [1], [0, 0, 1, 1], [], []>} : vector<64x128xbf16>, vector<128x64xbf16>, vector<64x64xf32> -> vector<64x64xf32>
    %180 = arith.truncf %151 : vector<64x128xf32> to vector<64x128xbf16>
    %c1_87 = arith.constant 1 : index
    %c0_88 = arith.constant 0 : index
    %c0_89 = arith.constant 0 : index
    %181 = vector.load %arg9[%c1_87, %c0_88, %c0_89] : memref<3x128x64xbf16, #tpu.memory_space<vmem>>, vector<1x128x64xbf16>
    %182 = vector.shape_cast %181 : vector<1x128x64xbf16> to vector<128x64xbf16>
    %cst_90 = arith.constant dense<0.000000e+00> : vector<64x64xf32>
    %183 = tpu.matmul %180, %182, %cst_90 {dimension_numbers = #tpu.dot_dimension_numbers<[1], [0], [0], [1], [0, 0, 1, 1], [], []>} : vector<64x128xbf16>, vector<128x64xbf16>, vector<64x64xf32> -> vector<64x64xf32>
    %184 = arith.addf %179, %183 : vector<64x64xf32>
    %c63_i32_91 = arith.constant 63 : i32
    %185 = tpu.dynamic_rotate %151 by %c63_i32_91 dim 0 : vector<64x128xf32>, i32 -> vector<64x128xf32>
    %c7_i32_92 = arith.constant 7 : i32
    %186 = vector.broadcast %c7_i32_92 : i32 to vector<64x1xi32>
    %187 = arith.cmpi slt, %168, %186 : vector<64x1xi32>
    %cst_93 = arith.constant 0.000000e+00 : f32
    %188 = vector.shape_cast %187 : vector<64x1xi1> to vector<64x1xi1>
    %189 = vector.broadcast %188 : vector<64x1xi1> to vector<64x128xi1>
    %190 = vector.broadcast %cst_93 : f32 to vector<64x128xf32>
    %191 = arith.select %189, %185, %190 : vector<64x128xi1>, vector<64x128xf32>
    %192 = arith.truncf %191 : vector<64x128xf32> to vector<64x128xbf16>
    %c2_94 = arith.constant 2 : index
    %c0_95 = arith.constant 0 : index
    %c0_96 = arith.constant 0 : index
    %193 = vector.load %arg9[%c2_94, %c0_95, %c0_96] : memref<3x128x64xbf16, #tpu.memory_space<vmem>>, vector<1x128x64xbf16>
    %194 = vector.shape_cast %193 : vector<1x128x64xbf16> to vector<128x64xbf16>
    %cst_97 = arith.constant dense<0.000000e+00> : vector<64x64xf32>
    %195 = tpu.matmul %192, %194, %cst_97 {dimension_numbers = #tpu.dot_dimension_numbers<[1], [0], [0], [1], [0, 0, 1, 1], [], []>} : vector<64x128xbf16>, vector<128x64xbf16>, vector<64x64xf32> -> vector<64x64xf32>
    %196 = arith.addf %184, %195 : vector<64x64xf32>
    %c0_98 = arith.constant 0 : index
    %c0_99 = arith.constant 0 : index
    %197 = vector.load %arg10[%c0_98, %c0_99] : memref<32x64xf32, #tpu.memory_space<vmem>>, vector<32x64xf32>
    %cst_100 = arith.constant dense<0.000000e+00> : vector<32x64xf32>
    %198 = tpu.matmul %197, %196, %cst_100 {dimension_numbers = #tpu.dot_dimension_numbers<[1], [0], [0], [1], [0, 0, 1, 1], [], []>} : vector<32x64xf32>, vector<64x64xf32>, vector<32x64xf32> -> vector<32x64xf32>
    %c0_101 = arith.constant 0 : index
    %c0_102 = arith.constant 0 : index
    %199 = vector.load %arg11[%c0_101, %c0_102] : memref<1x64xf32, #tpu.memory_space<vmem>>, vector<1x64xf32>
    %200 = vector.broadcast %199 : vector<1x64xf32> to vector<32x64xf32>
    %201 = arith.addf %198, %200 : vector<32x64xf32>
    %c0_103 = arith.constant 0 : index
    %c0_104 = arith.constant 0 : index
    %c0_105 = arith.constant 0 : index
    %202 = vector.load %arg12[%c0_103, %c0_104, %c0_105] : memref<4x64x32xf32, #tpu.memory_space<vmem>>, vector<1x64x32xf32>
    %203 = vector.shape_cast %202 : vector<1x64x32xf32> to vector<64x32xf32>
    %cst_106 = arith.constant dense<0.000000e+00> : vector<32x32xf32>
    %204 = tpu.matmul %201, %203, %cst_106 {dimension_numbers = #tpu.dot_dimension_numbers<[1], [0], [0], [1], [0, 0, 1, 1], [], []>} : vector<32x64xf32>, vector<64x32xf32>, vector<32x32xf32> -> vector<32x32xf32>
    %c31_i32 = arith.constant 31 : i32
    %205 = tpu.dynamic_rotate %201 by %c31_i32 dim 0 : vector<32x64xf32>, i32 -> vector<32x64xf32>
    %c1_107 = arith.constant 1 : index
    %c0_108 = arith.constant 0 : index
    %c0_109 = arith.constant 0 : index
    %206 = vector.load %arg12[%c1_107, %c0_108, %c0_109] : memref<4x64x32xf32, #tpu.memory_space<vmem>>, vector<1x64x32xf32>
    %207 = vector.shape_cast %206 : vector<1x64x32xf32> to vector<64x32xf32>
    %cst_110 = arith.constant dense<0.000000e+00> : vector<32x32xf32>
    %208 = tpu.matmul %205, %207, %cst_110 {dimension_numbers = #tpu.dot_dimension_numbers<[1], [0], [0], [1], [0, 0, 1, 1], [], []>} : vector<32x64xf32>, vector<64x32xf32>, vector<32x32xf32> -> vector<32x32xf32>
    %209 = arith.addf %204, %208 : vector<32x32xf32>
    %c30_i32 = arith.constant 30 : i32
    %210 = tpu.dynamic_rotate %201 by %c30_i32 dim 0 : vector<32x64xf32>, i32 -> vector<32x64xf32>
    %c2_111 = arith.constant 2 : index
    %c0_112 = arith.constant 0 : index
    %c0_113 = arith.constant 0 : index
    %211 = vector.load %arg12[%c2_111, %c0_112, %c0_113] : memref<4x64x32xf32, #tpu.memory_space<vmem>>, vector<1x64x32xf32>
    %212 = vector.shape_cast %211 : vector<1x64x32xf32> to vector<64x32xf32>
    %cst_114 = arith.constant dense<0.000000e+00> : vector<32x32xf32>
    %213 = tpu.matmul %210, %212, %cst_114 {dimension_numbers = #tpu.dot_dimension_numbers<[1], [0], [0], [1], [0, 0, 1, 1], [], []>} : vector<32x64xf32>, vector<64x32xf32>, vector<32x32xf32> -> vector<32x32xf32>
    %214 = arith.addf %209, %213 : vector<32x32xf32>
    %c29_i32 = arith.constant 29 : i32
    %215 = tpu.dynamic_rotate %201 by %c29_i32 dim 0 : vector<32x64xf32>, i32 -> vector<32x64xf32>
    %c3 = arith.constant 3 : index
    %c0_115 = arith.constant 0 : index
    %c0_116 = arith.constant 0 : index
    %216 = vector.load %arg12[%c3, %c0_115, %c0_116] : memref<4x64x32xf32, #tpu.memory_space<vmem>>, vector<1x64x32xf32>
    %217 = vector.shape_cast %216 : vector<1x64x32xf32> to vector<64x32xf32>
    %cst_117 = arith.constant dense<0.000000e+00> : vector<32x32xf32>
    %218 = tpu.matmul %215, %217, %cst_117 {dimension_numbers = #tpu.dot_dimension_numbers<[1], [0], [0], [1], [0, 0, 1, 1], [], []>} : vector<32x64xf32>, vector<64x32xf32>, vector<32x32xf32> -> vector<32x32xf32>
    %219 = arith.addf %214, %218 : vector<32x32xf32>
    %c0_118 = arith.constant 0 : index
    %c0_119 = arith.constant 0 : index
    %220 = vector.load %arg13[%c0_118, %c0_119] : memref<8x32xf32, #tpu.memory_space<vmem>>, vector<8x32xf32>
    %cst_120 = arith.constant dense<0.000000e+00> : vector<8x32xf32>
    %221 = tpu.matmul %220, %219, %cst_120 {dimension_numbers = #tpu.dot_dimension_numbers<[1], [0], [0], [1], [0, 0, 1, 1], [], []>} : vector<8x32xf32>, vector<32x32xf32>, vector<8x32xf32> -> vector<8x32xf32>
    %c0_121 = arith.constant 0 : index
    %c0_122 = arith.constant 0 : index
    %222 = vector.load %arg14[%c0_121, %c0_122] : memref<1x32xf32, #tpu.memory_space<vmem>>, vector<1x32xf32>
    %223 = vector.broadcast %222 : vector<1x32xf32> to vector<8x32xf32>
    %224 = arith.addf %221, %223 : vector<8x32xf32>
    %c0_123 = arith.constant 0 : index
    %c0_124 = arith.constant 0 : index
    %c0_125 = arith.constant 0 : index
    %225 = vector.load %arg15[%c0_123, %c0_124, %c0_125] : memref<1x8x32xf32, #tpu.memory_space<vmem>>, vector<1x8x32xf32>
    %226 = vector.shape_cast %225 : vector<1x8x32xf32> to vector<8x32xf32>
    %227 = vector.shape_cast %224 : vector<8x32xf32> to vector<1x8x32xf32>
    tpu.vector_store %arg15[%c0_123, %c0_124, %c0_125], %227 {strides = array<i32>} : memref<1x8x32xf32, #tpu.memory_space<vmem>>, vector<1x8x32xf32>,
    return
  }
  func.func @transform_0(%arg0: i32) -> (i32, i32, i32) {
    %c0_i32 = arith.constant 0 : i32
    %c0_i32_0 = arith.constant 0 : i32
    %c0_i32_1 = arith.constant 0 : i32
    return %arg0, %c0_i32, %c0_i32_0 : i32, i32, i32
  }
  func.func @transform_1(%arg0: i32) -> (i32, i32, i32) {
    %c0_i32 = arith.constant 0 : i32
    %c0_i32_0 = arith.constant 0 : i32
    %c0_i32_1 = arith.constant 0 : i32
    %c0_i32_2 = arith.constant 0 : i32
    return %c0_i32, %c0_i32_0, %c0_i32_1 : i32, i32, i32
  }
  func.func @transform_2(%arg0: i32) -> (i32, i32) {
    %c0_i32 = arith.constant 0 : i32
    %c0_i32_0 = arith.constant 0 : i32
    %c0_i32_1 = arith.constant 0 : i32
    return %c0_i32, %c0_i32_0 : i32, i32
  }
  func.func @transform_3(%arg0: i32) -> (i32, i32, i32) {
    %c0_i32 = arith.constant 0 : i32
    %c0_i32_0 = arith.constant 0 : i32
    %c0_i32_1 = arith.constant 0 : i32
    %c0_i32_2 = arith.constant 0 : i32
    return %c0_i32, %c0_i32_0, %c0_i32_1 : i32, i32, i32
  }
  func.func @transform_4(%arg0: i32) -> (i32, i32) {
    %c0_i32 = arith.constant 0 : i32
    %c0_i32_0 = arith.constant 0 : i32
    %c0_i32_1 = arith.constant 0 : i32
    return %c0_i32, %c0_i32_0 : i32, i32
  }
  func.func @transform_5(%arg0: i32) -> (i32, i32) {
    %c0_i32 = arith.constant 0 : i32
    %c0_i32_0 = arith.constant 0 : i32
    %c0_i32_1 = arith.constant 0 : i32
    return %c0_i32, %c0_i32_0 : i32, i32
  }
  func.func @transform_6(%arg0: i32) -> (i32, i32, i32) {
    %c0_i32 = arith.constant 0 : i32
    %c0_i32_0 = arith.constant 0 : i32
    %c0_i32_1 = arith.constant 0 : i32
    %c0_i32_2 = arith.constant 0 : i32
    return %c0_i32, %c0_i32_0, %c0_i32_1 : i32, i32, i32
  }
  func.func @transform_7(%arg0: i32) -> (i32, i32) {
    %c0_i32 = arith.constant 0 : i32
    %c0_i32_0 = arith.constant 0 : i32
    %c0_i32_1 = arith.constant 0 : i32
    return %c0_i32, %c0_i32_0 : i32, i32
  }
  func.func @transform_8(%arg0: i32) -> (i32, i32, i32) {
    %c0_i32 = arith.constant 0 : i32
    %c0_i32_0 = arith.constant 0 : i32
    %c0_i32_1 = arith.constant 0 : i32
    %c0_i32_2 = arith.constant 0 : i32
    return %c0_i32, %c0_i32_0, %c0_i32_1 : i32, i32, i32
  }
  func.func @transform_9(%arg0: i32) -> (i32, i32) {
    %c0_i32 = arith.constant 0 : i32
    %c0_i32_0 = arith.constant 0 : i32
    %c0_i32_1 = arith.constant 0 : i32
    return %c0_i32, %c0_i32_0 : i32, i32
  }
  func.func @transform_10(%arg0: i32) -> (i32, i32) {
    %c0_i32 = arith.constant 0 : i32
    %c0_i32_0 = arith.constant 0 : i32
    %c0_i32_1 = arith.constant 0 : i32
    return %c0_i32, %c0_i32_0 : i32, i32
  }
  func.func @transform_11(%arg0: i32) -> (i32, i32, i32) {
    %c0_i32 = arith.constant 0 : i32
    %c0_i32_0 = arith.constant 0 : i32
    %c0_i32_1 = arith.constant 0 : i32
    %c0_i32_2 = arith.constant 0 : i32
    return %c0_i32, %c0_i32_0, %c0_i32_1 : i32, i32, i32
  }
  func.func @transform_12(%arg0: i32) -> (i32, i32) {
    %c0_i32 = arith.constant 0 : i32
    %c0_i32_0 = arith.constant 0 : i32
    %c0_i32_1 = arith.constant 0 : i32
    return %c0_i32, %c0_i32_0 : i32, i32
  }
  func.func @transform_13(%arg0: i32) -> (i32, i32) {
    %c0_i32 = arith.constant 0 : i32
    %c0_i32_0 = arith.constant 0 : i32
    %c0_i32_1 = arith.constant 0 : i32
    return %c0_i32, %c0_i32_0 : i32, i32
  }
  func.func @transform_14(%arg0: i32) -> (i32, i32, i32) {
    %c0_i32 = arith.constant 0 : i32
    %c0_i32_0 = arith.constant 0 : i32
    %c0_i32_1 = arith.constant 0 : i32
    return %arg0, %c0_i32, %c0_i32_0 : i32, i32, i32
  }
}

</mosaic_0001>

<llo_original>
// kernel: tpu_custom_call.1
$region0: #{tpu_custom_call.1}
  #allocation0 [shape = 'u32[]', space=smem, size = 0x4, offset = 0x4, fixed_abs, tag = 'smem constant byte address 0x4 - core index']
  #allocation1 [shape = 'u32[144,128]{1,0:T(1,128)}', space=vmem, size = 0x12000, scoped, tag = 'internal scratch']
  %s0 = inlined_call_operand.vmem [shape: f32[2,128,64], index: 0, kind: input, shape index: {}]
  %s1 = inlined_call_operand.vmem [shape: bf16[3,64,128], index: 1, kind: input, shape index: {}]
  %s2 = inlined_call_operand.vmem [shape: f32[1,128], index: 2, kind: input, shape index: {}]
  %s3 = inlined_call_operand.vmem [shape: bf16[3,128,64], index: 3, kind: input, shape index: {}]
  %s4 = inlined_call_operand.vmem [shape: f32[64,128], index: 4, kind: input, shape index: {}]
  %s5 = inlined_call_operand.vmem [shape: f32[1,64], index: 5, kind: input, shape index: {}]
  %s6 = inlined_call_operand.vmem [shape: bf16[3,64,128], index: 6, kind: input, shape index: {}]
  %s7 = inlined_call_operand.vmem [shape: f32[1,128], index: 7, kind: input, shape index: {}]
  %s8 = inlined_call_operand.vmem [shape: bf16[3,128,64], index: 8, kind: input, shape index: {}]
  %s9 = inlined_call_operand.vmem [shape: f32[32,64], index: 9, kind: input, shape index: {}]
  %s10 = inlined_call_operand.vmem [shape: f32[1,64], index: 10, kind: input, shape index: {}]
  %s11 = inlined_call_operand.vmem [shape: f32[4,64,32], index: 11, kind: input, shape index: {}]
  %s12 = inlined_call_operand.vmem [shape: f32[8,32], index: 12, kind: input, shape index: {}]
  %s13 = inlined_call_operand.vmem [shape: f32[1,32], index: 13, kind: input, shape index: {}]
  %s14 = inlined_call_operand.hbm [shape: f32[2,8,32], index: 14, kind: output, shape index: {}]
  %s15 = sld [smem:[#allocation0]]
  $region89: #{tpu_custom_call.1} parent=0
    _
  %s17 = ssub.s32 1, %s15
  %s18 = scalar_select 0, %s17, %s15
  $region1: #{tpu_custom_call.1} parent=0
    #allocation2 [shape = 'u8[8192]{0}', space=vmem, size = 0x2000, scoped, tag = 'output window, operand 0']
    #allocation3 [shape = 's32[2]{0}', space=sflag, size = 0x8, scoped, tag = 'scoped memory for tpu_custom_call.1']
    %19 = vsyncpa [#allocation3], 0
    %s20 = scalar_lea.sflag [#allocation3], 1
    %21 = vsyncpa %s20, 0
    loop: start=0, step=1, limit=4
    $region2: #{tpu_custom_call.1} parent=1 // loop_pre_header
      _
    $region3: #{tpu_custom_call.1} parent=1 // loop_header
      %s23 = sphi 0, %s27
      %p24 = scmp.ge.s32.totalorder %s23, 4
      %s33 = sphi 0, %s35
      %s36 = sphi 0, %s33
      %s37 = sphi 0, %s36
      %s53 = sphi 0, %s37
      %s57 = sphi 0, %s57
      %s59 = sphi 0, %s57
      %s60 = sphi 0, %s59
      %s74 = sphi 0, %s60
      %s78 = sphi 0, %s78
      %s80 = sphi 0, %s78
      %s81 = sphi 0, %s80
      %s95 = sphi 0, %s81
      %s99 = sphi 0, %s99
      %s101 = sphi 0, %s99
      %s102 = sphi 0, %s101
      %s116 = sphi 0, %s102
      %s120 = sphi 0, %s120
      %s122 = sphi 0, %s120
      %s123 = sphi 0, %s122
      %s137 = sphi 0, %s123
      %s141 = sphi 0, %s141
      %s143 = sphi 0, %s141
      %s144 = sphi 0, %s143
      %s158 = sphi 0, %s144
      %s162 = sphi 0, %s162
      %s164 = sphi 0, %s162
      %s165 = sphi 0, %s164
      %s179 = sphi 0, %s165
      %s183 = sphi 0, %s183
      %s185 = sphi 0, %s183
      %s186 = sphi 0, %s185
      %s200 = sphi 0, %s186
      %s204 = sphi 0, %s204
      %s206 = sphi 0, %s204
      %s207 = sphi 0, %s206
      %s221 = sphi 0, %s207
      %s225 = sphi 0, %s225
      %s227 = sphi 0, %s225
      %s228 = sphi 0, %s227
      %s242 = sphi 0, %s228
      %s246 = sphi 0, %s246
      %s248 = sphi 0, %s246
      %s249 = sphi 0, %s248
      %s263 = sphi 0, %s249
      %s267 = sphi 0, %s267
      %s269 = sphi 0, %s267
      %s270 = sphi 0, %s269
      %s284 = sphi 0, %s270
      %s288 = sphi 0, %s288
      %s290 = sphi 0, %s288
      %s291 = sphi 0, %s290
      %s305 = sphi 0, %s291
      %s309 = sphi 0, %s309
      %s311 = sphi 0, %s309
      %s312 = sphi 0, %s311
      %s326 = sphi 0, %s312
      %s332 = sphi 0, %s334
      %s335 = sphi 0, %s332
      %s336 = sphi 0, %s335
      %s352 = sphi 0, %s336
    $region4: #{tpu_custom_call.1} parent=1 // loop_header_branch
      %26 = sbr.rel (%p24) target = $region8
    $region5: #{tpu_custom_call.1} parent=1 // loop_body
      %s28 = ssub.s32 %s23, 1
      %s29 = ssub.s32 %s23, 2
      %s30 = sadd.s32 %s23, 1
      %s31 = ssub.s32 %s23, %s30
      %p32 = scmp.eq.s32.totalorder %s31, 0
      %s34 = sadd.s32 %s33, 1
      %s35 = scalar_select %p32, %s33, %s34
      %p38 = pneg %p32
      %p39 = scmp.eq.s32.totalorder %s23, 1
      %p40 = por %p38, %p39
      %p41 = scmp.ne.s32.totalorder %s33, %s36
      %p42 = scmp.eq.s32.totalorder %s23, 0
      %p43 = por %p41, %p42
      %p44 = scmp.ne.s32.totalorder %s33, %s36
      %p45 = scmp.eq.s32.totalorder %s28, 1
      %p46 = por %p44, %p45
      %p47 = scmp.ne.s32.totalorder %s36, %s37
      %p48 = scmp.eq.s32.totalorder %s28, 0
      %p49 = por %p47, %p48
      %p50 = scmp.ne.s32.totalorder %s36, %s37
      %p51 = scmp.eq.s32.totalorder %s29, 1
      %p52 = por %p50, %p51
      %p54 = scmp.ne.s32.totalorder %s37, %s53
      %p55 = scmp.eq.s32.totalorder %s29, 0
      %p56 = por %p54, %p55
      %s58 = sadd.s32 %s57, 1
      %p61 = scmp.eq.s32.totalorder %s23, 1
      %p62 = scmp.ne.s32.totalorder %s57, %s59
      %p63 = scmp.eq.s32.totalorder %s23, 0
      %p64 = por %p62, %p63
      %p65 = scmp.ne.s32.totalorder %s57, %s59
      %p66 = scmp.eq.s32.totalorder %s28, 1
      %p67 = por %p65, %p66
      %p68 = scmp.ne.s32.totalorder %s59, %s60
      %p69 = scmp.eq.s32.totalorder %s28, 0
      %p70 = por %p68, %p69
      %p71 = scmp.ne.s32.totalorder %s59, %s60
      %p72 = scmp.eq.s32.totalorder %s29, 1
      %p73 = por %p71, %p72
      %p75 = scmp.ne.s32.totalorder %s60, %s74
      %p76 = scmp.eq.s32.totalorder %s29, 0
      %p77 = por %p75, %p76
      %s79 = sadd.s32 %s78, 1
      %p82 = scmp.eq.s32.totalorder %s23, 1
      %p83 = scmp.ne.s32.totalorder %s78, %s80
      %p84 = scmp.eq.s32.totalorder %s23, 0
      %p85 = por %p83, %p84
      %p86 = scmp.ne.s32.totalorder %s78, %s80
      %p87 = scmp.eq.s32.totalorder %s28, 1
      %p88 = por %p86, %p87
      %p89 = scmp.ne.s32.totalorder %s80, %s81
      %p90 = scmp.eq.s32.totalorder %s28, 0
      %p91 = por %p89, %p90
      %p92 = scmp.ne.s32.totalorder %s80, %s81
      %p93 = scmp.eq.s32.totalorder %s29, 1
      %p94 = por %p92, %p93
      %p96 = scmp.ne.s32.totalorder %s81, %s95
      %p97 = scmp.eq.s32.totalorder %s29, 0
      %p98 = por %p96, %p97
      %s100 = sadd.s32 %s99, 1
      %p103 = scmp.eq.s32.totalorder %s23, 1
      %p104 = scmp.ne.s32.totalorder %s99, %s101
      %p105 = scmp.eq.s32.totalorder %s23, 0
      %p106 = por %p104, %p105
      %p107 = scmp.ne.s32.totalorder %s99, %s101
      %p108 = scmp.eq.s32.totalorder %s28, 1
      %p109 = por %p107, %p108
      %p110 = scmp.ne.s32.totalorder %s101, %s102
      %p111 = scmp.eq.s32.totalorder %s28, 0
      %p112 = por %p110, %p111
      %p113 = scmp.ne.s32.totalorder %s101, %s102
      %p114 = scmp.eq.s32.totalorder %s29, 1
      %p115 = por %p113, %p114
      %p117 = scmp.ne.s32.totalorder %s102, %s116
      %p118 = scmp.eq.s32.totalorder %s29, 0
      %p119 = por %p117, %p118
      %s121 = sadd.s32 %s120, 1
      %p124 = scmp.eq.s32.totalorder %s23, 1
      %p125 = scmp.ne.s32.totalorder %s120, %s122
      %p126 = scmp.eq.s32.totalorder %s23, 0
      %p127 = por %p125, %p126
      %p128 = scmp.ne.s32.totalorder %s120, %s122
      %p129 = scmp.eq.s32.totalorder %s28, 1
      %p130 = por %p128, %p129
      %p131 = scmp.ne.s32.totalorder %s122, %s123
      %p132 = scmp.eq.s32.totalorder %s28, 0
      %p133 = por %p131, %p132
      %p134 = scmp.ne.s32.totalorder %s122, %s123
      %p135 = scmp.eq.s32.totalorder %s29, 1
      %p136 = por %p134, %p135
      %p138 = scmp.ne.s32.totalorder %s123, %s137
      %p139 = scmp.eq.s32.totalorder %s29, 0
      %p140 = por %p138, %p139
      %s142 = sadd.s32 %s141, 1
      %p145 = scmp.eq.s32.totalorder %s23, 1
      %p146 = scmp.ne.s32.totalorder %s141, %s143
      %p147 = scmp.eq.s32.totalorder %s23, 0
      %p148 = por %p146, %p147
      %p149 = scmp.ne.s32.totalorder %s141, %s143
      %p150 = scmp.eq.s32.totalorder %s28, 1
      %p151 = por %p149, %p150
      %p152 = scmp.ne.s32.totalorder %s143, %s144
      %p153 = scmp.eq.s32.totalorder %s28, 0
      %p154 = por %p152, %p153
      %p155 = scmp.ne.s32.totalorder %s143, %s144
      %p156 = scmp.eq.s32.totalorder %s29, 1
      %p157 = por %p155, %p156
      %p159 = scmp.ne.s32.totalorder %s144, %s158
      %p160 = scmp.eq.s32.totalorder %s29, 0
      %p161 = por %p159, %p160
      %s163 = sadd.s32 %s162, 1
      %p166 = scmp.eq.s32.totalorder %s23, 1
      %p167 = scmp.ne.s32.totalorder %s162, %s164
      %p168 = scmp.eq.s32.totalorder %s23, 0
      %p169 = por %p167, %p168
      %p170 = scmp.ne.s32.totalorder %s162, %s164
      %p171 = scmp.eq.s32.totalorder %s28, 1
      %p172 = por %p170, %p171
      %p173 = scmp.ne.s32.totalorder %s164, %s165
      %p174 = scmp.eq.s32.totalorder %s28, 0
      %p175 = por %p173, %p174
      %p176 = scmp.ne.s32.totalorder %s164, %s165
      %p177 = scmp.eq.s32.totalorder %s29, 1
      %p178 = por %p176, %p177
      %p180 = scmp.ne.s32.totalorder %s165, %s179
      %p181 = scmp.eq.s32.totalorder %s29, 0
      %p182 = por %p180, %p181
      %s184 = sadd.s32 %s183, 1
      %p187 = scmp.eq.s32.totalorder %s23, 1
      %p188 = scmp.ne.s32.totalorder %s183, %s185
      %p189 = scmp.eq.s32.totalorder %s23, 0
      %p190 = por %p188, %p189
      %p191 = scmp.ne.s32.totalorder %s183, %s185
      %p192 = scmp.eq.s32.totalorder %s28, 1
      %p193 = por %p191, %p192
      %p194 = scmp.ne.s32.totalorder %s185, %s186
      %p195 = scmp.eq.s32.totalorder %s28, 0
      %p196 = por %p194, %p195
      %p197 = scmp.ne.s32.totalorder %s185, %s186
      %p198 = scmp.eq.s32.totalorder %s29, 1
      %p199 = por %p197, %p198
      %p201 = scmp.ne.s32.totalorder %s186, %s200
      %p202 = scmp.eq.s32.totalorder %s29, 0
      %p203 = por %p201, %p202
      %s205 = sadd.s32 %s204, 1
      %p208 = scmp.eq.s32.totalorder %s23, 1
      %p209 = scmp.ne.s32.totalorder %s204, %s206
      %p210 = scmp.eq.s32.totalorder %s23, 0
      %p211 = por %p209, %p210
      %p212 = scmp.ne.s32.totalorder %s204, %s206
      %p213 = scmp.eq.s32.totalorder %s28, 1
      %p214 = por %p212, %p213
      %p215 = scmp.ne.s32.totalorder %s206, %s207
      %p216 = scmp.eq.s32.totalorder %s28, 0
      %p217 = por %p215, %p216
      %p218 = scmp.ne.s32.totalorder %s206, %s207
      %p219 = scmp.eq.s32.totalorder %s29, 1
      %p220 = por %p218, %p219
      %p222 = scmp.ne.s32.totalorder %s207, %s221
      %p223 = scmp.eq.s32.totalorder %s29, 0
      %p224 = por %p222, %p223
      %s226 = sadd.s32 %s225, 1
      %p229 = scmp.eq.s32.totalorder %s23, 1
      %p230 = scmp.ne.s32.totalorder %s225, %s227
      %p231 = scmp.eq.s32.totalorder %s23, 0
      %p232 = por %p230, %p231
      %p233 = scmp.ne.s32.totalorder %s225, %s227
      %p234 = scmp.eq.s32.totalorder %s28, 1
      %p235 = por %p233, %p234
      %p236 = scmp.ne.s32.totalorder %s227, %s228
      %p237 = scmp.eq.s32.totalorder %s28, 0
      %p238 = por %p236, %p237
      %p239 = scmp.ne.s32.totalorder %s227, %s228
      %p240 = scmp.eq.s32.totalorder %s29, 1
      %p241 = por %p239, %p240
      %p243 = scmp.ne.s32.totalorder %s228, %s242
      %p244 = scmp.eq.s32.totalorder %s29, 0
      %p245 = por %p243, %p244
      %s247 = sadd.s32 %s246, 1
      %p250 = scmp.eq.s32.totalorder %s23, 1
      %p251 = scmp.ne.s32.totalorder %s246, %s248
      %p252 = scmp.eq.s32.totalorder %s23, 0
      %p253 = por %p251, %p252
      %p254 = scmp.ne.s32.totalorder %s246, %s248
      %p255 = scmp.eq.s32.totalorder %s28, 1
      %p256 = por %p254, %p255
      %p257 = scmp.ne.s32.totalorder %s248, %s249
      %p258 = scmp.eq.s32.totalorder %s28, 0
      %p259 = por %p257, %p258
      %p260 = scmp.ne.s32.totalorder %s248, %s249
      %p261 = scmp.eq.s32.totalorder %s29, 1
      %p262 = por %p260, %p261
      %p264 = scmp.ne.s32.totalorder %s249, %s263
      %p265 = scmp.eq.s32.totalorder %s29, 0
      %p266 = por %p264, %p265
      %s268 = sadd.s32 %s267, 1
      %p271 = scmp.eq.s32.totalorder %s23, 1
      %p272 = scmp.ne.s32.totalorder %s267, %s269
      %p273 = scmp.eq.s32.totalorder %s23, 0
      %p274 = por %p272, %p273
      %p275 = scmp.ne.s32.totalorder %s267, %s269
      %p276 = scmp.eq.s32.totalorder %s28, 1
      %p277 = por %p275, %p276
      %p278 = scmp.ne.s32.totalorder %s269, %s270
      %p279 = scmp.eq.s32.totalorder %s28, 0
      %p280 = por %p278, %p279
      %p281 = scmp.ne.s32.totalorder %s269, %s270
      %p282 = scmp.eq.s32.totalorder %s29, 1
      %p283 = por %p281, %p282
      %p285 = scmp.ne.s32.totalorder %s270, %s284
      %p286 = scmp.eq.s32.totalorder %s29, 0
      %p287 = por %p285, %p286
      %s289 = sadd.s32 %s288, 1
      %p292 = scmp.eq.s32.totalorder %s23, 1
      %p293 = scmp.ne.s32.totalorder %s288, %s290
      %p294 = scmp.eq.s32.totalorder %s23, 0
      %p295 = por %p293, %p294
      %p296 = scmp.ne.s32.totalorder %s288, %s290
      %p297 = scmp.eq.s32.totalorder %s28, 1
      %p298 = por %p296, %p297
      %p299 = scmp.ne.s32.totalorder %s290, %s291
      %p300 = scmp.eq.s32.totalorder %s28, 0
      %p301 = por %p299, %p300
      %p302 = scmp.ne.s32.totalorder %s290, %s291
      %p303 = scmp.eq.s32.totalorder %s29, 1
      %p304 = por %p302, %p303
      %p306 = scmp.ne.s32.totalorder %s291, %s305
      %p307 = scmp.eq.s32.totalorder %s29, 0
      %p308 = por %p306, %p307
      %s310 = sadd.s32 %s309, 1
      %p313 = scmp.eq.s32.totalorder %s23, 1
      %p314 = scmp.ne.s32.totalorder %s309, %s311
      %p315 = scmp.eq.s32.totalorder %s23, 0
      %p316 = por %p314, %p315
      %p317 = scmp.ne.s32.totalorder %s309, %s311
      %p318 = scmp.eq.s32.totalorder %s28, 1
      %p319 = por %p317, %p318
      %p320 = scmp.ne.s32.totalorder %s311, %s312
      %p321 = scmp.eq.s32.totalorder %s28, 0
      %p322 = por %p320, %p321
      %p323 = scmp.ne.s32.totalorder %s311, %s312
      %p324 = scmp.eq.s32.totalorder %s29, 1
      %p325 = por %p323, %p324
      %p327 = scmp.ne.s32.totalorder %s312, %s326
      %p328 = scmp.eq.s32.totalorder %s29, 0
      %p329 = por %p327, %p328
      %s330 = ssub.s32 %s23, %s30
      %p331 = scmp.eq.s32.totalorder %s330, 0
      %s333 = sadd.s32 %s332, 1
      %s334 = scalar_select %p331, %s332, %s333
      %p337 = pneg %p331
      %p338 = scmp.eq.s32.totalorder %s23, 1
      %p339 = por %p337, %p338
      %p340 = scmp.ne.s32.totalorder %s332, %s335
      %p341 = scmp.eq.s32.totalorder %s23, 0
      %p342 = por %p340, %p341
      %p343 = scmp.ne.s32.totalorder %s332, %s335
      %p344 = scmp.eq.s32.totalorder %s28, 1
      %p345 = por %p343, %p344
      %p346 = scmp.ne.s32.totalorder %s335, %s336
      %p347 = scmp.eq.s32.totalorder %s28, 0
      %p348 = por %p346, %p347
      %p349 = scmp.ne.s32.totalorder %s335, %s336
      %p350 = scmp.eq.s32.totalorder %s29, 1
      %p351 = por %p349, %p350
      %p353 = scmp.ne.s32.totalorder %s336, %s352
      %p354 = scmp.eq.s32.totalorder %s29, 0
      %p355 = por %p353, %p354
      %p356 = scmp.le.s32.totalorder 1, %s23
      %p357 = scmp.lt.s32.totalorder %s23, 3
      %p358 = pnand %p356, %p357
      %p359 = pneg %p358
      // Predicated region
      $region9: #{tpu_custom_call.1} parent=5 // pred_check
        _
      $region10: #{tpu_custom_call.1} parent=5 // pred_check_branch
        %361 = sbr.rel (%p358) target = $region12
      $region11: #{tpu_custom_call.1} parent=5 // pred_region
        %s362 = ssub.s32 %s23, 1
        // Predicated region
        $region13: #{tpu_custom_call.1} parent=11 // pred_check
          %p363 = pneg %p70
        $region14: #{tpu_custom_call.1} parent=11 // pred_check_branch
          %365 = sbr.rel (%p363) target = $region16
        $region15: #{tpu_custom_call.1} parent=11 // pred_region
          _
        $region16: #{tpu_custom_call.1} parent=11 // pred_fallthru
          _
        // Predicated region
        $region17: #{tpu_custom_call.1} parent=11 // pred_check
          %p366 = pneg %p91
        $region18: #{tpu_custom_call.1} parent=11 // pred_check_branch
          %368 = sbr.rel (%p366) target = $region20
        $region19: #{tpu_custom_call.1} parent=11 // pred_region
          _
        $region20: #{tpu_custom_call.1} parent=11 // pred_fallthru
          _
        // Predicated region
        $region21: #{tpu_custom_call.1} parent=11 // pred_check
          %p369 = pneg %p112
        $region22: #{tpu_custom_call.1} parent=11 // pred_check_branch
          %371 = sbr.rel (%p369) target = $region24
        $region23: #{tpu_custom_call.1} parent=11 // pred_region
          _
        $region24: #{tpu_custom_call.1} parent=11 // pred_fallthru
          _
        // Predicated region
        $region25: #{tpu_custom_call.1} parent=11 // pred_check
          %p372 = pneg %p133
        $region26: #{tpu_custom_call.1} parent=11 // pred_check_branch
          %374 = sbr.rel (%p372) target = $region28
        $region27: #{tpu_custom_call.1} parent=11 // pred_region
          _
        $region28: #{tpu_custom_call.1} parent=11 // pred_fallthru
          _
        // Predicated region
        $region29: #{tpu_custom_call.1} parent=11 // pred_check
          %p375 = pneg %p154
        $region30: #{tpu_custom_call.1} parent=11 // pred_check_branch
          %377 = sbr.rel (%p375) target = $region32
        $region31: #{tpu_custom_call.1} parent=11 // pred_region
          _
        $region32: #{tpu_custom_call.1} parent=11 // pred_fallthru
          _
        // Predicated region
        $region33: #{tpu_custom_call.1} parent=11 // pred_check
          %p378 = pneg %p175
        $region34: #{tpu_custom_call.1} parent=11 // pred_check_branch
          %380 = sbr.rel (%p378) target = $region36
        $region35: #{tpu_custom_call.1} parent=11 // pred_region
          _
        $region36: #{tpu_custom_call.1} parent=11 // pred_fallthru
          _
        // Predicated region
        $region37: #{tpu_custom_call.1} parent=11 // pred_check
          %p381 = pneg %p196
        $region38: #{tpu_custom_call.1} parent=11 // pred_check_branch
          %383 = sbr.rel (%p381) target = $region40
        $region39: #{tpu_custom_call.1} parent=11 // pred_region
          _
        $region40: #{tpu_custom_call.1} parent=11 // pred_fallthru
          _
        // Predicated region
        $region41: #{tpu_custom_call.1} parent=11 // pred_check
          %p384 = pneg %p217
        $region42: #{tpu_custom_call.1} parent=11 // pred_check_branch
          %386 = sbr.rel (%p384) target = $region44
        $region43: #{tpu_custom_call.1} parent=11 // pred_region
          _
        $region44: #{tpu_custom_call.1} parent=11 // pred_fallthru
          _
        // Predicated region
        $region45: #{tpu_custom_call.1} parent=11 // pred_check
          %p387 = pneg %p238
        $region46: #{tpu_custom_call.1} parent=11 // pred_check_branch
          %389 = sbr.rel (%p387) target = $region48
        $region47: #{tpu_custom_call.1} parent=11 // pred_region
          _
        $region48: #{tpu_custom_call.1} parent=11 // pred_fallthru
          _
        // Predicated region
        $region49: #{tpu_custom_call.1} parent=11 // pred_check
          %p390 = pneg %p259
        $region50: #{tpu_custom_call.1} parent=11 // pred_check_branch
          %392 = sbr.rel (%p390) target = $region52
        $region51: #{tpu_custom_call.1} parent=11 // pred_region
          _
        $region52: #{tpu_custom_call.1} parent=11 // pred_fallthru
          _
        // Predicated region
        $region53: #{tpu_custom_call.1} parent=11 // pred_check
          %p393 = pneg %p280
        $region54: #{tpu_custom_call.1} parent=11 // pred_check_branch
          %395 = sbr.rel (%p393) target = $region56
        $region55: #{tpu_custom_call.1} parent=11 // pred_region
          _
        $region56: #{tpu_custom_call.1} parent=11 // pred_fallthru
          _
        // Predicated region
        $region57: #{tpu_custom_call.1} parent=11 // pred_check
          %p396 = pneg %p301
        $region58: #{tpu_custom_call.1} parent=11 // pred_check_branch
          %398 = sbr.rel (%p396) target = $region60
        $region59: #{tpu_custom_call.1} parent=11 // pred_region
          _
        $region60: #{tpu_custom_call.1} parent=11 // pred_fallthru
          _
        // Predicated region
        $region61: #{tpu_custom_call.1} parent=11 // pred_check
          %p399 = pneg %p322
        $region62: #{tpu_custom_call.1} parent=11 // pred_check_branch
          %401 = sbr.rel (%p399) target = $region64
        $region63: #{tpu_custom_call.1} parent=11 // pred_region
          _
        $region64: #{tpu_custom_call.1} parent=11 // pred_fallthru
          _
      $region12: #{tpu_custom_call.1} parent=5 // pred_fallthru
        _
      %p402 = scmp.lt.s32.totalorder %s23, 2
      // Predicated region
      $region65: #{tpu_custom_call.1} parent=5 // pred_check
        %p403 = pneg %p402
      $region66: #{tpu_custom_call.1} parent=5 // pred_check_branch
        %405 = sbr.rel (%p403) target = $region68
      $region67: #{tpu_custom_call.1} parent=5 // pred_region
        // Predicated region
        $region69: #{tpu_custom_call.1} parent=67 // pred_check
          %p406 = pneg %p43
        $region70: #{tpu_custom_call.1} parent=67 // pred_check_branch
          %408 = sbr.rel (%p406) target = $region72
        $region71: #{tpu_custom_call.1} parent=67 // pred_region
          %p409 = scmp.lt.s32.totalorder %s23, 1
          %s410 = scalar_select %p409, %s23, 1
          %s411 = smul.addr %s410, 16
          %s412 = smul.addr %s411, 8
          %s413 = scalar_lea.vmem %s0, %s412
        $region72: #{tpu_custom_call.1} parent=67 // pred_fallthru
          _
      $region68: #{tpu_custom_call.1} parent=5 // pred_fallthru
        _
      %p414 = scmp.le.s32.totalorder 1, %s23
      %p415 = scmp.lt.s32.totalorder %s23, 3
      %p416 = pnand %p414, %p415
      %p417 = pneg %p416
      // Predicated region
      $region73: #{tpu_custom_call.1} parent=5 // pred_check
        _
      $region74: #{tpu_custom_call.1} parent=5 // pred_check_branch
        %419 = sbr.rel (%p416) target = $region76
      $region75: #{tpu_custom_call.1} parent=5 // pred_region
        %s420 = ssub.s32 %s23, 1
        %p421 = scmp.lt.s32.totalorder %s28, 1
        %s422 = scalar_select %p421, %s28, 1
        %s423 = smul.addr %s422, 16
        %s424 = smul.addr %s423, 8
        %s425 = scalar_lea.vmem %s0, %s424
        %p426 = pneg %p49
        %p427 = pneg %p46
        %p428 = pneg %p70
        %p429 = pneg %p67
        %p430 = pneg %p91
        %p431 = pneg %p88
        %p432 = pneg %p112
        %p433 = pneg %p109
        %p434 = pneg %p133
        %p435 = pneg %p130
        %p436 = pneg %p154
        %p437 = pneg %p151
        %p438 = pneg %p175
        %p439 = pneg %p172
        %p440 = pneg %p196
        %p441 = pneg %p193
        %p442 = pneg %p217
        %p443 = pneg %p214
        %p444 = pneg %p238
        %p445 = pneg %p235
        %p446 = pneg %p259
        %p447 = pneg %p256
        %p448 = pneg %p280
        %p449 = pneg %p277
        %p450 = pneg %p301
        %p451 = pneg %p298
        %p452 = pneg %p322
        %p453 = pneg %p319
        %p454 = pneg %p348
        %p455 = pneg %p345
        %s456 = sand.u32 %s335, 1
        %s457 = scalar_lea.sflag [#allocation3], %s456
        %s458 = sand.u32 %s335, 1
        %s459 = smul.addr %s458, 8
        %s460 = scalar_lea.vmem [#allocation2], %s459
        %p461 = scmp.lt.s32.totalorder %s28, 1
        %s462 = scalar_select %p461, %s28, 1
        %s463 = smul.addr %s462, 16
        %s464 = smul.addr %s463, 8
        %s465 = scalar_lea.vmem %s0, %s464
        %v467 = vld [vmem:[%s465] sm:$0xff]
        %v468 = vld [vmem:[%s465 + $0x8] sm:$0xff]
        %v469 = vld [vmem:[%s465 + $0x10] sm:$0xff]
        %v470 = vld [vmem:[%s465 + $0x18] sm:$0xff]
        %v471 = vld [vmem:[%s465 + $0x20] sm:$0xff]
        %v472 = vld [vmem:[%s465 + $0x28] sm:$0xff]
        %v473 = vld [vmem:[%s465 + $0x30] sm:$0xff]
        %v474 = vld [vmem:[%s465 + $0x38] sm:$0xff]
        %v475 = vld [vmem:[%s465 + $0x40] sm:$0xff]
        %v476 = vld [vmem:[%s465 + $0x48] sm:$0xff]
        %v477 = vld [vmem:[%s465 + $0x50] sm:$0xff]
        %v478 = vld [vmem:[%s465 + $0x58] sm:$0xff]
        %v479 = vld [vmem:[%s465 + $0x60] sm:$0xff]
        %v480 = vld [vmem:[%s465 + $0x68] sm:$0xff]
        %v481 = vld [vmem:[%s465 + $0x70] sm:$0xff]
        %v482 = vld [vmem:[%s465 + $0x78] sm:$0xff]
        %v483 = vlaneseq
        %v484 = vshrl.u32 %v483, 7
        %v485 = vadd.s32 %v484, 8
        %v486 = vadd.s32 %v484, 16
        %v487 = vadd.s32 %v484, 24
        %v488 = vadd.s32 %v484, 32
        %v489 = vadd.s32 %v484, 40
        %v490 = vadd.s32 %v484, 48
        %v491 = vadd.s32 %v484, 56
        %v492 = vadd.s32 %v484, 64
        %v493 = vadd.s32 %v484, 72
        %v494 = vadd.s32 %v484, 80
        %v495 = vadd.s32 %v484, 88
        %v496 = vadd.s32 %v484, 96
        %v497 = vadd.s32 %v484, 104
        %v498 = vadd.s32 %v484, 112
        %v499 = vadd.s32 %v484, 120
        %vm500 = vcmp.lt.s32.totalorder %v484, 0
        %v501 = vsub.s32 0, %v484
        %v502 = vsel %vm500, %v501, %v484
        %v503 = vshrl.u32 %v502, 4
        %v504 = vand.u32 %v502, 15
        %v505 = vsub.s32 0, %v504
        %v506 = vsel %vm500, %v505, %v504
        %vm507 = vcmp.lt.s32.totalorder %v485, 0
        %v508 = vsub.s32 0, %v485
        %v509 = vsel %vm507, %v508, %v485
        %v510 = vshrl.u32 %v509, 4
        %v511 = vand.u32 %v509, 15
        %v512 = vsub.s32 0, %v511
        %v513 = vsel %vm507, %v512, %v511
        %vm514 = vcmp.lt.s32.totalorder %v486, 0
        %v515 = vsub.s32 0, %v486
        %v516 = vsel %vm514, %v515, %v486
        %v517 = vshrl.u32 %v516, 4
        %v518 = vand.u32 %v516, 15
        %v519 = vsub.s32 0, %v518
        %v520 = vsel %vm514, %v519, %v518
        %vm521 = vcmp.lt.s32.totalorder %v487, 0
        %v522 = vsub.s32 0, %v487
        %v523 = vsel %vm521, %v522, %v487
        %v524 = vshrl.u32 %v523, 4
        %v525 = vand.u32 %v523, 15
        %v526 = vsub.s32 0, %v525
        %v527 = vsel %vm521, %v526, %v525
        %vm528 = vcmp.lt.s32.totalorder %v488, 0
        %v529 = vsub.s32 0, %v488
        %v530 = vsel %vm528, %v529, %v488
        %v531 = vshrl.u32 %v530, 4
        %v532 = vand.u32 %v530, 15
        %v533 = vsub.s32 0, %v532
        %v534 = vsel %vm528, %v533, %v532
        %vm535 = vcmp.lt.s32.totalorder %v489, 0
        %v536 = vsub.s32 0, %v489
        %v537 = vsel %vm535, %v536, %v489
        %v538 = vshrl.u32 %v537, 4
        %v539 = vand.u32 %v537, 15
        %v540 = vsub.s32 0, %v539
        %v541 = vsel %vm535, %v540, %v539
        %vm542 = vcmp.lt.s32.totalorder %v490, 0
        %v543 = vsub.s32 0, %v490
        %v544 = vsel %vm542, %v543, %v490
        %v545 = vshrl.u32 %v544, 4
        %v546 = vand.u32 %v544, 15
        %v547 = vsub.s32 0, %v546
        %v548 = vsel %vm542, %v547, %v546
        %vm549 = vcmp.lt.s32.totalorder %v491, 0
        %v550 = vsub.s32 0, %v491
        %v551 = vsel %vm549, %v550, %v491
        %v552 = vshrl.u32 %v551, 4
        %v553 = vand.u32 %v551, 15
        %v554 = vsub.s32 0, %v553
        %v555 = vsel %vm549, %v554, %v553
        %vm556 = vcmp.lt.s32.totalorder %v492, 0
        %v557 = vsub.s32 0, %v492
        %v558 = vsel %vm556, %v557, %v492
        %v559 = vshrl.u32 %v558, 4
        %v560 = vand.u32 %v558, 15
        %v561 = vsub.s32 0, %v560
        %v562 = vsel %vm556, %v561, %v560
        %vm563 = vcmp.lt.s32.totalorder %v493, 0
        %v564 = vsub.s32 0, %v493
        %v565 = vsel %vm563, %v564, %v493
        %v566 = vshrl.u32 %v565, 4
        %v567 = vand.u32 %v565, 15
        %v568 = vsub.s32 0, %v567
        %v569 = vsel %vm563, %v568, %v567
        %vm570 = vcmp.lt.s32.totalorder %v494, 0
        %v571 = vsub.s32 0, %v494
        %v572 = vsel %vm570, %v571, %v494
        %v573 = vshrl.u32 %v572, 4
        %v574 = vand.u32 %v572, 15
        %v575 = vsub.s32 0, %v574
        %v576 = vsel %vm570, %v575, %v574
        %vm577 = vcmp.lt.s32.totalorder %v495, 0
        %v578 = vsub.s32 0, %v495
        %v579 = vsel %vm577, %v578, %v495
        %v580 = vshrl.u32 %v579, 4
        %v581 = vand.u32 %v579, 15
        %v582 = vsub.s32 0, %v581
        %v583 = vsel %vm577, %v582, %v581
        %vm584 = vcmp.lt.s32.totalorder %v496, 0
        %v585 = vsub.s32 0, %v496
        %v586 = vsel %vm584, %v585, %v496
        %v587 = vshrl.u32 %v586, 4
        %v588 = vand.u32 %v586, 15
        %v589 = vsub.s32 0, %v588
        %v590 = vsel %vm584, %v589, %v588
        %vm591 = vcmp.lt.s32.totalorder %v497, 0
        %v592 = vsub.s32 0, %v497
        %v593 = vsel %vm591, %v592, %v497
        %v594 = vshrl.u32 %v593, 4
        %v595 = vand.u32 %v593, 15
        %v596 = vsub.s32 0, %v595
        %v597 = vsel %vm591, %v596, %v595
        %vm598 = vcmp.lt.s32.totalorder %v498, 0
        %v599 = vsub.s32 0, %v498
        %v600 = vsel %vm598, %v599, %v498
        %v601 = vshrl.u32 %v600, 4
        %v602 = vand.u32 %v600, 15
        %v603 = vsub.s32 0, %v602
        %v604 = vsel %vm598, %v603, %v602
        %vm605 = vcmp.lt.s32.totalorder %v499, 0
        %v606 = vsub.s32 0, %v499
        %v607 = vsel %vm605, %v606, %v499
        %v608 = vshrl.u32 %v607, 4
        %v609 = vand.u32 %v607, 15
        %v610 = vsub.s32 0, %v609
        %v611 = vsel %vm605, %v610, %v609
        %vm612 = vcmp.ne.s32.totalorder %v506, 0
        %vm613 = vcmp.ne.s32.totalorder %v513, 0
        %vm614 = vcmp.ne.s32.totalorder %v520, 0
        %vm615 = vcmp.ne.s32.totalorder %v527, 0
        %vm616 = vcmp.ne.s32.totalorder %v534, 0
        %vm617 = vcmp.ne.s32.totalorder %v541, 0
        %vm618 = vcmp.ne.s32.totalorder %v548, 0
        %vm619 = vcmp.ne.s32.totalorder %v555, 0
        %vm620 = vcmp.ne.s32.totalorder %v562, 0
        %vm621 = vcmp.ne.s32.totalorder %v569, 0
        %vm622 = vcmp.ne.s32.totalorder %v576, 0
        %vm623 = vcmp.ne.s32.totalorder %v583, 0
        %vm624 = vcmp.ne.s32.totalorder %v590, 0
        %vm625 = vcmp.ne.s32.totalorder %v597, 0
        %vm626 = vcmp.ne.s32.totalorder %v604, 0
        %vm627 = vcmp.ne.s32.totalorder %v611, 0
        %vm628 = vcmp.lt.s32.totalorder %v506, 0
        %vm629 = vcmp.lt.s32.totalorder %v513, 0
        %vm630 = vcmp.lt.s32.totalorder %v520, 0
        %vm631 = vcmp.lt.s32.totalorder %v527, 0
        %vm632 = vcmp.lt.s32.totalorder %v534, 0
        %vm633 = vcmp.lt.s32.totalorder %v541, 0
        %vm634 = vcmp.lt.s32.totalorder %v548, 0
        %vm635 = vcmp.lt.s32.totalorder %v555, 0
        %vm636 = vcmp.lt.s32.totalorder %v562, 0
        %vm637 = vcmp.lt.s32.totalorder %v569, 0
        %vm638 = vcmp.lt.s32.totalorder %v576, 0
        %vm639 = vcmp.lt.s32.totalorder %v583, 0
        %vm640 = vcmp.lt.s32.totalorder %v590, 0
        %vm641 = vcmp.lt.s32.totalorder %v597, 0
        %vm642 = vcmp.lt.s32.totalorder %v604, 0
        %vm643 = vcmp.lt.s32.totalorder %v611, 0
        %vm644 = vmand %vm628, %vm612
        %vm645 = vmand %vm629, %vm613
        %vm646 = vmand %vm630, %vm614
        %vm647 = vmand %vm631, %vm615
        %vm648 = vmand %vm632, %vm616
        %vm649 = vmand %vm633, %vm617
        %vm650 = vmand %vm634, %vm618
        %vm651 = vmand %vm635, %vm619
        %vm652 = vmand %vm636, %vm620
        %vm653 = vmand %vm637, %vm621
        %vm654 = vmand %vm638, %vm622
        %vm655 = vmand %vm639, %vm623
        %vm656 = vmand %vm640, %vm624
        %vm657 = vmand %vm641, %vm625
        %vm658 = vmand %vm642, %vm626
        %vm659 = vmand %vm643, %vm627
        %v660 = vadd.s32 %v506, 16
        %v661 = vadd.s32 %v513, 16
        %v662 = vadd.s32 %v520, 16
        %v663 = vadd.s32 %v527, 16
        %v664 = vadd.s32 %v534, 16
        %v665 = vadd.s32 %v541, 16
        %v666 = vadd.s32 %v548, 16
        %v667 = vadd.s32 %v555, 16
        %v668 = vadd.s32 %v562, 16
        %v669 = vadd.s32 %v569, 16
        %v670 = vadd.s32 %v576, 16
        %v671 = vadd.s32 %v583, 16
        %v672 = vadd.s32 %v590, 16
        %v673 = vadd.s32 %v597, 16
        %v674 = vadd.s32 %v604, 16
        %v675 = vadd.s32 %v611, 16
        %v676 = vsel %vm644, %v660, %v506
        %v677 = vsel %vm645, %v661, %v513
        %v678 = vsel %vm646, %v662, %v520
        %v679 = vsel %vm647, %v663, %v527
        %v680 = vsel %vm648, %v664, %v534
        %v681 = vsel %vm649, %v665, %v541
        %v682 = vsel %vm650, %v666, %v548
        %v683 = vsel %vm651, %v667, %v555
        %v684 = vsel %vm652, %v668, %v562
        %v685 = vsel %vm653, %v669, %v569
        %v686 = vsel %vm654, %v670, %v576
        %v687 = vsel %vm655, %v671, %v583
        %v688 = vsel %vm656, %v672, %v590
        %v689 = vsel %vm657, %v673, %v597
        %v690 = vsel %vm658, %v674, %v604
        %v691 = vsel %vm659, %v675, %v611
        %v692 = vrot.slane %v467, 7
        %v693 = vrot.slane %v468, 7
        %v694 = vrot.slane %v469, 7
        %v695 = vrot.slane %v470, 7
        %v696 = vrot.slane %v471, 7
        %v697 = vrot.slane %v472, 7
        %v698 = vrot.slane %v473, 7
        %v699 = vrot.slane %v474, 7
        %v700 = vrot.slane %v475, 7
        %v701 = vrot.slane %v476, 7
        %v702 = vrot.slane %v477, 7
        %v703 = vrot.slane %v478, 7
        %v704 = vrot.slane %v479, 7
        %v705 = vrot.slane %v480, 7
        %v706 = vrot.slane %v481, 7
        %v707 = vrot.slane %v482, 7
        %vm708 = vcmp.lt.s32.totalorder %v484, 1
        %v709 = vsel %vm708, %v706, %v707
        %v710 = vsel %vm708, %v705, %v706
        %v711 = vsel %vm708, %v704, %v705
        %v712 = vsel %vm708, %v703, %v704
        %v713 = vsel %vm708, %v702, %v703
        %v714 = vsel %vm708, %v701, %v702
        %v715 = vsel %vm708, %v700, %v701
        %v716 = vsel %vm708, %v699, %v700
        %v717 = vsel %vm708, %v698, %v699
        %v718 = vsel %vm708, %v697, %v698
        %v719 = vsel %vm708, %v696, %v697
        %v720 = vsel %vm708, %v695, %v696
        %v721 = vsel %vm708, %v694, %v695
        %v722 = vsel %vm708, %v693, %v694
        %v723 = vsel %vm708, %v692, %v693
        %v724 = vsel %vm708, %v707, %v692
        %vm725 = vcmp.ge.s32.totalorder %v676, 1
        %vm726 = vcmp.ge.s32.totalorder %v677, 1
        %vm727 = vcmp.ge.s32.totalorder %v678, 1
        %vm728 = vcmp.ge.s32.totalorder %v679, 1
        %vm729 = vcmp.ge.s32.totalorder %v680, 1
        %vm730 = vcmp.ge.s32.totalorder %v681, 1
        %vm731 = vcmp.ge.s32.totalorder %v682, 1
        %vm732 = vcmp.ge.s32.totalorder %v683, 1
        %vm733 = vcmp.ge.s32.totalorder %v684, 1
        %vm734 = vcmp.ge.s32.totalorder %v685, 1
        %vm735 = vcmp.ge.s32.totalorder %v686, 1
        %vm736 = vcmp.ge.s32.totalorder %v687, 1
        %vm737 = vcmp.ge.s32.totalorder %v688, 1
        %vm738 = vcmp.ge.s32.totalorder %v689, 1
        %vm739 = vcmp.ge.s32.totalorder %v690, 1
        %vm740 = vcmp.ge.s32.totalorder %v691, 1
        %v741 = vsel %vm725, 1, 0
        %v742 = vsel %vm726, 1, 0
        %v743 = vsel %vm727, 1, 0
        %v744 = vsel %vm728, 1, 0
        %v745 = vsel %vm729, 1, 0
        %v746 = vsel %vm730, 1, 0
        %v747 = vsel %vm731, 1, 0
        %v748 = vsel %vm732, 1, 0
        %v749 = vsel %vm733, 1, 0
        %v750 = vsel %vm734, 1, 0
        %v751 = vsel %vm735, 1, 0
        %v752 = vsel %vm736, 1, 0
        %v753 = vsel %vm737, 1, 0
        %v754 = vsel %vm738, 1, 0
        %v755 = vsel %vm739, 1, 0
        %v756 = vsel %vm740, 1, 0
        %vm757 = vcmp.eq.s32.totalorder %v741, 1
        %vm758 = vcmp.eq.s32.totalorder %v742, 1
        %vm759 = vcmp.eq.s32.totalorder %v743, 1
        %vm760 = vcmp.eq.s32.totalorder %v744, 1
        %vm761 = vcmp.eq.s32.totalorder %v745, 1
        %vm762 = vcmp.eq.s32.totalorder %v746, 1
        %vm763 = vcmp.eq.s32.totalorder %v747, 1
        %vm764 = vcmp.eq.s32.totalorder %v748, 1
        %vm765 = vcmp.eq.s32.totalorder %v749, 1
        %vm766 = vcmp.eq.s32.totalorder %v750, 1
        %vm767 = vcmp.eq.s32.totalorder %v751, 1
        %vm768 = vcmp.eq.s32.totalorder %v752, 1
        %vm769 = vcmp.eq.s32.totalorder %v753, 1
        %vm770 = vcmp.eq.s32.totalorder %v754, 1
        %vm771 = vcmp.eq.s32.totalorder %v755, 1
        %vm772 = vcmp.eq.s32.totalorder %v756, 1
        %v773 = vsel %vm757, %v724, 0.0
        %v774 = vsel %vm758, %v723, 0.0
        %v775 = vsel %vm759, %v722, 0.0
        %v776 = vsel %vm760, %v721, 0.0
        %v777 = vsel %vm761, %v720, 0.0
        %v778 = vsel %vm762, %v719, 0.0
        %v779 = vsel %vm763, %v718, 0.0
        %v780 = vsel %vm764, %v717, 0.0
        %v781 = vsel %vm765, %v716, 0.0
        %v782 = vsel %vm766, %v715, 0.0
        %v783 = vsel %vm767, %v714, 0.0
        %v784 = vsel %vm768, %v713, 0.0
        %v785 = vsel %vm769, %v712, 0.0
        %v786 = vsel %vm770, %v711, 0.0
        %v787 = vsel %vm771, %v710, 0.0
        %v788 = vsel %vm772, %v709, 0.0
        %v789 = vpack.c.bf16 %v774, %v773
        %v790 = vpack.c.bf16 %v776, %v775
        %v791 = vpack.c.bf16 %v778, %v777
        %v792 = vpack.c.bf16 %v780, %v779
        %v793 = vpack.c.bf16 %v782, %v781
        %v794 = vpack.c.bf16 %v784, %v783
        %v795 = vpack.c.bf16 %v786, %v785
        %v796 = vpack.c.bf16 %v788, %v787
        %v797 = vld [vmem:[%s1] sm:$0xf]
        %v798 = vld [vmem:[%s1 + $0x4] sm:$0xf]
        %v799 = vld [vmem:[%s1 + $0x8] sm:$0xf]
        %v800 = vld [vmem:[%s1 + $0xc] sm:$0xf]
        %v801 = vld [vmem:[%s1 + $0x10] sm:$0xf]
        %v802 = vld [vmem:[%s1 + $0x14] sm:$0xf]
        %v803 = vld [vmem:[%s1 + $0x18] sm:$0xf]
        %v804 = vld [vmem:[%s1 + $0x1c] sm:$0xf]
        %v805 = vpack.c.bf16 %v468, %v467
        %v806 = vpack.c.bf16 %v470, %v469
        %v807 = vpack.c.bf16 %v472, %v471
        %v808 = vpack.c.bf16 %v474, %v473
        %v809 = vpack.c.bf16 %v476, %v475
        %v810 = vpack.c.bf16 %v478, %v477
        %v811 = vpack.c.bf16 %v480, %v479
        %v812 = vpack.c.bf16 %v482, %v481
        %s813 = scalar_lea.vmem %s1, 32
        %v814 = vld [vmem:[%s813] sm:$0xf]
        %v815 = vld [vmem:[%s813 + $0x4] sm:$0xf]
        %v816 = vld [vmem:[%s813 + $0x8] sm:$0xf]
        %v817 = vld [vmem:[%s813 + $0xc] sm:$0xf]
        %v818 = vld [vmem:[%s813 + $0x10] sm:$0xf]
        %v819 = vld [vmem:[%s813 + $0x14] sm:$0xf]
        %v820 = vld [vmem:[%s813 + $0x18] sm:$0xf]
        %v821 = vld [vmem:[%s813 + $0x1c] sm:$0xf]
        %v830 = vunpack.c.l.b16 %v814
        %v831 = vunpack.c.l.b16 %v815
        %v832 = vunpack.c.l.b16 %v816
        %v833 = vunpack.c.l.b16 %v817
        %v834 = vunpack.c.l.b16 %v818
        %v835 = vunpack.c.l.b16 %v819
        %v836 = vunpack.c.l.b16 %v820
        %v837 = vunpack.c.l.b16 %v821
        %v838 = vpack.c.b16 %v831, %v830
        %v839 = vpack.c.b16 %v833, %v832
        %v840 = vpack.c.b16 %v835, %v834
        %v841 = vpack.c.b16 %v837, %v836
        %vm846 = vcmask 523264
        %v848 = vsel %vm846, %v805, 0
        %v851 = vsel %vm846, %v806, 0
        %v854 = vsel %vm846, %v807, 0
        %v857 = vsel %vm846, %v808, 0
        %v860 = vsel %vm846, %v809, 0
        %v863 = vsel %vm846, %v810, 0
        %v866 = vsel %vm846, %v811, 0
        %v869 = vsel %vm846, %v812, 0
        %871 = vmatprep.subr.bf16.mxu0 0
        %872 = vmatpush1.bf16.msra.mxu0 %v838
        %873 = vmatprep.subr.bf16.mxu0 0
        %874 = vmatpush1.bf16.msra.mxu0 %v839
        %875 = vmatprep.subr.bf16.mxu0 0
        %876 = vmatpush1.bf16.msra.mxu0 %v840
        %877 = vmatprep.subr.bf16.mxu0 0
        %878 = vmatpush1.bf16.msra.mxu0 %v841
        %879 = vmatprep.subr.bf16.mxu0 0
        %880 = vmatpush1.bf16.msra.mxu0 0
        %881 = vmatprep.subr.bf16.mxu0 0
        %882 = vmatpush1.bf16.msra.mxu0 0
        %883 = vmatprep.subr.bf16.mxu0 0
        %884 = vmatpush1.bf16.msra.mxu0 0
        %885 = vmatprep.subr.bf16.mxu0 0
        %886 = vmatpush1.bf16.msra.mxu0 0
        %887 = vmatprep.subr.bf16.mxu0 0
        %888 = vmatpush1.bf16.msra.mxu0 0
        %889 = vmatprep.subr.bf16.mxu0 0
        %890 = vmatpush1.bf16.msra.mxu0 0
        %891 = vmatprep.subr.bf16.mxu0 0
        %892 = vmatpush1.bf16.msra.mxu0 0
        %893 = vmatprep.subr.bf16.mxu0 0
        %894 = vmatpush1.bf16.msra.mxu0 0
        %895 = vmatprep.subr.bf16.mxu0 0
        %896 = vmatpush1.bf16.msra.mxu0 0
        %897 = vmatprep.subr.bf16.mxu0 0
        %898 = vmatpush1.bf16.msra.mxu0 0
        %899 = vmatprep.subr.bf16.mxu0 0
        %900 = vmatpush1.bf16.msra.mxu0 0
        %901 = vmatprep.subr.bf16.mxu0 0
        %902 = vmatpush1.bf16.msra.mxu0 0
        %903 = vmatprep.mubr.bf16.mxu0 0
        %904 = vmatmul.mubr.bf16.gmra.mrb[0].mxu0 %v848
        %v905 = vpop.f32.mrb[0].mxu0
        %v906 = vadd.f32 0.0, %v905
        %v907 = vpop.f32.mrb[0].mxu0
        %v908 = vpop.f32.mrb[0].mxu0
        %v909 = vadd.f32 0.0, %v908
        %v910 = vpop.f32.mrb[0].mxu0
        %911 = vmatprep.mubr.bf16.mxu0 0
        %912 = vmatmul.mubr.bf16.gmra.mrb[0].mxu0 %v851
        %v913 = vpop.f32.mrb[0].mxu0
        %v914 = vadd.f32 0.0, %v913
        %v915 = vpop.f32.mrb[0].mxu0
        %v916 = vpop.f32.mrb[0].mxu0
        %v917 = vadd.f32 0.0, %v916
        %v918 = vpop.f32.mrb[0].mxu0
        %919 = vmatprep.mubr.bf16.mxu0 0
        %920 = vmatmul.mubr.bf16.gmra.mrb[0].mxu0 %v854
        %v921 = vpop.f32.mrb[0].mxu0
        %v922 = vadd.f32 0.0, %v921
        %v923 = vpop.f32.mrb[0].mxu0
        %v924 = vpop.f32.mrb[0].mxu0
        %v925 = vadd.f32 0.0, %v924
        %v926 = vpop.f32.mrb[0].mxu0
        %927 = vmatprep.mubr.bf16.mxu0 0
        %928 = vmatmul.mubr.bf16.gmra.mrb[0].mxu0 %v857
        %v929 = vpop.f32.mrb[0].mxu0
        %v930 = vadd.f32 0.0, %v929
        %v931 = vpop.f32.mrb[0].mxu0
        %v932 = vpop.f32.mrb[0].mxu0
        %v933 = vadd.f32 0.0, %v932
        %v934 = vpop.f32.mrb[0].mxu0
        %935 = vmatprep.mubr.bf16.mxu0 0
        %936 = vmatmul.mubr.bf16.gmra.mrb[0].mxu0 %v860
        %v937 = vpop.f32.mrb[0].mxu0
        %v938 = vadd.f32 0.0, %v937
        %v939 = vpop.f32.mrb[0].mxu0
        %v940 = vpop.f32.mrb[0].mxu0
        %v941 = vadd.f32 0.0, %v940
        %v942 = vpop.f32.mrb[0].mxu0
        %943 = vmatprep.mubr.bf16.mxu0 0
        %944 = vmatmul.mubr.bf16.gmra.mrb[0].mxu0 %v863
        %v945 = vpop.f32.mrb[0].mxu0
        %v946 = vadd.f32 0.0, %v945
        %v947 = vpop.f32.mrb[0].mxu0
        %v948 = vpop.f32.mrb[0].mxu0
        %v949 = vadd.f32 0.0, %v948
        %v950 = vpop.f32.mrb[0].mxu0
        %951 = vmatprep.mubr.bf16.mxu0 0
        %952 = vmatmul.mubr.bf16.gmra.mrb[0].mxu0 %v866
        %v953 = vpop.f32.mrb[0].mxu0
        %v954 = vadd.f32 0.0, %v953
        %v955 = vpop.f32.mrb[0].mxu0
        %v956 = vpop.f32.mrb[0].mxu0
        %v957 = vadd.f32 0.0, %v956
        %v958 = vpop.f32.mrb[0].mxu0
        %959 = vmatprep.mubr.bf16.mxu0 0
        %960 = vmatmul.mubr.bf16.gmra.mrb[0].mxu0 %v869
        %v961 = vpop.f32.mrb[0].mxu0
        %v962 = vadd.f32 0.0, %v961
        %v963 = vpop.f32.mrb[0].mxu0
        %v964 = vpop.f32.mrb[0].mxu0
        %v965 = vadd.f32 0.0, %v964
        %v966 = vpop.f32.mrb[0].mxu0
        %967 = vdwg.mxu0
        %v976 = vunpack.c.l.b16 %v797
        %v977 = vunpack.c.l.b16 %v798
        %v978 = vunpack.c.l.b16 %v799
        %v979 = vunpack.c.l.b16 %v800
        %v980 = vunpack.c.l.b16 %v801
        %v981 = vunpack.c.l.b16 %v802
        %v982 = vunpack.c.l.b16 %v803
        %v983 = vunpack.c.l.b16 %v804
        %v984 = vpack.c.b16 %v977, %v976
        %v985 = vpack.c.b16 %v979, %v978
        %v986 = vpack.c.b16 %v981, %v980
        %v987 = vpack.c.b16 %v983, %v982
        %v993 = vsel %vm846, %v789, 0
        %v996 = vsel %vm846, %v790, 0
        %v999 = vsel %vm846, %v791, 0
        %v1002 = vsel %vm846, %v792, 0
        %v1005 = vsel %vm846, %v793, 0
        %v1008 = vsel %vm846, %v794, 0
        %v1011 = vsel %vm846, %v795, 0
        %v1014 = vsel %vm846, %v796, 0
        %1016 = vmatprep.subr.bf16.mxu0 0
        %1017 = vmatpush1.bf16.msra.mxu0 %v984
        %1018 = vmatprep.subr.bf16.mxu0 0
        %1019 = vmatpush1.bf16.msra.mxu0 %v985
        %1020 = vmatprep.subr.bf16.mxu0 0
        %1021 = vmatpush1.bf16.msra.mxu0 %v986
        %1022 = vmatprep.subr.bf16.mxu0 0
        %1023 = vmatpush1.bf16.msra.mxu0 %v987
        %1024 = vmatprep.subr.bf16.mxu0 0
        %1025 = vmatpush1.bf16.msra.mxu0 0
        %1026 = vmatprep.subr.bf16.mxu0 0
        %1027 = vmatpush1.bf16.msra.mxu0 0
        %1028 = vmatprep.subr.bf16.mxu0 0
        %1029 = vmatpush1.bf16.msra.mxu0 0
        %1030 = vmatprep.subr.bf16.mxu0 0
        %1031 = vmatpush1.bf16.msra.mxu0 0
        %1032 = vmatprep.subr.bf16.mxu0 0
        %1033 = vmatpush1.bf16.msra.mxu0 0
        %1034 = vmatprep.subr.bf16.mxu0 0
        %1035 = vmatpush1.bf16.msra.mxu0 0
        %1036 = vmatprep.subr.bf16.mxu0 0
        %1037 = vmatpush1.bf16.msra.mxu0 0
        %1038 = vmatprep.subr.bf16.mxu0 0
        %1039 = vmatpush1.bf16.msra.mxu0 0
        %1040 = vmatprep.subr.bf16.mxu0 0
        %1041 = vmatpush1.bf16.msra.mxu0 0
        %1042 = vmatprep.subr.bf16.mxu0 0
        %1043 = vmatpush1.bf16.msra.mxu0 0
        %1044 = vmatprep.subr.bf16.mxu0 0
        %1045 = vmatpush1.bf16.msra.mxu0 0
        %1046 = vmatprep.subr.bf16.mxu0 0
        %1047 = vmatpush1.bf16.msra.mxu0 0
        %1048 = vmatprep.mubr.bf16.mxu0 0
        %1049 = vmatmul.mubr.bf16.gmra.mrb[0].mxu0 %v993
        %v1050 = vpop.f32.mrb[0].mxu0
        %v1051 = vadd.f32 %v906, %v1050
        %v1052 = vpop.f32.mrb[0].mxu0
        %v1053 = vpop.f32.mrb[0].mxu0
        %v1054 = vadd.f32 %v909, %v1053
        %v1055 = vpop.f32.mrb[0].mxu0
        %1056 = vmatprep.mubr.bf16.mxu0 0
        %1057 = vmatmul.mubr.bf16.gmra.mrb[0].mxu0 %v996
        %v1058 = vpop.f32.mrb[0].mxu0
        %v1059 = vadd.f32 %v914, %v1058
        %v1060 = vpop.f32.mrb[0].mxu0
        %v1061 = vpop.f32.mrb[0].mxu0
        %v1062 = vadd.f32 %v917, %v1061
        %v1063 = vpop.f32.mrb[0].mxu0
        %1064 = vmatprep.mubr.bf16.mxu0 0
        %1065 = vmatmul.mubr.bf16.gmra.mrb[0].mxu0 %v999
        %v1066 = vpop.f32.mrb[0].mxu0
        %v1067 = vadd.f32 %v922, %v1066
        %v1068 = vpop.f32.mrb[0].mxu0
        %v1069 = vpop.f32.mrb[0].mxu0
        %v1070 = vadd.f32 %v925, %v1069
        %v1071 = vpop.f32.mrb[0].mxu0
        %1072 = vmatprep.mubr.bf16.mxu0 0
        %1073 = vmatmul.mubr.bf16.gmra.mrb[0].mxu0 %v1002
        %v1074 = vpop.f32.mrb[0].mxu0
        %v1075 = vadd.f32 %v930, %v1074
        %v1076 = vpop.f32.mrb[0].mxu0
        %v1077 = vpop.f32.mrb[0].mxu0
        %v1078 = vadd.f32 %v933, %v1077
        %v1079 = vpop.f32.mrb[0].mxu0
        %1080 = vmatprep.mubr.bf16.mxu0 0
        %1081 = vmatmul.mubr.bf16.gmra.mrb[0].mxu0 %v1005
        %v1082 = vpop.f32.mrb[0].mxu0
        %v1083 = vadd.f32 %v938, %v1082
        %v1084 = vpop.f32.mrb[0].mxu0
        %v1085 = vpop.f32.mrb[0].mxu0
        %v1086 = vadd.f32 %v941, %v1085
        %v1087 = vpop.f32.mrb[0].mxu0
        %1088 = vmatprep.mubr.bf16.mxu0 0
        %1089 = vmatmul.mubr.bf16.gmra.mrb[0].mxu0 %v1008
        %v1090 = vpop.f32.mrb[0].mxu0
        %v1091 = vadd.f32 %v946, %v1090
        %v1092 = vpop.f32.mrb[0].mxu0
        %v1093 = vpop.f32.mrb[0].mxu0
        %v1094 = vadd.f32 %v949, %v1093
        %v1095 = vpop.f32.mrb[0].mxu0
        %1096 = vmatprep.mubr.bf16.mxu0 0
        %1097 = vmatmul.mubr.bf16.gmra.mrb[0].mxu0 %v1011
        %v1098 = vpop.f32.mrb[0].mxu0
        %v1099 = vadd.f32 %v954, %v1098
        %v1100 = vpop.f32.mrb[0].mxu0
        %v1101 = vpop.f32.mrb[0].mxu0
        %v1102 = vadd.f32 %v957, %v1101
        %v1103 = vpop.f32.mrb[0].mxu0
        %1104 = vmatprep.mubr.bf16.mxu0 0
        %1105 = vmatmul.mubr.bf16.gmra.mrb[0].mxu0 %v1014
        %v1106 = vpop.f32.mrb[0].mxu0
        %v1107 = vadd.f32 %v962, %v1106
        %v1108 = vpop.f32.mrb[0].mxu0
        %v1109 = vpop.f32.mrb[0].mxu0
        %v1110 = vadd.f32 %v965, %v1109
        %v1111 = vpop.f32.mrb[0].mxu0
        %1112 = vdwg.mxu0
        %v1113 = vrot.slane %v467, 1
        %v1114 = vrot.slane %v468, 1
        %v1115 = vrot.slane %v469, 1
        %v1116 = vrot.slane %v470, 1
        %v1117 = vrot.slane %v471, 1
        %v1118 = vrot.slane %v472, 1
        %v1119 = vrot.slane %v473, 1
        %v1120 = vrot.slane %v474, 1
        %v1121 = vrot.slane %v475, 1
        %v1122 = vrot.slane %v476, 1
        %v1123 = vrot.slane %v477, 1
        %v1124 = vrot.slane %v478, 1
        %v1125 = vrot.slane %v479, 1
        %v1126 = vrot.slane %v480, 1
        %v1127 = vrot.slane %v481, 1
        %v1128 = vrot.slane %v482, 1
        %vm1129 = vcmp.lt.s32.totalorder %v484, 7
        %v1130 = vsel %vm1129, %v1127, %v1128
        %v1131 = vsel %vm1129, %v1126, %v1127
        %v1132 = vsel %vm1129, %v1125, %v1126
        %v1133 = vsel %vm1129, %v1124, %v1125
        %v1134 = vsel %vm1129, %v1123, %v1124
        %v1135 = vsel %vm1129, %v1122, %v1123
        %v1136 = vsel %vm1129, %v1121, %v1122
        %v1137 = vsel %vm1129, %v1120, %v1121
        %v1138 = vsel %vm1129, %v1119, %v1120
        %v1139 = vsel %vm1129, %v1118, %v1119
        %v1140 = vsel %vm1129, %v1117, %v1118
        %v1141 = vsel %vm1129, %v1116, %v1117
        %v1142 = vsel %vm1129, %v1115, %v1116
        %v1143 = vsel %vm1129, %v1114, %v1115
        %v1144 = vsel %vm1129, %v1113, %v1114
        %v1145 = vsel %vm1129, %v1128, %v1113
        %vm1146 = vcmp.lt.s32.totalorder %v676, 15
        %vm1147 = vcmp.lt.s32.totalorder %v677, 15
        %vm1148 = vcmp.lt.s32.totalorder %v678, 15
        %vm1149 = vcmp.lt.s32.totalorder %v679, 15
        %vm1150 = vcmp.lt.s32.totalorder %v680, 15
        %vm1151 = vcmp.lt.s32.totalorder %v681, 15
        %vm1152 = vcmp.lt.s32.totalorder %v682, 15
        %vm1153 = vcmp.lt.s32.totalorder %v683, 15
        %vm1154 = vcmp.lt.s32.totalorder %v684, 15
        %vm1155 = vcmp.lt.s32.totalorder %v685, 15
        %vm1156 = vcmp.lt.s32.totalorder %v686, 15
        %vm1157 = vcmp.lt.s32.totalorder %v687, 15
        %vm1158 = vcmp.lt.s32.totalorder %v688, 15
        %vm1159 = vcmp.lt.s32.totalorder %v689, 15
        %vm1160 = vcmp.lt.s32.totalorder %v690, 15
        %vm1161 = vcmp.lt.s32.totalorder %v691, 15
        %v1162 = vsel %vm1146, 1, 0
        %v1163 = vsel %vm1147, 1, 0
        %v1164 = vsel %vm1148, 1, 0
        %v1165 = vsel %vm1149, 1, 0
        %v1166 = vsel %vm1150, 1, 0
        %v1167 = vsel %vm1151, 1, 0
        %v1168 = vsel %vm1152, 1, 0
        %v1169 = vsel %vm1153, 1, 0
        %v1170 = vsel %vm1154, 1, 0
        %v1171 = vsel %vm1155, 1, 0
        %v1172 = vsel %vm1156, 1, 0
        %v1173 = vsel %vm1157, 1, 0
        %v1174 = vsel %vm1158, 1, 0
        %v1175 = vsel %vm1159, 1, 0
        %v1176 = vsel %vm1160, 1, 0
        %v1177 = vsel %vm1161, 1, 0
        %vm1178 = vcmp.eq.s32.totalorder %v1162, 1
        %vm1179 = vcmp.eq.s32.totalorder %v1163, 1
        %vm1180 = vcmp.eq.s32.totalorder %v1164, 1
        %vm1181 = vcmp.eq.s32.totalorder %v1165, 1
        %vm1182 = vcmp.eq.s32.totalorder %v1166, 1
        %vm1183 = vcmp.eq.s32.totalorder %v1167, 1
        %vm1184 = vcmp.eq.s32.totalorder %v1168, 1
        %vm1185 = vcmp.eq.s32.totalorder %v1169, 1
        %vm1186 = vcmp.eq.s32.totalorder %v1170, 1
        %vm1187 = vcmp.eq.s32.totalorder %v1171, 1
        %vm1188 = vcmp.eq.s32.totalorder %v1172, 1
        %vm1189 = vcmp.eq.s32.totalorder %v1173, 1
        %vm1190 = vcmp.eq.s32.totalorder %v1174, 1
        %vm1191 = vcmp.eq.s32.totalorder %v1175, 1
        %vm1192 = vcmp.eq.s32.totalorder %v1176, 1
        %vm1193 = vcmp.eq.s32.totalorder %v1177, 1
        %v1194 = vsel %vm1178, %v1144, 0.0
        %v1195 = vsel %vm1179, %v1143, 0.0
        %v1196 = vsel %vm1180, %v1142, 0.0
        %v1197 = vsel %vm1181, %v1141, 0.0
        %v1198 = vsel %vm1182, %v1140, 0.0
        %v1199 = vsel %vm1183, %v1139, 0.0
        %v1200 = vsel %vm1184, %v1138, 0.0
        %v1201 = vsel %vm1185, %v1137, 0.0
        %v1202 = vsel %vm1186, %v1136, 0.0
        %v1203 = vsel %vm1187, %v1135, 0.0
        %v1204 = vsel %vm1188, %v1134, 0.0
        %v1205 = vsel %vm1189, %v1133, 0.0
        %v1206 = vsel %vm1190, %v1132, 0.0
        %v1207 = vsel %vm1191, %v1131, 0.0
        %v1208 = vsel %vm1192, %v1130, 0.0
        %v1209 = vsel %vm1193, %v1145, 0.0
        %v1210 = vpack.c.bf16 %v1195, %v1194
        %v1211 = vpack.c.bf16 %v1197, %v1196
        %v1212 = vpack.c.bf16 %v1199, %v1198
        %v1213 = vpack.c.bf16 %v1201, %v1200
        %v1214 = vpack.c.bf16 %v1203, %v1202
        %v1215 = vpack.c.bf16 %v1205, %v1204
        %v1216 = vpack.c.bf16 %v1207, %v1206
        %v1217 = vpack.c.bf16 %v1209, %v1208
        %s1218 = scalar_lea.vmem %s1, 64
        %v1219 = vld [vmem:[%s1218] sm:$0xf]
        %v1220 = vld [vmem:[%s1218 + $0x4] sm:$0xf]
        %v1221 = vld [vmem:[%s1218 + $0x8] sm:$0xf]
        %v1222 = vld [vmem:[%s1218 + $0xc] sm:$0xf]
        %v1223 = vld [vmem:[%s1218 + $0x10] sm:$0xf]
        %v1224 = vld [vmem:[%s1218 + $0x14] sm:$0xf]
        %v1225 = vld [vmem:[%s1218 + $0x18] sm:$0xf]
        %v1226 = vld [vmem:[%s1218 + $0x1c] sm:$0xf]
        %v1235 = vunpack.c.l.b16 %v1219
        %v1236 = vunpack.c.l.b16 %v1220
        %v1237 = vunpack.c.l.b16 %v1221
        %v1238 = vunpack.c.l.b16 %v1222
        %v1239 = vunpack.c.l.b16 %v1223
        %v1240 = vunpack.c.l.b16 %v1224
        %v1241 = vunpack.c.l.b16 %v1225
        %v1242 = vunpack.c.l.b16 %v1226
        %v1243 = vpack.c.b16 %v1236, %v1235
        %v1244 = vpack.c.b16 %v1238, %v1237
        %v1245 = vpack.c.b16 %v1240, %v1239
        %v1246 = vpack.c.b16 %v1242, %v1241
        %v1252 = vsel %vm846, %v1210, 0
        %v1255 = vsel %vm846, %v1211, 0
        %v1258 = vsel %vm846, %v1212, 0
        %v1261 = vsel %vm846, %v1213, 0
        %v1264 = vsel %vm846, %v1214, 0
        %v1267 = vsel %vm846, %v1215, 0
        %v1270 = vsel %vm846, %v1216, 0
        %v1273 = vsel %vm846, %v1217, 0
        %1275 = vmatprep.subr.bf16.mxu0 0
        %1276 = vmatpush1.bf16.msra.mxu0 %v1243
        %1277 = vmatprep.subr.bf16.mxu0 0
        %1278 = vmatpush1.bf16.msra.mxu0 %v1244
        %1279 = vmatprep.subr.bf16.mxu0 0
        %1280 = vmatpush1.bf16.msra.mxu0 %v1245
        %1281 = vmatprep.subr.bf16.mxu0 0
        %1282 = vmatpush1.bf16.msra.mxu0 %v1246
        %1283 = vmatprep.subr.bf16.mxu0 0
        %1284 = vmatpush1.bf16.msra.mxu0 0
        %1285 = vmatprep.subr.bf16.mxu0 0
        %1286 = vmatpush1.bf16.msra.mxu0 0
        %1287 = vmatprep.subr.bf16.mxu0 0
        %1288 = vmatpush1.bf16.msra.mxu0 0
        %1289 = vmatprep.subr.bf16.mxu0 0
        %1290 = vmatpush1.bf16.msra.mxu0 0
        %1291 = vmatprep.subr.bf16.mxu0 0
        %1292 = vmatpush1.bf16.msra.mxu0 0
        %1293 = vmatprep.subr.bf16.mxu0 0
        %1294 = vmatpush1.bf16.msra.mxu0 0
        %1295 = vmatprep.subr.bf16.mxu0 0
        %1296 = vmatpush1.bf16.msra.mxu0 0
        %1297 = vmatprep.subr.bf16.mxu0 0
        %1298 = vmatpush1.bf16.msra.mxu0 0
        %1299 = vmatprep.subr.bf16.mxu0 0
        %1300 = vmatpush1.bf16.msra.mxu0 0
        %1301 = vmatprep.subr.bf16.mxu0 0
        %1302 = vmatpush1.bf16.msra.mxu0 0
        %1303 = vmatprep.subr.bf16.mxu0 0
        %1304 = vmatpush1.bf16.msra.mxu0 0
        %1305 = vmatprep.subr.bf16.mxu0 0
        %1306 = vmatpush1.bf16.msra.mxu0 0
        %1307 = vmatprep.mubr.bf16.mxu0 0
        %1308 = vmatmul.mubr.bf16.gmra.mrb[0].mxu0 %v1252
        %v1309 = vpop.f32.mrb[0].mxu0
        %v1310 = vadd.f32 0.0, %v1309
        %v1311 = vpop.f32.mrb[0].mxu0
        %v1312 = vpop.f32.mrb[0].mxu0
        %v1313 = vadd.f32 0.0, %v1312
        %v1314 = vpop.f32.mrb[0].mxu0
        %1315 = vmatprep.mubr.bf16.mxu0 0
        %1316 = vmatmul.mubr.bf16.gmra.mrb[0].mxu0 %v1255
        %v1317 = vpop.f32.mrb[0].mxu0
        %v1318 = vadd.f32 0.0, %v1317
        %v1319 = vpop.f32.mrb[0].mxu0
        %v1320 = vpop.f32.mrb[0].mxu0
        %v1321 = vadd.f32 0.0, %v1320
        %v1322 = vpop.f32.mrb[0].mxu0
        %1323 = vmatprep.mubr.bf16.mxu0 0
        %1324 = vmatmul.mubr.bf16.gmra.mrb[0].mxu0 %v1258
        %v1325 = vpop.f32.mrb[0].mxu0
        %v1326 = vadd.f32 0.0, %v1325
        %v1327 = vpop.f32.mrb[0].mxu0
        %v1328 = vpop.f32.mrb[0].mxu0
        %v1329 = vadd.f32 0.0, %v1328
        %v1330 = vpop.f32.mrb[0].mxu0
        %1331 = vmatprep.mubr.bf16.mxu0 0
        %1332 = vmatmul.mubr.bf16.gmra.mrb[0].mxu0 %v1261
        %v1333 = vpop.f32.mrb[0].mxu0
        %v1334 = vadd.f32 0.0, %v1333
        %v1335 = vpop.f32.mrb[0].mxu0
        %v1336 = vpop.f32.mrb[0].mxu0
        %v1337 = vadd.f32 0.0, %v1336
        %v1338 = vpop.f32.mrb[0].mxu0
        %1339 = vmatprep.mubr.bf16.mxu0 0
        %1340 = vmatmul.mubr.bf16.gmra.mrb[0].mxu0 %v1264
        %v1341 = vpop.f32.mrb[0].mxu0
        %v1342 = vadd.f32 0.0, %v1341
        %v1343 = vpop.f32.mrb[0].mxu0
        %v1344 = vpop.f32.mrb[0].mxu0
        %v1345 = vadd.f32 0.0, %v1344
        %v1346 = vpop.f32.mrb[0].mxu0
        %1347 = vmatprep.mubr.bf16.mxu0 0
        %1348 = vmatmul.mubr.bf16.gmra.mrb[0].mxu0 %v1267
        %v1349 = vpop.f32.mrb[0].mxu0
        %v1350 = vadd.f32 0.0, %v1349
        %v1351 = vpop.f32.mrb[0].mxu0
        %v1352 = vpop.f32.mrb[0].mxu0
        %v1353 = vadd.f32 0.0, %v1352
        %v1354 = vpop.f32.mrb[0].mxu0
        %1355 = vmatprep.mubr.bf16.mxu0 0
        %1356 = vmatmul.mubr.bf16.gmra.mrb[0].mxu0 %v1270
        %v1357 = vpop.f32.mrb[0].mxu0
        %v1358 = vadd.f32 0.0, %v1357
        %v1359 = vpop.f32.mrb[0].mxu0
        %v1360 = vpop.f32.mrb[0].mxu0
        %v1361 = vadd.f32 0.0, %v1360
        %v1362 = vpop.f32.mrb[0].mxu0
        %1363 = vmatprep.mubr.bf16.mxu0 0
        %1364 = vmatmul.mubr.bf16.gmra.mrb[0].mxu0 %v1273
        %v1365 = vpop.f32.mrb[0].mxu0
        %v1366 = vadd.f32 0.0, %v1365
        %v1367 = vpop.f32.mrb[0].mxu0
        %v1368 = vpop.f32.mrb[0].mxu0
        %v1369 = vadd.f32 0.0, %v1368
        %v1370 = vpop.f32.mrb[0].mxu0
        %1371 = vdwg.mxu0
        %v1372 = vadd.f32 %v1051, %v1310
        %v1373 = vadd.f32 %v1054, %v1313
        %v1374 = vadd.f32 %v1059, %v1318
        %v1375 = vadd.f32 %v1062, %v1321
        %v1376 = vadd.f32 %v1067, %v1326
        %v1377 = vadd.f32 %v1070, %v1329
        %v1378 = vadd.f32 %v1075, %v1334
        %v1379 = vadd.f32 %v1078, %v1337
        %v1380 = vadd.f32 %v1083, %v1342
        %v1381 = vadd.f32 %v1086, %v1345
        %v1382 = vadd.f32 %v1091, %v1350
        %v1383 = vadd.f32 %v1094, %v1353
        %v1384 = vadd.f32 %v1099, %v1358
        %v1385 = vadd.f32 %v1102, %v1361
        %v1386 = vadd.f32 %v1107, %v1366
        %v1387 = vadd.f32 %v1110, %v1369
        %v1388 = vld [vmem:[%s2] sm:$0x1]
        %v1390 = vlaneseq
        %v1391 = vshrl.u32 %v1390, 7
        %v1392 = vsub.s32 0, %v1391
        %v1393 = vrot.slane %v1388, %v1392
        %v1395 = vadd.f32 %v1372, %v1393
        %v1396 = vadd.f32 %v1373, %v1393
        %v1397 = vadd.f32 %v1374, %v1393
        %v1398 = vadd.f32 %v1375, %v1393
        %v1399 = vadd.f32 %v1376, %v1393
        %v1400 = vadd.f32 %v1377, %v1393
        %v1401 = vadd.f32 %v1378, %v1393
        %v1402 = vadd.f32 %v1379, %v1393
        %v1403 = vadd.f32 %v1380, %v1393
        %v1404 = vadd.f32 %v1381, %v1393
        %v1405 = vadd.f32 %v1382, %v1393
        %v1406 = vadd.f32 %v1383, %v1393
        %v1407 = vadd.f32 %v1384, %v1393
        %v1408 = vadd.f32 %v1385, %v1393
        %v1409 = vadd.f32 %v1386, %v1393
        %v1410 = vadd.f32 %v1387, %v1393
        %v1411 = vmax.f32 %v1395, 0.0
        %v1412 = vmax.f32 %v1396, 0.0
        %v1413 = vmax.f32 %v1397, 0.0
        %v1414 = vmax.f32 %v1398, 0.0
        %v1415 = vmax.f32 %v1399, 0.0
        %v1416 = vmax.f32 %v1400, 0.0
        %v1417 = vmax.f32 %v1401, 0.0
        %v1418 = vmax.f32 %v1402, 0.0
        %v1419 = vmax.f32 %v1403, 0.0
        %v1420 = vmax.f32 %v1404, 0.0
        %v1421 = vmax.f32 %v1405, 0.0
        %v1422 = vmax.f32 %v1406, 0.0
        %v1423 = vmax.f32 %v1407, 0.0
        %v1424 = vmax.f32 %v1408, 0.0
        %v1425 = vmax.f32 %v1409, 0.0
        %v1426 = vmax.f32 %v1410, 0.0
        %v1427 = vrot.slane %v1411, 7
        %v1428 = vrot.slane %v1412, 7
        %v1429 = vrot.slane %v1413, 7
        %v1430 = vrot.slane %v1414, 7
        %v1431 = vrot.slane %v1415, 7
        %v1432 = vrot.slane %v1416, 7
        %v1433 = vrot.slane %v1417, 7
        %v1434 = vrot.slane %v1418, 7
        %v1435 = vrot.slane %v1419, 7
        %v1436 = vrot.slane %v1420, 7
        %v1437 = vrot.slane %v1421, 7
        %v1438 = vrot.slane %v1422, 7
        %v1439 = vrot.slane %v1423, 7
        %v1440 = vrot.slane %v1424, 7
        %v1441 = vrot.slane %v1425, 7
        %v1442 = vrot.slane %v1426, 7
        %v1443 = vsel %vm708, %v1441, %v1442
        %v1444 = vsel %vm708, %v1440, %v1441
        %v1445 = vsel %vm708, %v1439, %v1440
        %v1446 = vsel %vm708, %v1438, %v1439
        %v1447 = vsel %vm708, %v1437, %v1438
        %v1448 = vsel %vm708, %v1436, %v1437
        %v1449 = vsel %vm708, %v1435, %v1436
        %v1450 = vsel %vm708, %v1434, %v1435
        %v1451 = vsel %vm708, %v1433, %v1434
        %v1452 = vsel %vm708, %v1432, %v1433
        %v1453 = vsel %vm708, %v1431, %v1432
        %v1454 = vsel %vm708, %v1430, %v1431
        %v1455 = vsel %vm708, %v1429, %v1430
        %v1456 = vsel %vm708, %v1428, %v1429
        %v1457 = vsel %vm708, %v1427, %v1428
        %v1458 = vsel %vm708, %v1442, %v1427
        %v1459 = vsel %vm757, %v1458, 0.0
        %v1460 = vsel %vm758, %v1457, 0.0
        %v1461 = vsel %vm759, %v1456, 0.0
        %v1462 = vsel %vm760, %v1455, 0.0
        %v1463 = vsel %vm761, %v1454, 0.0
        %v1464 = vsel %vm762, %v1453, 0.0
        %v1465 = vsel %vm763, %v1452, 0.0
        %v1466 = vsel %vm764, %v1451, 0.0
        %v1467 = vsel %vm765, %v1450, 0.0
        %v1468 = vsel %vm766, %v1449, 0.0
        %v1469 = vsel %vm767, %v1448, 0.0
        %v1470 = vsel %vm768, %v1447, 0.0
        %v1471 = vsel %vm769, %v1446, 0.0
        %v1472 = vsel %vm770, %v1445, 0.0
        %v1473 = vsel %vm771, %v1444, 0.0
        %v1474 = vsel %vm772, %v1443, 0.0
        %v1475 = vpack.c.bf16 %v1460, %v1459
        %v1476 = vpack.c.bf16 %v1462, %v1461
        %v1477 = vpack.c.bf16 %v1464, %v1463
        %v1478 = vpack.c.bf16 %v1466, %v1465
        %v1479 = vpack.c.bf16 %v1468, %v1467
        %v1480 = vpack.c.bf16 %v1470, %v1469
        %v1481 = vpack.c.bf16 %v1472, %v1471
        %v1482 = vpack.c.bf16 %v1474, %v1473
        %v1483 = vld [vmem:[%s3] sm:$0xf]
        %v1484 = vld [vmem:[%s3 + $0x4] sm:$0xf]
        %v1485 = vld [vmem:[%s3 + $0x8] sm:$0xf]
        %v1486 = vld [vmem:[%s3 + $0xc] sm:$0xf]
        %v1487 = vld [vmem:[%s3 + $0x10] sm:$0xf]
        %v1488 = vld [vmem:[%s3 + $0x14] sm:$0xf]
        %v1489 = vld [vmem:[%s3 + $0x18] sm:$0xf]
        %v1490 = vld [vmem:[%s3 + $0x1c] sm:$0xf]
        %v1491 = vld [vmem:[%s3 + $0x20] sm:$0xf]
        %v1492 = vld [vmem:[%s3 + $0x24] sm:$0xf]
        %v1493 = vld [vmem:[%s3 + $0x28] sm:$0xf]
        %v1494 = vld [vmem:[%s3 + $0x2c] sm:$0xf]
        %v1495 = vld [vmem:[%s3 + $0x30] sm:$0xf]
        %v1496 = vld [vmem:[%s3 + $0x34] sm:$0xf]
        %v1497 = vld [vmem:[%s3 + $0x38] sm:$0xf]
        %v1498 = vld [vmem:[%s3 + $0x3c] sm:$0xf]
        %v1499 = vpack.c.bf16 %v1412, %v1411
        %v1500 = vpack.c.bf16 %v1414, %v1413
        %v1501 = vpack.c.bf16 %v1416, %v1415
        %v1502 = vpack.c.bf16 %v1418, %v1417
        %v1503 = vpack.c.bf16 %v1420, %v1419
        %v1504 = vpack.c.bf16 %v1422, %v1421
        %v1505 = vpack.c.bf16 %v1424, %v1423
        %v1506 = vpack.c.bf16 %v1426, %v1425
        %s1507 = scalar_lea.vmem %s3, 64
        %v1508 = vld [vmem:[%s1507] sm:$0xf]
        %v1509 = vld [vmem:[%s1507 + $0x4] sm:$0xf]
        %v1510 = vld [vmem:[%s1507 + $0x8] sm:$0xf]
        %v1511 = vld [vmem:[%s1507 + $0xc] sm:$0xf]
        %v1512 = vld [vmem:[%s1507 + $0x10] sm:$0xf]
        %v1513 = vld [vmem:[%s1507 + $0x14] sm:$0xf]
        %v1514 = vld [vmem:[%s1507 + $0x18] sm:$0xf]
        %v1515 = vld [vmem:[%s1507 + $0x1c] sm:$0xf]
        %v1516 = vld [vmem:[%s1507 + $0x20] sm:$0xf]
        %v1517 = vld [vmem:[%s1507 + $0x24] sm:$0xf]
        %v1518 = vld [vmem:[%s1507 + $0x28] sm:$0xf]
        %v1519 = vld [vmem:[%s1507 + $0x2c] sm:$0xf]
        %v1520 = vld [vmem:[%s1507 + $0x30] sm:$0xf]
        %v1521 = vld [vmem:[%s1507 + $0x34] sm:$0xf]
        %v1522 = vld [vmem:[%s1507 + $0x38] sm:$0xf]
        %v1523 = vld [vmem:[%s1507 + $0x3c] sm:$0xf]
        %v1540 = vunpack.c.l.b16 %v1508
        %v1541 = vunpack.c.l.b16 %v1509
        %v1542 = vunpack.c.l.b16 %v1510
        %v1543 = vunpack.c.l.b16 %v1511
        %v1544 = vunpack.c.l.b16 %v1512
        %v1545 = vunpack.c.l.b16 %v1513
        %v1546 = vunpack.c.l.b16 %v1514
        %v1547 = vunpack.c.l.b16 %v1515
        %v1548 = vunpack.c.l.b16 %v1516
        %v1549 = vunpack.c.l.b16 %v1517
        %v1550 = vunpack.c.l.b16 %v1518
        %v1551 = vunpack.c.l.b16 %v1519
        %v1552 = vunpack.c.l.b16 %v1520
        %v1553 = vunpack.c.l.b16 %v1521
        %v1554 = vunpack.c.l.b16 %v1522
        %v1555 = vunpack.c.l.b16 %v1523
        %v1556 = vpack.c.b16 %v1541, %v1540
        %v1557 = vpack.c.b16 %v1543, %v1542
        %v1558 = vpack.c.b16 %v1545, %v1544
        %v1559 = vpack.c.b16 %v1547, %v1546
        %v1560 = vpack.c.b16 %v1549, %v1548
        %v1561 = vpack.c.b16 %v1551, %v1550
        %v1562 = vpack.c.b16 %v1553, %v1552
        %v1563 = vpack.c.b16 %v1555, %v1554
        %1572 = vmatprep.subr.bf16.mxu0 0
        %1573 = vmatpush1.bf16.msra.mxu0 %v1556
        %1574 = vmatprep.subr.bf16.mxu0 0
        %1575 = vmatpush1.bf16.msra.mxu0 %v1557
        %1576 = vmatprep.subr.bf16.mxu0 0
        %1577 = vmatpush1.bf16.msra.mxu0 %v1558
        %1578 = vmatprep.subr.bf16.mxu0 0
        %1579 = vmatpush1.bf16.msra.mxu0 %v1559
        %1580 = vmatprep.subr.bf16.mxu0 0
        %1581 = vmatpush1.bf16.msra.mxu0 %v1560
        %1582 = vmatprep.subr.bf16.mxu0 0
        %1583 = vmatpush1.bf16.msra.mxu0 %v1561
        %1584 = vmatprep.subr.bf16.mxu0 0
        %1585 = vmatpush1.bf16.msra.mxu0 %v1562
        %1586 = vmatprep.subr.bf16.mxu0 0
        %1587 = vmatpush1.bf16.msra.mxu0 %v1563
        %1588 = vmatprep.subr.bf16.mxu0 0
        %1589 = vmatpush1.bf16.msra.mxu0 0
        %1590 = vmatprep.subr.bf16.mxu0 0
        %1591 = vmatpush1.bf16.msra.mxu0 0
        %1592 = vmatprep.subr.bf16.mxu0 0
        %1593 = vmatpush1.bf16.msra.mxu0 0
        %1594 = vmatprep.subr.bf16.mxu0 0
        %1595 = vmatpush1.bf16.msra.mxu0 0
        %1596 = vmatprep.subr.bf16.mxu0 0
        %1597 = vmatpush1.bf16.msra.mxu0 0
        %1598 = vmatprep.subr.bf16.mxu0 0
        %1599 = vmatpush1.bf16.msra.mxu0 0
        %1600 = vmatprep.subr.bf16.mxu0 0
        %1601 = vmatpush1.bf16.msra.mxu0 0
        %1602 = vmatprep.subr.bf16.mxu0 0
        %1603 = vmatpush1.bf16.msra.mxu0 0
        %1604 = vmatprep.mubr.bf16.mxu0 0
        %1605 = vmatmul.mubr.bf16.gmra.mrb[0].mxu0 %v1499
        %v1606 = vpop.f32.mrb[0].mxu0
        %v1607 = vadd.f32 0.0, %v1606
        %v1608 = vpop.f32.mrb[0].mxu0
        %v1609 = vpop.f32.mrb[0].mxu0
        %v1610 = vadd.f32 0.0, %v1609
        %v1611 = vpop.f32.mrb[0].mxu0
        %1612 = vmatprep.mubr.bf16.mxu0 0
        %1613 = vmatmul.mubr.bf16.gmra.mrb[0].mxu0 %v1500
        %v1614 = vpop.f32.mrb[0].mxu0
        %v1615 = vadd.f32 0.0, %v1614
        %v1616 = vpop.f32.mrb[0].mxu0
        %v1617 = vpop.f32.mrb[0].mxu0
        %v1618 = vadd.f32 0.0, %v1617
        %v1619 = vpop.f32.mrb[0].mxu0
        %1620 = vmatprep.mubr.bf16.mxu0 0
        %1621 = vmatmul.mubr.bf16.gmra.mrb[0].mxu0 %v1501
        %v1622 = vpop.f32.mrb[0].mxu0
        %v1623 = vadd.f32 0.0, %v1622
        %v1624 = vpop.f32.mrb[0].mxu0
        %v1625 = vpop.f32.mrb[0].mxu0
        %v1626 = vadd.f32 0.0, %v1625
        %v1627 = vpop.f32.mrb[0].mxu0
        %1628 = vmatprep.mubr.bf16.mxu0 0
        %1629 = vmatmul.mubr.bf16.gmra.mrb[0].mxu0 %v1502
        %v1630 = vpop.f32.mrb[0].mxu0
        %v1631 = vadd.f32 0.0, %v1630
        %v1632 = vpop.f32.mrb[0].mxu0
        %v1633 = vpop.f32.mrb[0].mxu0
        %v1634 = vadd.f32 0.0, %v1633
        %v1635 = vpop.f32.mrb[0].mxu0
        %1636 = vmatprep.mubr.bf16.mxu0 0
        %1637 = vmatmul.mubr.bf16.gmra.mrb[0].mxu0 %v1503
        %v1638 = vpop.f32.mrb[0].mxu0
        %v1639 = vadd.f32 0.0, %v1638
        %v1640 = vpop.f32.mrb[0].mxu0
        %v1641 = vpop.f32.mrb[0].mxu0
        %v1642 = vadd.f32 0.0, %v1641
        %v1643 = vpop.f32.mrb[0].mxu0
        %1644 = vmatprep.mubr.bf16.mxu0 0
        %1645 = vmatmul.mubr.bf16.gmra.mrb[0].mxu0 %v1504
        %v1646 = vpop.f32.mrb[0].mxu0
        %v1647 = vadd.f32 0.0, %v1646
        %v1648 = vpop.f32.mrb[0].mxu0
        %v1649 = vpop.f32.mrb[0].mxu0
        %v1650 = vadd.f32 0.0, %v1649
        %v1651 = vpop.f32.mrb[0].mxu0
        %1652 = vmatprep.mubr.bf16.mxu0 0
        %1653 = vmatmul.mubr.bf16.gmra.mrb[0].mxu0 %v1505
        %v1654 = vpop.f32.mrb[0].mxu0
        %v1655 = vadd.f32 0.0, %v1654
        %v1656 = vpop.f32.mrb[0].mxu0
        %v1657 = vpop.f32.mrb[0].mxu0
        %v1658 = vadd.f32 0.0, %v1657
        %v1659 = vpop.f32.mrb[0].mxu0
        %1660 = vmatprep.mubr.bf16.mxu0 0
        %1661 = vmatmul.mubr.bf16.gmra.mrb[0].mxu0 %v1506
        %v1662 = vpop.f32.mrb[0].mxu0
        %v1663 = vadd.f32 0.0, %v1662
        %v1664 = vpop.f32.mrb[0].mxu0
        %v1665 = vpop.f32.mrb[0].mxu0
        %v1666 = vadd.f32 0.0, %v1665
        %v1667 = vpop.f32.mrb[0].mxu0
        %1668 = vdwg.mxu0
        %v1685 = vunpack.c.l.b16 %v1483
        %v1686 = vunpack.c.l.b16 %v1484
        %v1687 = vunpack.c.l.b16 %v1485
        %v1688 = vunpack.c.l.b16 %v1486
        %v1689 = vunpack.c.l.b16 %v1487
        %v1690 = vunpack.c.l.b16 %v1488
        %v1691 = vunpack.c.l.b16 %v1489
        %v1692 = vunpack.c.l.b16 %v1490
        %v1693 = vunpack.c.l.b16 %v1491
        %v1694 = vunpack.c.l.b16 %v1492
        %v1695 = vunpack.c.l.b16 %v1493
        %v1696 = vunpack.c.l.b16 %v1494
        %v1697 = vunpack.c.l.b16 %v1495
        %v1698 = vunpack.c.l.b16 %v1496
        %v1699 = vunpack.c.l.b16 %v1497
        %v1700 = vunpack.c.l.b16 %v1498
        %v1701 = vpack.c.b16 %v1686, %v1685
        %v1702 = vpack.c.b16 %v1688, %v1687
        %v1703 = vpack.c.b16 %v1690, %v1689
        %v1704 = vpack.c.b16 %v1692, %v1691
        %v1705 = vpack.c.b16 %v1694, %v1693
        %v1706 = vpack.c.b16 %v1696, %v1695
        %v1707 = vpack.c.b16 %v1698, %v1697
        %v1708 = vpack.c.b16 %v1700, %v1699
        %1717 = vmatprep.subr.bf16.mxu0 0
        %1718 = vmatpush1.bf16.msra.mxu0 %v1701
        %1719 = vmatprep.subr.bf16.mxu0 0
        %1720 = vmatpush1.bf16.msra.mxu0 %v1702
        %1721 = vmatprep.subr.bf16.mxu0 0
        %1722 = vmatpush1.bf16.msra.mxu0 %v1703
        %1723 = vmatprep.subr.bf16.mxu0 0
        %1724 = vmatpush1.bf16.msra.mxu0 %v1704
        %1725 = vmatprep.subr.bf16.mxu0 0
        %1726 = vmatpush1.bf16.msra.mxu0 %v1705
        %1727 = vmatprep.subr.bf16.mxu0 0
        %1728 = vmatpush1.bf16.msra.mxu0 %v1706
        %1729 = vmatprep.subr.bf16.mxu0 0
        %1730 = vmatpush1.bf16.msra.mxu0 %v1707
        %1731 = vmatprep.subr.bf16.mxu0 0
        %1732 = vmatpush1.bf16.msra.mxu0 %v1708
        %1733 = vmatprep.subr.bf16.mxu0 0
        %1734 = vmatpush1.bf16.msra.mxu0 0
        %1735 = vmatprep.subr.bf16.mxu0 0
        %1736 = vmatpush1.bf16.msra.mxu0 0
        %1737 = vmatprep.subr.bf16.mxu0 0
        %1738 = vmatpush1.bf16.msra.mxu0 0
        %1739 = vmatprep.subr.bf16.mxu0 0
        %1740 = vmatpush1.bf16.msra.mxu0 0
        %1741 = vmatprep.subr.bf16.mxu0 0
        %1742 = vmatpush1.bf16.msra.mxu0 0
        %1743 = vmatprep.subr.bf16.mxu0 0
        %1744 = vmatpush1.bf16.msra.mxu0 0
        %1745 = vmatprep.subr.bf16.mxu0 0
        %1746 = vmatpush1.bf16.msra.mxu0 0
        %1747 = vmatprep.subr.bf16.mxu0 0
        %1748 = vmatpush1.bf16.msra.mxu0 0
        %1749 = vmatprep.mubr.bf16.mxu0 0
        %1750 = vmatmul.mubr.bf16.gmra.mrb[0].mxu0 %v1475
        %v1751 = vpop.f32.mrb[0].mxu0
        %v1752 = vadd.f32 %v1607, %v1751
        %v1753 = vpop.f32.mrb[0].mxu0
        %v1754 = vpop.f32.mrb[0].mxu0
        %v1755 = vadd.f32 %v1610, %v1754
        %v1756 = vpop.f32.mrb[0].mxu0
        %1757 = vmatprep.mubr.bf16.mxu0 0
        %1758 = vmatmul.mubr.bf16.gmra.mrb[0].mxu0 %v1476
        %v1759 = vpop.f32.mrb[0].mxu0
        %v1760 = vadd.f32 %v1615, %v1759
        %v1761 = vpop.f32.mrb[0].mxu0
        %v1762 = vpop.f32.mrb[0].mxu0
        %v1763 = vadd.f32 %v1618, %v1762
        %v1764 = vpop.f32.mrb[0].mxu0
        %1765 = vmatprep.mubr.bf16.mxu0 0
        %1766 = vmatmul.mubr.bf16.gmra.mrb[0].mxu0 %v1477
        %v1767 = vpop.f32.mrb[0].mxu0
        %v1768 = vadd.f32 %v1623, %v1767
        %v1769 = vpop.f32.mrb[0].mxu0
        %v1770 = vpop.f32.mrb[0].mxu0
        %v1771 = vadd.f32 %v1626, %v1770
        %v1772 = vpop.f32.mrb[0].mxu0
        %1773 = vmatprep.mubr.bf16.mxu0 0
        %1774 = vmatmul.mubr.bf16.gmra.mrb[0].mxu0 %v1478
        %v1775 = vpop.f32.mrb[0].mxu0
        %v1776 = vadd.f32 %v1631, %v1775
        %v1777 = vpop.f32.mrb[0].mxu0
        %v1778 = vpop.f32.mrb[0].mxu0
        %v1779 = vadd.f32 %v1634, %v1778
        %v1780 = vpop.f32.mrb[0].mxu0
        %1781 = vmatprep.mubr.bf16.mxu0 0
        %1782 = vmatmul.mubr.bf16.gmra.mrb[0].mxu0 %v1479
        %v1783 = vpop.f32.mrb[0].mxu0
        %v1784 = vadd.f32 %v1639, %v1783
        %v1785 = vpop.f32.mrb[0].mxu0
        %v1786 = vpop.f32.mrb[0].mxu0
        %v1787 = vadd.f32 %v1642, %v1786
        %v1788 = vpop.f32.mrb[0].mxu0
        %1789 = vmatprep.mubr.bf16.mxu0 0
        %1790 = vmatmul.mubr.bf16.gmra.mrb[0].mxu0 %v1480
        %v1791 = vpop.f32.mrb[0].mxu0
        %v1792 = vadd.f32 %v1647, %v1791
        %v1793 = vpop.f32.mrb[0].mxu0
        %v1794 = vpop.f32.mrb[0].mxu0
        %v1795 = vadd.f32 %v1650, %v1794
        %v1796 = vpop.f32.mrb[0].mxu0
        %1797 = vmatprep.mubr.bf16.mxu0 0
        %1798 = vmatmul.mubr.bf16.gmra.mrb[0].mxu0 %v1481
        %v1799 = vpop.f32.mrb[0].mxu0
        %v1800 = vadd.f32 %v1655, %v1799
        %v1801 = vpop.f32.mrb[0].mxu0
        %v1802 = vpop.f32.mrb[0].mxu0
        %v1803 = vadd.f32 %v1658, %v1802
        %v1804 = vpop.f32.mrb[0].mxu0
        %1805 = vmatprep.mubr.bf16.mxu0 0
        %1806 = vmatmul.mubr.bf16.gmra.mrb[0].mxu0 %v1482
        %v1807 = vpop.f32.mrb[0].mxu0
        %v1808 = vadd.f32 %v1663, %v1807
        %v1809 = vpop.f32.mrb[0].mxu0
        %v1810 = vpop.f32.mrb[0].mxu0
        %v1811 = vadd.f32 %v1666, %v1810
        %v1812 = vpop.f32.mrb[0].mxu0
        %1813 = vdwg.mxu0
        %v1814 = vrot.slane %v1411, 1
        %v1815 = vrot.slane %v1412, 1
        %v1816 = vrot.slane %v1413, 1
        %v1817 = vrot.slane %v1414, 1
        %v1818 = vrot.slane %v1415, 1
        %v1819 = vrot.slane %v1416, 1
        %v1820 = vrot.slane %v1417, 1
        %v1821 = vrot.slane %v1418, 1
        %v1822 = vrot.slane %v1419, 1
        %v1823 = vrot.slane %v1420, 1
        %v1824 = vrot.slane %v1421, 1
        %v1825 = vrot.slane %v1422, 1
        %v1826 = vrot.slane %v1423, 1
        %v1827 = vrot.slane %v1424, 1
        %v1828 = vrot.slane %v1425, 1
        %v1829 = vrot.slane %v1426, 1
        %v1830 = vsel %vm1129, %v1828, %v1829
        %v1831 = vsel %vm1129, %v1827, %v1828
        %v1832 = vsel %vm1129, %v1826, %v1827
        %v1833 = vsel %vm1129, %v1825, %v1826
        %v1834 = vsel %vm1129, %v1824, %v1825
        %v1835 = vsel %vm1129, %v1823, %v1824
        %v1836 = vsel %vm1129, %v1822, %v1823
        %v1837 = vsel %vm1129, %v1821, %v1822
        %v1838 = vsel %vm1129, %v1820, %v1821
        %v1839 = vsel %vm1129, %v1819, %v1820
        %v1840 = vsel %vm1129, %v1818, %v1819
        %v1841 = vsel %vm1129, %v1817, %v1818
        %v1842 = vsel %vm1129, %v1816, %v1817
        %v1843 = vsel %vm1129, %v1815, %v1816
        %v1844 = vsel %vm1129, %v1814, %v1815
        %v1845 = vsel %vm1129, %v1829, %v1814
        %v1846 = vsel %vm1178, %v1844, 0.0
        %v1847 = vsel %vm1179, %v1843, 0.0
        %v1848 = vsel %vm1180, %v1842, 0.0
        %v1849 = vsel %vm1181, %v1841, 0.0
        %v1850 = vsel %vm1182, %v1840, 0.0
        %v1851 = vsel %vm1183, %v1839, 0.0
        %v1852 = vsel %vm1184, %v1838, 0.0
        %v1853 = vsel %vm1185, %v1837, 0.0
        %v1854 = vsel %vm1186, %v1836, 0.0
        %v1855 = vsel %vm1187, %v1835, 0.0
        %v1856 = vsel %vm1188, %v1834, 0.0
        %v1857 = vsel %vm1189, %v1833, 0.0
        %v1858 = vsel %vm1190, %v1832, 0.0
        %v1859 = vsel %vm1191, %v1831, 0.0
        %v1860 = vsel %vm1192, %v1830, 0.0
        %v1861 = vsel %vm1193, %v1845, 0.0
        %v1862 = vpack.c.bf16 %v1847, %v1846
        %v1863 = vpack.c.bf16 %v1849, %v1848
        %v1864 = vpack.c.bf16 %v1851, %v1850
        %v1865 = vpack.c.bf16 %v1853, %v1852
        %v1866 = vpack.c.bf16 %v1855, %v1854
        %v1867 = vpack.c.bf16 %v1857, %v1856
        %v1868 = vpack.c.bf16 %v1859, %v1858
        %v1869 = vpack.c.bf16 %v1861, %v1860
        %s1870 = scalar_lea.vmem %s3, 128
        %v1871 = vld [vmem:[%s1870] sm:$0xf]
        %v1872 = vld [vmem:[%s1870 + $0x4] sm:$0xf]
        %v1873 = vld [vmem:[%s1870 + $0x8] sm:$0xf]
        %v1874 = vld [vmem:[%s1870 + $0xc] sm:$0xf]
        %v1875 = vld [vmem:[%s1870 + $0x10] sm:$0xf]
        %v1876 = vld [vmem:[%s1870 + $0x14] sm:$0xf]
        %v1877 = vld [vmem:[%s1870 + $0x18] sm:$0xf]
        %v1878 = vld [vmem:[%s1870 + $0x1c] sm:$0xf]
        %v1879 = vld [vmem:[%s1870 + $0x20] sm:$0xf]
        %v1880 = vld [vmem:[%s1870 + $0x24] sm:$0xf]
        %v1881 = vld [vmem:[%s1870 + $0x28] sm:$0xf]
        %v1882 = vld [vmem:[%s1870 + $0x2c] sm:$0xf]
        %v1883 = vld [vmem:[%s1870 + $0x30] sm:$0xf]
        %v1884 = vld [vmem:[%s1870 + $0x34] sm:$0xf]
        %v1885 = vld [vmem:[%s1870 + $0x38] sm:$0xf]
        %v1886 = vld [vmem:[%s1870 + $0x3c] sm:$0xf]
        %v1903 = vunpack.c.l.b16 %v1871
        %v1904 = vunpack.c.l.b16 %v1872
        %v1905 = vunpack.c.l.b16 %v1873
        %v1906 = vunpack.c.l.b16 %v1874
        %v1907 = vunpack.c.l.b16 %v1875
        %v1908 = vunpack.c.l.b16 %v1876
        %v1909 = vunpack.c.l.b16 %v1877
        %v1910 = vunpack.c.l.b16 %v1878
        %v1911 = vunpack.c.l.b16 %v1879
        %v1912 = vunpack.c.l.b16 %v1880
        %v1913 = vunpack.c.l.b16 %v1881
        %v1914 = vunpack.c.l.b16 %v1882
        %v1915 = vunpack.c.l.b16 %v1883
        %v1916 = vunpack.c.l.b16 %v1884
        %v1917 = vunpack.c.l.b16 %v1885
        %v1918 = vunpack.c.l.b16 %v1886
        %v1919 = vpack.c.b16 %v1904, %v1903
        %v1920 = vpack.c.b16 %v1906, %v1905
        %v1921 = vpack.c.b16 %v1908, %v1907
        %v1922 = vpack.c.b16 %v1910, %v1909
        %v1923 = vpack.c.b16 %v1912, %v1911
        %v1924 = vpack.c.b16 %v1914, %v1913
        %v1925 = vpack.c.b16 %v1916, %v1915
        %v1926 = vpack.c.b16 %v1918, %v1917
        %1935 = vmatprep.subr.bf16.mxu0 0
        %1936 = vmatpush1.bf16.msra.mxu0 %v1919
        %1937 = vmatprep.subr.bf16.mxu0 0
        %1938 = vmatpush1.bf16.msra.mxu0 %v1920
        %1939 = vmatprep.subr.bf16.mxu0 0
        %1940 = vmatpush1.bf16.msra.mxu0 %v1921
        %1941 = vmatprep.subr.bf16.mxu0 0
        %1942 = vmatpush1.bf16.msra.mxu0 %v1922
        %1943 = vmatprep.subr.bf16.mxu0 0
        %1944 = vmatpush1.bf16.msra.mxu0 %v1923
        %1945 = vmatprep.subr.bf16.mxu0 0
        %1946 = vmatpush1.bf16.msra.mxu0 %v1924
        %1947 = vmatprep.subr.bf16.mxu0 0
        %1948 = vmatpush1.bf16.msra.mxu0 %v1925
        %1949 = vmatprep.subr.bf16.mxu0 0
        %1950 = vmatpush1.bf16.msra.mxu0 %v1926
        %1951 = vmatprep.subr.bf16.mxu0 0
        %1952 = vmatpush1.bf16.msra.mxu0 0
        %1953 = vmatprep.subr.bf16.mxu0 0
        %1954 = vmatpush1.bf16.msra.mxu0 0
        %1955 = vmatprep.subr.bf16.mxu0 0
        %1956 = vmatpush1.bf16.msra.mxu0 0
        %1957 = vmatprep.subr.bf16.mxu0 0
        %1958 = vmatpush1.bf16.msra.mxu0 0
        %1959 = vmatprep.subr.bf16.mxu0 0
        %1960 = vmatpush1.bf16.msra.mxu0 0
        %1961 = vmatprep.subr.bf16.mxu0 0
        %1962 = vmatpush1.bf16.msra.mxu0 0
        %1963 = vmatprep.subr.bf16.mxu0 0
        %1964 = vmatpush1.bf16.msra.mxu0 0
        %1965 = vmatprep.subr.bf16.mxu0 0
        %1966 = vmatpush1.bf16.msra.mxu0 0
        %1967 = vmatprep.mubr.bf16.mxu0 0
        %1968 = vmatmul.mubr.bf16.gmra.mrb[0].mxu0 %v1862
        %v1969 = vpop.f32.mrb[0].mxu0
        %v1970 = vadd.f32 0.0, %v1969
        %v1971 = vpop.f32.mrb[0].mxu0
        %v1972 = vpop.f32.mrb[0].mxu0
        %v1973 = vadd.f32 0.0, %v1972
        %v1974 = vpop.f32.mrb[0].mxu0
        %1975 = vmatprep.mubr.bf16.mxu0 0
        %1976 = vmatmul.mubr.bf16.gmra.mrb[0].mxu0 %v1863
        %v1977 = vpop.f32.mrb[0].mxu0
        %v1978 = vadd.f32 0.0, %v1977
        %v1979 = vpop.f32.mrb[0].mxu0
        %v1980 = vpop.f32.mrb[0].mxu0
        %v1981 = vadd.f32 0.0, %v1980
        %v1982 = vpop.f32.mrb[0].mxu0
        %1983 = vmatprep.mubr.bf16.mxu0 0
        %1984 = vmatmul.mubr.bf16.gmra.mrb[0].mxu0 %v1864
        %v1985 = vpop.f32.mrb[0].mxu0
        %v1986 = vadd.f32 0.0, %v1985
        %v1987 = vpop.f32.mrb[0].mxu0
        %v1988 = vpop.f32.mrb[0].mxu0
        %v1989 = vadd.f32 0.0, %v1988
        %v1990 = vpop.f32.mrb[0].mxu0
        %1991 = vmatprep.mubr.bf16.mxu0 0
        %1992 = vmatmul.mubr.bf16.gmra.mrb[0].mxu0 %v1865
        %v1993 = vpop.f32.mrb[0].mxu0
        %v1994 = vadd.f32 0.0, %v1993
        %v1995 = vpop.f32.mrb[0].mxu0
        %v1996 = vpop.f32.mrb[0].mxu0
        %v1997 = vadd.f32 0.0, %v1996
        %v1998 = vpop.f32.mrb[0].mxu0
        %1999 = vmatprep.mubr.bf16.mxu0 0
        %2000 = vmatmul.mubr.bf16.gmra.mrb[0].mxu0 %v1866
        %v2001 = vpop.f32.mrb[0].mxu0
        %v2002 = vadd.f32 0.0, %v2001
        %v2003 = vpop.f32.mrb[0].mxu0
        %v2004 = vpop.f32.mrb[0].mxu0
        %v2005 = vadd.f32 0.0, %v2004
        %v2006 = vpop.f32.mrb[0].mxu0
        %2007 = vmatprep.mubr.bf16.mxu0 0
        %2008 = vmatmul.mubr.bf16.gmra.mrb[0].mxu0 %v1867
        %v2009 = vpop.f32.mrb[0].mxu0
        %v2010 = vadd.f32 0.0, %v2009
        %v2011 = vpop.f32.mrb[0].mxu0
        %v2012 = vpop.f32.mrb[0].mxu0
        %v2013 = vadd.f32 0.0, %v2012
        %v2014 = vpop.f32.mrb[0].mxu0
        %2015 = vmatprep.mubr.bf16.mxu0 0
        %2016 = vmatmul.mubr.bf16.gmra.mrb[0].mxu0 %v1868
        %v2017 = vpop.f32.mrb[0].mxu0
        %v2018 = vadd.f32 0.0, %v2017
        %v2019 = vpop.f32.mrb[0].mxu0
        %v2020 = vpop.f32.mrb[0].mxu0
        %v2021 = vadd.f32 0.0, %v2020
        %v2022 = vpop.f32.mrb[0].mxu0
        %2023 = vmatprep.mubr.bf16.mxu0 0
        %2024 = vmatmul.mubr.bf16.gmra.mrb[0].mxu0 %v1869
        %v2025 = vpop.f32.mrb[0].mxu0
        %v2026 = vadd.f32 0.0, %v2025
        %v2027 = vpop.f32.mrb[0].mxu0
        %v2028 = vpop.f32.mrb[0].mxu0
        %v2029 = vadd.f32 0.0, %v2028
        %v2030 = vpop.f32.mrb[0].mxu0
        %2031 = vdwg.mxu0
        %v2032 = vadd.f32 %v1752, %v1970
        %v2033 = vadd.f32 %v1755, %v1973
        %v2034 = vadd.f32 %v1760, %v1978
        %v2035 = vadd.f32 %v1763, %v1981
        %v2036 = vadd.f32 %v1768, %v1986
        %v2037 = vadd.f32 %v1771, %v1989
        %v2038 = vadd.f32 %v1776, %v1994
        %v2039 = vadd.f32 %v1779, %v1997
        %v2040 = vadd.f32 %v1784, %v2002
        %v2041 = vadd.f32 %v1787, %v2005
        %v2042 = vadd.f32 %v1792, %v2010
        %v2043 = vadd.f32 %v1795, %v2013
        %v2044 = vadd.f32 %v1800, %v2018
        %v2045 = vadd.f32 %v1803, %v2021
        %v2046 = vadd.f32 %v1808, %v2026
        %v2047 = vadd.f32 %v1811, %v2029
        %v2048 = vld [vmem:[%s4] sm:$0xff]
        %v2049 = vld [vmem:[%s4 + $0x8] sm:$0xff]
        %v2050 = vld [vmem:[%s4 + $0x10] sm:$0xff]
        %v2051 = vld [vmem:[%s4 + $0x18] sm:$0xff]
        %v2052 = vld [vmem:[%s4 + $0x20] sm:$0xff]
        %v2053 = vld [vmem:[%s4 + $0x28] sm:$0xff]
        %v2054 = vld [vmem:[%s4 + $0x30] sm:$0xff]
        %v2055 = vld [vmem:[%s4 + $0x38] sm:$0xff]
        %v2056 = vld [vmem:[%s5] sm:$0x1]
        %v2058 = vlaneseq
        %v2059 = vshrl.u32 %v2058, 7
        %v2060 = vsub.s32 0, %v2059
        %v2061 = vrot.slane %v2056, %v2060
        %2063 = vmatprep.subr.mxu0 0.0
        %2064 = vmatpush1.msra.mxu0 %v2032
        %2065 = vmatprep.subr.mxu0 0.0
        %2066 = vmatpush1.msra.mxu0 %v2033
        %2067 = vmatprep.subr.mxu0 0.0
        %2068 = vmatpush1.msra.mxu0 %v2034
        %2069 = vmatprep.subr.mxu0 0.0
        %2070 = vmatpush1.msra.mxu0 %v2035
        %2071 = vmatprep.subr.mxu0 0.0
        %2072 = vmatpush1.msra.mxu0 %v2036
        %2073 = vmatprep.subr.mxu0 0.0
        %2074 = vmatpush1.msra.mxu0 %v2037
        %2075 = vmatprep.subr.mxu0 0.0
        %2076 = vmatpush1.msra.mxu0 %v2038
        %2077 = vmatprep.subr.mxu0 0.0
        %2078 = vmatpush1.msra.mxu0 %v2039
        %2079 = vmatprep.subr.mxu0 0.0
        %2080 = vmatpush1.msra.mxu0 %v2040
        %2081 = vmatprep.subr.mxu0 0.0
        %2082 = vmatpush1.msra.mxu0 %v2041
        %2083 = vmatprep.subr.mxu0 0.0
        %2084 = vmatpush1.msra.mxu0 %v2042
        %2085 = vmatprep.subr.mxu0 0.0
        %2086 = vmatpush1.msra.mxu0 %v2043
        %2087 = vmatprep.subr.mxu0 0.0
        %2088 = vmatpush1.msra.mxu0 %v2044
        %2089 = vmatprep.subr.mxu0 0.0
        %2090 = vmatpush1.msra.mxu0 %v2045
        %2091 = vmatprep.subr.mxu0 0.0
        %2092 = vmatpush1.msra.mxu0 %v2046
        %2093 = vmatprep.subr.mxu0 0.0
        %2094 = vmatpush1.msra.mxu0 %v2047
        %2095 = vmatprep.subr.mxu0 0.0
        %2096 = vmatpush1.msra.mxu0 0.0
        %2097 = vmatprep.subr.mxu0 0.0
        %2098 = vmatpush1.msra.mxu0 0.0
        %2099 = vmatprep.subr.mxu0 0.0
        %2100 = vmatpush1.msra.mxu0 0.0
        %2101 = vmatprep.subr.mxu0 0.0
        %2102 = vmatpush1.msra.mxu0 0.0
        %2103 = vmatprep.subr.mxu0 0.0
        %2104 = vmatpush1.msra.mxu0 0.0
        %2105 = vmatprep.subr.mxu0 0.0
        %2106 = vmatpush1.msra.mxu0 0.0
        %2107 = vmatprep.subr.mxu0 0.0
        %2108 = vmatpush1.msra.mxu0 0.0
        %2109 = vmatprep.subr.mxu0 0.0
        %2110 = vmatpush1.msra.mxu0 0.0
        %2111 = vmatprep.subr.mxu0 0.0
        %2112 = vmatpush1.msra.mxu0 0.0
        %2113 = vmatprep.subr.mxu0 0.0
        %2114 = vmatpush1.msra.mxu0 0.0
        %2115 = vmatprep.subr.mxu0 0.0
        %2116 = vmatpush1.msra.mxu0 0.0
        %2117 = vmatprep.subr.mxu0 0.0
        %2118 = vmatpush1.msra.mxu0 0.0
        %2119 = vmatprep.subr.mxu0 0.0
        %2120 = vmatpush1.msra.mxu0 0.0
        %2121 = vmatprep.subr.mxu0 0.0
        %2122 = vmatpush1.msra.mxu0 0.0
        %2123 = vmatprep.subr.mxu0 0.0
        %2124 = vmatpush1.msra.mxu0 0.0
        %2125 = vmatprep.subr.mxu0 0.0
        %2126 = vmatpush1.msra.mxu0 0.0
        %2127 = vmatprep.mubr.f32.mxu0 0.0
        %2128 = vmatmul.mubr.f32.gmra.mrb[0].mxu0 %v2048
        %v2129 = vpop.f32.mrb[0].mxu0
        %v2130 = vadd.f32 %v2061, %v2129
        %v2131 = vpop.f32.mrb[0].mxu0
        %2132 = vmatprep.mubr.f32.mxu0 0.0
        %2133 = vmatmul.mubr.f32.gmra.mrb[0].mxu0 %v2049
        %v2134 = vpop.f32.mrb[0].mxu0
        %v2135 = vadd.f32 %v2061, %v2134
        %v2136 = vpop.f32.mrb[0].mxu0
        %2137 = vmatprep.mubr.f32.mxu0 0.0
        %2138 = vmatmul.mubr.f32.gmra.mrb[0].mxu0 %v2050
        %v2139 = vpop.f32.mrb[0].mxu0
        %v2140 = vadd.f32 %v2061, %v2139
        %v2141 = vpop.f32.mrb[0].mxu0
        %2142 = vmatprep.mubr.f32.mxu0 0.0
        %2143 = vmatmul.mubr.f32.gmra.mrb[0].mxu0 %v2051
        %v2144 = vpop.f32.mrb[0].mxu0
        %v2145 = vadd.f32 %v2061, %v2144
        %v2146 = vpop.f32.mrb[0].mxu0
        %2147 = vmatprep.mubr.f32.mxu0 0.0
        %2148 = vmatmul.mubr.f32.gmra.mrb[0].mxu0 %v2052
        %v2149 = vpop.f32.mrb[0].mxu0
        %v2150 = vadd.f32 %v2061, %v2149
        %v2151 = vpop.f32.mrb[0].mxu0
        %2152 = vmatprep.mubr.f32.mxu0 0.0
        %2153 = vmatmul.mubr.f32.gmra.mrb[0].mxu0 %v2053
        %v2154 = vpop.f32.mrb[0].mxu0
        %v2155 = vadd.f32 %v2061, %v2154
        %v2156 = vpop.f32.mrb[0].mxu0
        %2157 = vmatprep.mubr.f32.mxu0 0.0
        %2158 = vmatmul.mubr.f32.gmra.mrb[0].mxu0 %v2054
        %v2159 = vpop.f32.mrb[0].mxu0
        %v2160 = vadd.f32 %v2061, %v2159
        %v2161 = vpop.f32.mrb[0].mxu0
        %2162 = vmatprep.mubr.f32.mxu0 0.0
        %2163 = vmatmul.mubr.f32.gmra.mrb[0].mxu0 %v2055
        %v2164 = vpop.f32.mrb[0].mxu0
        %v2165 = vadd.f32 %v2061, %v2164
        %v2166 = vpop.f32.mrb[0].mxu0
        %2167 = vdwg.mxu0
        %vm2168 = vcmp.lt.s32.totalorder %v484, 0
        %v2169 = vsub.s32 0, %v484
        %v2170 = vsel %vm2168, %v2169, %v484
        %v2171 = vshrl.u32 %v2170, 3
        %v2172 = vand.u32 %v2170, 7
        %v2173 = vsub.s32 0, %v2172
        %v2174 = vsel %vm2168, %v2173, %v2172
        %vm2175 = vcmp.lt.s32.totalorder %v485, 0
        %v2176 = vsub.s32 0, %v485
        %v2177 = vsel %vm2175, %v2176, %v485
        %v2178 = vshrl.u32 %v2177, 3
        %v2179 = vand.u32 %v2177, 7
        %v2180 = vsub.s32 0, %v2179
        %v2181 = vsel %vm2175, %v2180, %v2179
        %vm2182 = vcmp.lt.s32.totalorder %v486, 0
        %v2183 = vsub.s32 0, %v486
        %v2184 = vsel %vm2182, %v2183, %v486
        %v2185 = vshrl.u32 %v2184, 3
        %v2186 = vand.u32 %v2184, 7
        %v2187 = vsub.s32 0, %v2186
        %v2188 = vsel %vm2182, %v2187, %v2186
        %vm2189 = vcmp.lt.s32.totalorder %v487, 0
        %v2190 = vsub.s32 0, %v487
        %v2191 = vsel %vm2189, %v2190, %v487
        %v2192 = vshrl.u32 %v2191, 3
        %v2193 = vand.u32 %v2191, 7
        %v2194 = vsub.s32 0, %v2193
        %v2195 = vsel %vm2189, %v2194, %v2193
        %vm2196 = vcmp.lt.s32.totalorder %v488, 0
        %v2197 = vsub.s32 0, %v488
        %v2198 = vsel %vm2196, %v2197, %v488
        %v2199 = vshrl.u32 %v2198, 3
        %v2200 = vand.u32 %v2198, 7
        %v2201 = vsub.s32 0, %v2200
        %v2202 = vsel %vm2196, %v2201, %v2200
        %vm2203 = vcmp.lt.s32.totalorder %v489, 0
        %v2204 = vsub.s32 0, %v489
        %v2205 = vsel %vm2203, %v2204, %v489
        %v2206 = vshrl.u32 %v2205, 3
        %v2207 = vand.u32 %v2205, 7
        %v2208 = vsub.s32 0, %v2207
        %v2209 = vsel %vm2203, %v2208, %v2207
        %vm2210 = vcmp.lt.s32.totalorder %v490, 0
        %v2211 = vsub.s32 0, %v490
        %v2212 = vsel %vm2210, %v2211, %v490
        %v2213 = vshrl.u32 %v2212, 3
        %v2214 = vand.u32 %v2212, 7
        %v2215 = vsub.s32 0, %v2214
        %v2216 = vsel %vm2210, %v2215, %v2214
        %vm2217 = vcmp.lt.s32.totalorder %v491, 0
        %v2218 = vsub.s32 0, %v491
        %v2219 = vsel %vm2217, %v2218, %v491
        %v2220 = vshrl.u32 %v2219, 3
        %v2221 = vand.u32 %v2219, 7
        %v2222 = vsub.s32 0, %v2221
        %v2223 = vsel %vm2217, %v2222, %v2221
        %vm2224 = vcmp.ne.s32.totalorder %v2174, 0
        %vm2225 = vcmp.ne.s32.totalorder %v2181, 0
        %vm2226 = vcmp.ne.s32.totalorder %v2188, 0
        %vm2227 = vcmp.ne.s32.totalorder %v2195, 0
        %vm2228 = vcmp.ne.s32.totalorder %v2202, 0
        %vm2229 = vcmp.ne.s32.totalorder %v2209, 0
        %vm2230 = vcmp.ne.s32.totalorder %v2216, 0
        %vm2231 = vcmp.ne.s32.totalorder %v2223, 0
        %vm2232 = vcmp.lt.s32.totalorder %v2174, 0
        %vm2233 = vcmp.lt.s32.totalorder %v2181, 0
        %vm2234 = vcmp.lt.s32.totalorder %v2188, 0
        %vm2235 = vcmp.lt.s32.totalorder %v2195, 0
        %vm2236 = vcmp.lt.s32.totalorder %v2202, 0
        %vm2237 = vcmp.lt.s32.totalorder %v2209, 0
        %vm2238 = vcmp.lt.s32.totalorder %v2216, 0
        %vm2239 = vcmp.lt.s32.totalorder %v2223, 0
        %vm2240 = vmand %vm2232, %vm2224
        %vm2241 = vmand %vm2233, %vm2225
        %vm2242 = vmand %vm2234, %vm2226
        %vm2243 = vmand %vm2235, %vm2227
        %vm2244 = vmand %vm2236, %vm2228
        %vm2245 = vmand %vm2237, %vm2229
        %vm2246 = vmand %vm2238, %vm2230
        %vm2247 = vmand %vm2239, %vm2231
        %v2248 = vadd.s32 %v2174, 8
        %v2249 = vadd.s32 %v2181, 8
        %v2250 = vadd.s32 %v2188, 8
        %v2251 = vadd.s32 %v2195, 8
        %v2252 = vadd.s32 %v2202, 8
        %v2253 = vadd.s32 %v2209, 8
        %v2254 = vadd.s32 %v2216, 8
        %v2255 = vadd.s32 %v2223, 8
        %v2256 = vsel %vm2240, %v2248, %v2174
        %v2257 = vsel %vm2241, %v2249, %v2181
        %v2258 = vsel %vm2242, %v2250, %v2188
        %v2259 = vsel %vm2243, %v2251, %v2195
        %v2260 = vsel %vm2244, %v2252, %v2202
        %v2261 = vsel %vm2245, %v2253, %v2209
        %v2262 = vsel %vm2246, %v2254, %v2216
        %v2263 = vsel %vm2247, %v2255, %v2223
        %v2264 = vrot.slane %v2130, 7
        %v2265 = vrot.slane %v2135, 7
        %v2266 = vrot.slane %v2140, 7
        %v2267 = vrot.slane %v2145, 7
        %v2268 = vrot.slane %v2150, 7
        %v2269 = vrot.slane %v2155, 7
        %v2270 = vrot.slane %v2160, 7
        %v2271 = vrot.slane %v2165, 7
        %v2272 = vsel %vm708, %v2270, %v2271
        %v2273 = vsel %vm708, %v2269, %v2270
        %v2274 = vsel %vm708, %v2268, %v2269
        %v2275 = vsel %vm708, %v2267, %v2268
        %v2276 = vsel %vm708, %v2266, %v2267
        %v2277 = vsel %vm708, %v2265, %v2266
        %v2278 = vsel %vm708, %v2264, %v2265
        %v2279 = vsel %vm708, %v2271, %v2264
        %vm2280 = vcmp.ge.s32.totalorder %v2256, 1
        %vm2281 = vcmp.ge.s32.totalorder %v2257, 1
        %vm2282 = vcmp.ge.s32.totalorder %v2258, 1
        %vm2283 = vcmp.ge.s32.totalorder %v2259, 1
        %vm2284 = vcmp.ge.s32.totalorder %v2260, 1
        %vm2285 = vcmp.ge.s32.totalorder %v2261, 1
        %vm2286 = vcmp.ge.s32.totalorder %v2262, 1
        %vm2287 = vcmp.ge.s32.totalorder %v2263, 1
        %v2288 = vsel %vm2280, 1, 0
        %v2289 = vsel %vm2281, 1, 0
        %v2290 = vsel %vm2282, 1, 0
        %v2291 = vsel %vm2283, 1, 0
        %v2292 = vsel %vm2284, 1, 0
        %v2293 = vsel %vm2285, 1, 0
        %v2294 = vsel %vm2286, 1, 0
        %v2295 = vsel %vm2287, 1, 0
        %vm2296 = vcmp.eq.s32.totalorder %v2288, 1
        %vm2297 = vcmp.eq.s32.totalorder %v2289, 1
        %vm2298 = vcmp.eq.s32.totalorder %v2290, 1
        %vm2299 = vcmp.eq.s32.totalorder %v2291, 1
        %vm2300 = vcmp.eq.s32.totalorder %v2292, 1
        %vm2301 = vcmp.eq.s32.totalorder %v2293, 1
        %vm2302 = vcmp.eq.s32.totalorder %v2294, 1
        %vm2303 = vcmp.eq.s32.totalorder %v2295, 1
        %v2304 = vsel %vm2296, %v2279, 0.0
        %v2305 = vsel %vm2297, %v2278, 0.0
        %v2306 = vsel %vm2298, %v2277, 0.0
        %v2307 = vsel %vm2299, %v2276, 0.0
        %v2308 = vsel %vm2300, %v2275, 0.0
        %v2309 = vsel %vm2301, %v2274, 0.0
        %v2310 = vsel %vm2302, %v2273, 0.0
        %v2311 = vsel %vm2303, %v2272, 0.0
        %v2312 = vpack.c.bf16 %v2305, %v2304
        %v2313 = vpack.c.bf16 %v2307, %v2306
        %v2314 = vpack.c.bf16 %v2309, %v2308
        %v2315 = vpack.c.bf16 %v2311, %v2310
        %v2316 = vld [vmem:[%s6] sm:$0xf]
        %v2317 = vld [vmem:[%s6 + $0x4] sm:$0xf]
        %v2318 = vld [vmem:[%s6 + $0x8] sm:$0xf]
        %v2319 = vld [vmem:[%s6 + $0xc] sm:$0xf]
        %v2320 = vld [vmem:[%s6 + $0x10] sm:$0xf]
        %v2321 = vld [vmem:[%s6 + $0x14] sm:$0xf]
        %v2322 = vld [vmem:[%s6 + $0x18] sm:$0xf]
        %v2323 = vld [vmem:[%s6 + $0x1c] sm:$0xf]
        %v2324 = vpack.c.bf16 %v2135, %v2130
        %v2325 = vpack.c.bf16 %v2145, %v2140
        %v2326 = vpack.c.bf16 %v2155, %v2150
        %v2327 = vpack.c.bf16 %v2165, %v2160
        %s2328 = scalar_lea.vmem %s6, 32
        %v2329 = vld [vmem:[%s2328] sm:$0xf]
        %v2330 = vld [vmem:[%s2328 + $0x4] sm:$0xf]
        %v2331 = vld [vmem:[%s2328 + $0x8] sm:$0xf]
        %v2332 = vld [vmem:[%s2328 + $0xc] sm:$0xf]
        %v2333 = vld [vmem:[%s2328 + $0x10] sm:$0xf]
        %v2334 = vld [vmem:[%s2328 + $0x14] sm:$0xf]
        %v2335 = vld [vmem:[%s2328 + $0x18] sm:$0xf]
        %v2336 = vld [vmem:[%s2328 + $0x1c] sm:$0xf]
        %v2345 = vunpack.c.l.b16 %v2329
        %v2346 = vunpack.c.l.b16 %v2330
        %v2347 = vunpack.c.l.b16 %v2331
        %v2348 = vunpack.c.l.b16 %v2332
        %v2349 = vunpack.c.l.b16 %v2333
        %v2350 = vunpack.c.l.b16 %v2334
        %v2351 = vunpack.c.l.b16 %v2335
        %v2352 = vunpack.c.l.b16 %v2336
        %v2353 = vpack.c.b16 %v2346, %v2345
        %v2354 = vpack.c.b16 %v2348, %v2347
        %v2355 = vpack.c.b16 %v2350, %v2349
        %v2356 = vpack.c.b16 %v2352, %v2351
        %v2362 = vsel %vm846, %v2324, 0
        %v2365 = vsel %vm846, %v2325, 0
        %v2368 = vsel %vm846, %v2326, 0
        %v2371 = vsel %vm846, %v2327, 0
        %2373 = vmatprep.subr.bf16.mxu0 0
        %2374 = vmatpush1.bf16.msra.mxu0 %v2353
        %2375 = vmatprep.subr.bf16.mxu0 0
        %2376 = vmatpush1.bf16.msra.mxu0 %v2354
        %2377 = vmatprep.subr.bf16.mxu0 0
        %2378 = vmatpush1.bf16.msra.mxu0 %v2355
        %2379 = vmatprep.subr.bf16.mxu0 0
        %2380 = vmatpush1.bf16.msra.mxu0 %v2356
        %2381 = vmatprep.subr.bf16.mxu0 0
        %2382 = vmatpush1.bf16.msra.mxu0 0
        %2383 = vmatprep.subr.bf16.mxu0 0
        %2384 = vmatpush1.bf16.msra.mxu0 0
        %2385 = vmatprep.subr.bf16.mxu0 0
        %2386 = vmatpush1.bf16.msra.mxu0 0
        %2387 = vmatprep.subr.bf16.mxu0 0
        %2388 = vmatpush1.bf16.msra.mxu0 0
        %2389 = vmatprep.subr.bf16.mxu0 0
        %2390 = vmatpush1.bf16.msra.mxu0 0
        %2391 = vmatprep.subr.bf16.mxu0 0
        %2392 = vmatpush1.bf16.msra.mxu0 0
        %2393 = vmatprep.subr.bf16.mxu0 0
        %2394 = vmatpush1.bf16.msra.mxu0 0
        %2395 = vmatprep.subr.bf16.mxu0 0
        %2396 = vmatpush1.bf16.msra.mxu0 0
        %2397 = vmatprep.subr.bf16.mxu0 0
        %2398 = vmatpush1.bf16.msra.mxu0 0
        %2399 = vmatprep.subr.bf16.mxu0 0
        %2400 = vmatpush1.bf16.msra.mxu0 0
        %2401 = vmatprep.subr.bf16.mxu0 0
        %2402 = vmatpush1.bf16.msra.mxu0 0
        %2403 = vmatprep.subr.bf16.mxu0 0
        %2404 = vmatpush1.bf16.msra.mxu0 0
        %2405 = vmatprep.mubr.bf16.mxu0 0
        %2406 = vmatmul.mubr.bf16.gmra.mrb[0].mxu0 %v2362
        %v2407 = vpop.f32.mrb[0].mxu0
        %v2408 = vadd.f32 0.0, %v2407
        %v2409 = vpop.f32.mrb[0].mxu0
        %v2410 = vpop.f32.mrb[0].mxu0
        %v2411 = vadd.f32 0.0, %v2410
        %v2412 = vpop.f32.mrb[0].mxu0
        %2413 = vmatprep.mubr.bf16.mxu0 0
        %2414 = vmatmul.mubr.bf16.gmra.mrb[0].mxu0 %v2365
        %v2415 = vpop.f32.mrb[0].mxu0
        %v2416 = vadd.f32 0.0, %v2415
        %v2417 = vpop.f32.mrb[0].mxu0
        %v2418 = vpop.f32.mrb[0].mxu0
        %v2419 = vadd.f32 0.0, %v2418
        %v2420 = vpop.f32.mrb[0].mxu0
        %2421 = vmatprep.mubr.bf16.mxu0 0
        %2422 = vmatmul.mubr.bf16.gmra.mrb[0].mxu0 %v2368
        %v2423 = vpop.f32.mrb[0].mxu0
        %v2424 = vadd.f32 0.0, %v2423
        %v2425 = vpop.f32.mrb[0].mxu0
        %v2426 = vpop.f32.mrb[0].mxu0
        %v2427 = vadd.f32 0.0, %v2426
        %v2428 = vpop.f32.mrb[0].mxu0
        %2429 = vmatprep.mubr.bf16.mxu0 0
        %2430 = vmatmul.mubr.bf16.gmra.mrb[0].mxu0 %v2371
        %v2431 = vpop.f32.mrb[0].mxu0
        %v2432 = vadd.f32 0.0, %v2431
        %v2433 = vpop.f32.mrb[0].mxu0
        %v2434 = vpop.f32.mrb[0].mxu0
        %v2435 = vadd.f32 0.0, %v2434
        %v2436 = vpop.f32.mrb[0].mxu0
        %2437 = vdwg.mxu0
        %v2446 = vunpack.c.l.b16 %v2316
        %v2447 = vunpack.c.l.b16 %v2317
        %v2448 = vunpack.c.l.b16 %v2318
        %v2449 = vunpack.c.l.b16 %v2319
        %v2450 = vunpack.c.l.b16 %v2320
        %v2451 = vunpack.c.l.b16 %v2321
        %v2452 = vunpack.c.l.b16 %v2322
        %v2453 = vunpack.c.l.b16 %v2323
        %v2454 = vpack.c.b16 %v2447, %v2446
        %v2455 = vpack.c.b16 %v2449, %v2448
        %v2456 = vpack.c.b16 %v2451, %v2450
        %v2457 = vpack.c.b16 %v2453, %v2452
        %v2463 = vsel %vm846, %v2312, 0
        %v2466 = vsel %vm846, %v2313, 0
        %v2469 = vsel %vm846, %v2314, 0
        %v2472 = vsel %vm846, %v2315, 0
        %2474 = vmatprep.subr.bf16.mxu0 0
        %2475 = vmatpush1.bf16.msra.mxu0 %v2454
        %2476 = vmatprep.subr.bf16.mxu0 0
        %2477 = vmatpush1.bf16.msra.mxu0 %v2455
        %2478 = vmatprep.subr.bf16.mxu0 0
        %2479 = vmatpush1.bf16.msra.mxu0 %v2456
        %2480 = vmatprep.subr.bf16.mxu0 0
        %2481 = vmatpush1.bf16.msra.mxu0 %v2457
        %2482 = vmatprep.subr.bf16.mxu0 0
        %2483 = vmatpush1.bf16.msra.mxu0 0
        %2484 = vmatprep.subr.bf16.mxu0 0
        %2485 = vmatpush1.bf16.msra.mxu0 0
        %2486 = vmatprep.subr.bf16.mxu0 0
        %2487 = vmatpush1.bf16.msra.mxu0 0
        %2488 = vmatprep.subr.bf16.mxu0 0
        %2489 = vmatpush1.bf16.msra.mxu0 0
        %2490 = vmatprep.subr.bf16.mxu0 0
        %2491 = vmatpush1.bf16.msra.mxu0 0
        %2492 = vmatprep.subr.bf16.mxu0 0
        %2493 = vmatpush1.bf16.msra.mxu0 0
        %2494 = vmatprep.subr.bf16.mxu0 0
        %2495 = vmatpush1.bf16.msra.mxu0 0
        %2496 = vmatprep.subr.bf16.mxu0 0
        %2497 = vmatpush1.bf16.msra.mxu0 0
        %2498 = vmatprep.subr.bf16.mxu0 0
        %2499 = vmatpush1.bf16.msra.mxu0 0
        %2500 = vmatprep.subr.bf16.mxu0 0
        %2501 = vmatpush1.bf16.msra.mxu0 0
        %2502 = vmatprep.subr.bf16.mxu0 0
        %2503 = vmatpush1.bf16.msra.mxu0 0
        %2504 = vmatprep.subr.bf16.mxu0 0
        %2505 = vmatpush1.bf16.msra.mxu0 0
        %2506 = vmatprep.mubr.bf16.mxu0 0
        %2507 = vmatmul.mubr.bf16.gmra.mrb[0].mxu0 %v2463
        %v2508 = vpop.f32.mrb[0].mxu0
        %v2509 = vadd.f32 %v2408, %v2508
        %v2510 = vpop.f32.mrb[0].mxu0
        %v2511 = vpop.f32.mrb[0].mxu0
        %v2512 = vadd.f32 %v2411, %v2511
        %v2513 = vpop.f32.mrb[0].mxu0
        %2514 = vmatprep.mubr.bf16.mxu0 0
        %2515 = vmatmul.mubr.bf16.gmra.mrb[0].mxu0 %v2466
        %v2516 = vpop.f32.mrb[0].mxu0
        %v2517 = vadd.f32 %v2416, %v2516
        %v2518 = vpop.f32.mrb[0].mxu0
        %v2519 = vpop.f32.mrb[0].mxu0
        %v2520 = vadd.f32 %v2419, %v2519
        %v2521 = vpop.f32.mrb[0].mxu0
        %2522 = vmatprep.mubr.bf16.mxu0 0
        %2523 = vmatmul.mubr.bf16.gmra.mrb[0].mxu0 %v2469
        %v2524 = vpop.f32.mrb[0].mxu0
        %v2525 = vadd.f32 %v2424, %v2524
        %v2526 = vpop.f32.mrb[0].mxu0
        %v2527 = vpop.f32.mrb[0].mxu0
        %v2528 = vadd.f32 %v2427, %v2527
        %v2529 = vpop.f32.mrb[0].mxu0
        %2530 = vmatprep.mubr.bf16.mxu0 0
        %2531 = vmatmul.mubr.bf16.gmra.mrb[0].mxu0 %v2472
        %v2532 = vpop.f32.mrb[0].mxu0
        %v2533 = vadd.f32 %v2432, %v2532
        %v2534 = vpop.f32.mrb[0].mxu0
        %v2535 = vpop.f32.mrb[0].mxu0
        %v2536 = vadd.f32 %v2435, %v2535
        %v2537 = vpop.f32.mrb[0].mxu0
        %2538 = vdwg.mxu0
        %v2539 = vrot.slane %v2130, 1
        %v2540 = vrot.slane %v2135, 1
        %v2541 = vrot.slane %v2140, 1
        %v2542 = vrot.slane %v2145, 1
        %v2543 = vrot.slane %v2150, 1
        %v2544 = vrot.slane %v2155, 1
        %v2545 = vrot.slane %v2160, 1
        %v2546 = vrot.slane %v2165, 1
        %v2547 = vsel %vm1129, %v2545, %v2546
        %v2548 = vsel %vm1129, %v2544, %v2545
        %v2549 = vsel %vm1129, %v2543, %v2544
        %v2550 = vsel %vm1129, %v2542, %v2543
        %v2551 = vsel %vm1129, %v2541, %v2542
        %v2552 = vsel %vm1129, %v2540, %v2541
        %v2553 = vsel %vm1129, %v2539, %v2540
        %v2554 = vsel %vm1129, %v2546, %v2539
        %vm2555 = vcmp.lt.s32.totalorder %v2256, 7
        %vm2556 = vcmp.lt.s32.totalorder %v2257, 7
        %vm2557 = vcmp.lt.s32.totalorder %v2258, 7
        %vm2558 = vcmp.lt.s32.totalorder %v2259, 7
        %vm2559 = vcmp.lt.s32.totalorder %v2260, 7
        %vm2560 = vcmp.lt.s32.totalorder %v2261, 7
        %vm2561 = vcmp.lt.s32.totalorder %v2262, 7
        %vm2562 = vcmp.lt.s32.totalorder %v2263, 7
        %v2563 = vsel %vm2555, 1, 0
        %v2564 = vsel %vm2556, 1, 0
        %v2565 = vsel %vm2557, 1, 0
        %v2566 = vsel %vm2558, 1, 0
        %v2567 = vsel %vm2559, 1, 0
        %v2568 = vsel %vm2560, 1, 0
        %v2569 = vsel %vm2561, 1, 0
        %v2570 = vsel %vm2562, 1, 0
        %vm2571 = vcmp.eq.s32.totalorder %v2563, 1
        %vm2572 = vcmp.eq.s32.totalorder %v2564, 1
        %vm2573 = vcmp.eq.s32.totalorder %v2565, 1
        %vm2574 = vcmp.eq.s32.totalorder %v2566, 1
        %vm2575 = vcmp.eq.s32.totalorder %v2567, 1
        %vm2576 = vcmp.eq.s32.totalorder %v2568, 1
        %vm2577 = vcmp.eq.s32.totalorder %v2569, 1
        %vm2578 = vcmp.eq.s32.totalorder %v2570, 1
        %v2579 = vsel %vm2571, %v2553, 0.0
        %v2580 = vsel %vm2572, %v2552, 0.0
        %v2581 = vsel %vm2573, %v2551, 0.0
        %v2582 = vsel %vm2574, %v2550, 0.0
        %v2583 = vsel %vm2575, %v2549, 0.0
        %v2584 = vsel %vm2576, %v2548, 0.0
        %v2585 = vsel %vm2577, %v2547, 0.0
        %v2586 = vsel %vm2578, %v2554, 0.0
        %v2587 = vpack.c.bf16 %v2580, %v2579
        %v2588 = vpack.c.bf16 %v2582, %v2581
        %v2589 = vpack.c.bf16 %v2584, %v2583
        %v2590 = vpack.c.bf16 %v2586, %v2585
        %s2591 = scalar_lea.vmem %s6, 64
        %v2592 = vld [vmem:[%s2591] sm:$0xf]
        %v2593 = vld [vmem:[%s2591 + $0x4] sm:$0xf]
        %v2594 = vld [vmem:[%s2591 + $0x8] sm:$0xf]
        %v2595 = vld [vmem:[%s2591 + $0xc] sm:$0xf]
        %v2596 = vld [vmem:[%s2591 + $0x10] sm:$0xf]
        %v2597 = vld [vmem:[%s2591 + $0x14] sm:$0xf]
        %v2598 = vld [vmem:[%s2591 + $0x18] sm:$0xf]
        %v2599 = vld [vmem:[%s2591 + $0x1c] sm:$0xf]
        %v2608 = vunpack.c.l.b16 %v2592
        %v2609 = vunpack.c.l.b16 %v2593
        %v2610 = vunpack.c.l.b16 %v2594
        %v2611 = vunpack.c.l.b16 %v2595
        %v2612 = vunpack.c.l.b16 %v2596
        %v2613 = vunpack.c.l.b16 %v2597
        %v2614 = vunpack.c.l.b16 %v2598
        %v2615 = vunpack.c.l.b16 %v2599
        %v2616 = vpack.c.b16 %v2609, %v2608
        %v2617 = vpack.c.b16 %v2611, %v2610
        %v2618 = vpack.c.b16 %v2613, %v2612
        %v2619 = vpack.c.b16 %v2615, %v2614
        %v2625 = vsel %vm846, %v2587, 0
        %v2628 = vsel %vm846, %v2588, 0
        %v2631 = vsel %vm846, %v2589, 0
        %v2634 = vsel %vm846, %v2590, 0
        %2636 = vmatprep.subr.bf16.mxu0 0
        %2637 = vmatpush1.bf16.msra.mxu0 %v2616
        %2638 = vmatprep.subr.bf16.mxu0 0
        %2639 = vmatpush1.bf16.msra.mxu0 %v2617
        %2640 = vmatprep.subr.bf16.mxu0 0
        %2641 = vmatpush1.bf16.msra.mxu0 %v2618
        %2642 = vmatprep.subr.bf16.mxu0 0
        %2643 = vmatpush1.bf16.msra.mxu0 %v2619
        %2644 = vmatprep.subr.bf16.mxu0 0
        %2645 = vmatpush1.bf16.msra.mxu0 0
        %2646 = vmatprep.subr.bf16.mxu0 0
        %2647 = vmatpush1.bf16.msra.mxu0 0
        %2648 = vmatprep.subr.bf16.mxu0 0
        %2649 = vmatpush1.bf16.msra.mxu0 0
        %2650 = vmatprep.subr.bf16.mxu0 0
        %2651 = vmatpush1.bf16.msra.mxu0 0
        %2652 = vmatprep.subr.bf16.mxu0 0
        %2653 = vmatpush1.bf16.msra.mxu0 0
        %2654 = vmatprep.subr.bf16.mxu0 0
        %2655 = vmatpush1.bf16.msra.mxu0 0
        %2656 = vmatprep.subr.bf16.mxu0 0
        %2657 = vmatpush1.bf16.msra.mxu0 0
        %2658 = vmatprep.subr.bf16.mxu0 0
        %2659 = vmatpush1.bf16.msra.mxu0 0
        %2660 = vmatprep.subr.bf16.mxu0 0
        %2661 = vmatpush1.bf16.msra.mxu0 0
        %2662 = vmatprep.subr.bf16.mxu0 0
        %2663 = vmatpush1.bf16.msra.mxu0 0
        %2664 = vmatprep.subr.bf16.mxu0 0
        %2665 = vmatpush1.bf16.msra.mxu0 0
        %2666 = vmatprep.subr.bf16.mxu0 0
        %2667 = vmatpush1.bf16.msra.mxu0 0
        %2668 = vmatprep.mubr.bf16.mxu0 0
        %2669 = vmatmul.mubr.bf16.gmra.mrb[0].mxu0 %v2625
        %v2670 = vpop.f32.mrb[0].mxu0
        %v2671 = vadd.f32 0.0, %v2670
        %v2672 = vpop.f32.mrb[0].mxu0
        %v2673 = vpop.f32.mrb[0].mxu0
        %v2674 = vadd.f32 0.0, %v2673
        %v2675 = vpop.f32.mrb[0].mxu0
        %2676 = vmatprep.mubr.bf16.mxu0 0
        %2677 = vmatmul.mubr.bf16.gmra.mrb[0].mxu0 %v2628
        %v2678 = vpop.f32.mrb[0].mxu0
        %v2679 = vadd.f32 0.0, %v2678
        %v2680 = vpop.f32.mrb[0].mxu0
        %v2681 = vpop.f32.mrb[0].mxu0
        %v2682 = vadd.f32 0.0, %v2681
        %v2683 = vpop.f32.mrb[0].mxu0
        %2684 = vmatprep.mubr.bf16.mxu0 0
        %2685 = vmatmul.mubr.bf16.gmra.mrb[0].mxu0 %v2631
        %v2686 = vpop.f32.mrb[0].mxu0
        %v2687 = vadd.f32 0.0, %v2686
        %v2688 = vpop.f32.mrb[0].mxu0
        %v2689 = vpop.f32.mrb[0].mxu0
        %v2690 = vadd.f32 0.0, %v2689
        %v2691 = vpop.f32.mrb[0].mxu0
        %2692 = vmatprep.mubr.bf16.mxu0 0
        %2693 = vmatmul.mubr.bf16.gmra.mrb[0].mxu0 %v2634
        %v2694 = vpop.f32.mrb[0].mxu0
        %v2695 = vadd.f32 0.0, %v2694
        %v2696 = vpop.f32.mrb[0].mxu0
        %v2697 = vpop.f32.mrb[0].mxu0
        %v2698 = vadd.f32 0.0, %v2697
        %v2699 = vpop.f32.mrb[0].mxu0
        %2700 = vdwg.mxu0
        %v2701 = vadd.f32 %v2509, %v2671
        %v2702 = vadd.f32 %v2512, %v2674
        %v2703 = vadd.f32 %v2517, %v2679
        %v2704 = vadd.f32 %v2520, %v2682
        %v2705 = vadd.f32 %v2525, %v2687
        %v2706 = vadd.f32 %v2528, %v2690
        %v2707 = vadd.f32 %v2533, %v2695
        %v2708 = vadd.f32 %v2536, %v2698
        %v2709 = vld [vmem:[%s7] sm:$0x1]
        %v2711 = vlaneseq
        %v2712 = vshrl.u32 %v2711, 7
        %v2713 = vsub.s32 0, %v2712
        %v2714 = vrot.slane %v2709, %v2713
        %v2716 = vadd.f32 %v2701, %v2714
        %v2717 = vadd.f32 %v2702, %v2714
        %v2718 = vadd.f32 %v2703, %v2714
        %v2719 = vadd.f32 %v2704, %v2714
        %v2720 = vadd.f32 %v2705, %v2714
        %v2721 = vadd.f32 %v2706, %v2714
        %v2722 = vadd.f32 %v2707, %v2714
        %v2723 = vadd.f32 %v2708, %v2714
        %v2724 = vmax.f32 %v2716, 0.0
        %v2725 = vmax.f32 %v2717, 0.0
        %v2726 = vmax.f32 %v2718, 0.0
        %v2727 = vmax.f32 %v2719, 0.0
        %v2728 = vmax.f32 %v2720, 0.0
        %v2729 = vmax.f32 %v2721, 0.0
        %v2730 = vmax.f32 %v2722, 0.0
        %v2731 = vmax.f32 %v2723, 0.0
        %v2732 = vrot.slane %v2724, 7
        %v2733 = vrot.slane %v2725, 7
        %v2734 = vrot.slane %v2726, 7
        %v2735 = vrot.slane %v2727, 7
        %v2736 = vrot.slane %v2728, 7
        %v2737 = vrot.slane %v2729, 7
        %v2738 = vrot.slane %v2730, 7
        %v2739 = vrot.slane %v2731, 7
        %v2740 = vsel %vm708, %v2738, %v2739
        %v2741 = vsel %vm708, %v2737, %v2738
        %v2742 = vsel %vm708, %v2736, %v2737
        %v2743 = vsel %vm708, %v2735, %v2736
        %v2744 = vsel %vm708, %v2734, %v2735
        %v2745 = vsel %vm708, %v2733, %v2734
        %v2746 = vsel %vm708, %v2732, %v2733
        %v2747 = vsel %vm708, %v2739, %v2732
        %v2748 = vsel %vm2296, %v2747, 0.0
        %v2749 = vsel %vm2297, %v2746, 0.0
        %v2750 = vsel %vm2298, %v2745, 0.0
        %v2751 = vsel %vm2299, %v2744, 0.0
        %v2752 = vsel %vm2300, %v2743, 0.0
        %v2753 = vsel %vm2301, %v2742, 0.0
        %v2754 = vsel %vm2302, %v2741, 0.0
        %v2755 = vsel %vm2303, %v2740, 0.0
        %v2756 = vpack.c.bf16 %v2749, %v2748
        %v2757 = vpack.c.bf16 %v2751, %v2750
        %v2758 = vpack.c.bf16 %v2753, %v2752
        %v2759 = vpack.c.bf16 %v2755, %v2754
        %v2760 = vld [vmem:[%s8] sm:$0xf]
        %v2761 = vld [vmem:[%s8 + $0x4] sm:$0xf]
        %v2762 = vld [vmem:[%s8 + $0x8] sm:$0xf]
        %v2763 = vld [vmem:[%s8 + $0xc] sm:$0xf]
        %v2764 = vld [vmem:[%s8 + $0x10] sm:$0xf]
        %v2765 = vld [vmem:[%s8 + $0x14] sm:$0xf]
        %v2766 = vld [vmem:[%s8 + $0x18] sm:$0xf]
        %v2767 = vld [vmem:[%s8 + $0x1c] sm:$0xf]
        %v2768 = vld [vmem:[%s8 + $0x20] sm:$0xf]
        %v2769 = vld [vmem:[%s8 + $0x24] sm:$0xf]
        %v2770 = vld [vmem:[%s8 + $0x28] sm:$0xf]
        %v2771 = vld [vmem:[%s8 + $0x2c] sm:$0xf]
        %v2772 = vld [vmem:[%s8 + $0x30] sm:$0xf]
        %v2773 = vld [vmem:[%s8 + $0x34] sm:$0xf]
        %v2774 = vld [vmem:[%s8 + $0x38] sm:$0xf]
        %v2775 = vld [vmem:[%s8 + $0x3c] sm:$0xf]
        %v2776 = vpack.c.bf16 %v2725, %v2724
        %v2777 = vpack.c.bf16 %v2727, %v2726
        %v2778 = vpack.c.bf16 %v2729, %v2728
        %v2779 = vpack.c.bf16 %v2731, %v2730
        %s2780 = scalar_lea.vmem %s8, 64
        %v2781 = vld [vmem:[%s2780] sm:$0xf]
        %v2782 = vld [vmem:[%s2780 + $0x4] sm:$0xf]
        %v2783 = vld [vmem:[%s2780 + $0x8] sm:$0xf]
        %v2784 = vld [vmem:[%s2780 + $0xc] sm:$0xf]
        %v2785 = vld [vmem:[%s2780 + $0x10] sm:$0xf]
        %v2786 = vld [vmem:[%s2780 + $0x14] sm:$0xf]
        %v2787 = vld [vmem:[%s2780 + $0x18] sm:$0xf]
        %v2788 = vld [vmem:[%s2780 + $0x1c] sm:$0xf]
        %v2789 = vld [vmem:[%s2780 + $0x20] sm:$0xf]
        %v2790 = vld [vmem:[%s2780 + $0x24] sm:$0xf]
        %v2791 = vld [vmem:[%s2780 + $0x28] sm:$0xf]
        %v2792 = vld [vmem:[%s2780 + $0x2c] sm:$0xf]
        %v2793 = vld [vmem:[%s2780 + $0x30] sm:$0xf]
        %v2794 = vld [vmem:[%s2780 + $0x34] sm:$0xf]
        %v2795 = vld [vmem:[%s2780 + $0x38] sm:$0xf]
        %v2796 = vld [vmem:[%s2780 + $0x3c] sm:$0xf]
        %v2813 = vunpack.c.l.b16 %v2781
        %v2814 = vunpack.c.l.b16 %v2782
        %v2815 = vunpack.c.l.b16 %v2783
        %v2816 = vunpack.c.l.b16 %v2784
        %v2817 = vunpack.c.l.b16 %v2785
        %v2818 = vunpack.c.l.b16 %v2786
        %v2819 = vunpack.c.l.b16 %v2787
        %v2820 = vunpack.c.l.b16 %v2788
        %v2821 = vunpack.c.l.b16 %v2789
        %v2822 = vunpack.c.l.b16 %v2790
        %v2823 = vunpack.c.l.b16 %v2791
        %v2824 = vunpack.c.l.b16 %v2792
        %v2825 = vunpack.c.l.b16 %v2793
        %v2826 = vunpack.c.l.b16 %v2794
        %v2827 = vunpack.c.l.b16 %v2795
        %v2828 = vunpack.c.l.b16 %v2796
        %v2829 = vpack.c.b16 %v2814, %v2813
        %v2830 = vpack.c.b16 %v2816, %v2815
        %v2831 = vpack.c.b16 %v2818, %v2817
        %v2832 = vpack.c.b16 %v2820, %v2819
        %v2833 = vpack.c.b16 %v2822, %v2821
        %v2834 = vpack.c.b16 %v2824, %v2823
        %v2835 = vpack.c.b16 %v2826, %v2825
        %v2836 = vpack.c.b16 %v2828, %v2827
        %2845 = vmatprep.subr.bf16.mxu0 0
        %2846 = vmatpush1.bf16.msra.mxu0 %v2829
        %2847 = vmatprep.subr.bf16.mxu0 0
        %2848 = vmatpush1.bf16.msra.mxu0 %v2830
        %2849 = vmatprep.subr.bf16.mxu0 0
        %2850 = vmatpush1.bf16.msra.mxu0 %v2831
        %2851 = vmatprep.subr.bf16.mxu0 0
        %2852 = vmatpush1.bf16.msra.mxu0 %v2832
        %2853 = vmatprep.subr.bf16.mxu0 0
        %2854 = vmatpush1.bf16.msra.mxu0 %v2833
        %2855 = vmatprep.subr.bf16.mxu0 0
        %2856 = vmatpush1.bf16.msra.mxu0 %v2834
        %2857 = vmatprep.subr.bf16.mxu0 0
        %2858 = vmatpush1.bf16.msra.mxu0 %v2835
        %2859 = vmatprep.subr.bf16.mxu0 0
        %2860 = vmatpush1.bf16.msra.mxu0 %v2836
        %2861 = vmatprep.subr.bf16.mxu0 0
        %2862 = vmatpush1.bf16.msra.mxu0 0
        %2863 = vmatprep.subr.bf16.mxu0 0
        %2864 = vmatpush1.bf16.msra.mxu0 0
        %2865 = vmatprep.subr.bf16.mxu0 0
        %2866 = vmatpush1.bf16.msra.mxu0 0
        %2867 = vmatprep.subr.bf16.mxu0 0
        %2868 = vmatpush1.bf16.msra.mxu0 0
        %2869 = vmatprep.subr.bf16.mxu0 0
        %2870 = vmatpush1.bf16.msra.mxu0 0
        %2871 = vmatprep.subr.bf16.mxu0 0
        %2872 = vmatpush1.bf16.msra.mxu0 0
        %2873 = vmatprep.subr.bf16.mxu0 0
        %2874 = vmatpush1.bf16.msra.mxu0 0
        %2875 = vmatprep.subr.bf16.mxu0 0
        %2876 = vmatpush1.bf16.msra.mxu0 0
        %2877 = vmatprep.mubr.bf16.mxu0 0
        %2878 = vmatmul.mubr.bf16.gmra.mrb[0].mxu0 %v2776
        %v2879 = vpop.f32.mrb[0].mxu0
        %v2880 = vadd.f32 0.0, %v2879
        %v2881 = vpop.f32.mrb[0].mxu0
        %v2882 = vpop.f32.mrb[0].mxu0
        %v2883 = vadd.f32 0.0, %v2882
        %v2884 = vpop.f32.mrb[0].mxu0
        %2885 = vmatprep.mubr.bf16.mxu0 0
        %2886 = vmatmul.mubr.bf16.gmra.mrb[0].mxu0 %v2777
        %v2887 = vpop.f32.mrb[0].mxu0
        %v2888 = vadd.f32 0.0, %v2887
        %v2889 = vpop.f32.mrb[0].mxu0
        %v2890 = vpop.f32.mrb[0].mxu0
        %v2891 = vadd.f32 0.0, %v2890
        %v2892 = vpop.f32.mrb[0].mxu0
        %2893 = vmatprep.mubr.bf16.mxu0 0
        %2894 = vmatmul.mubr.bf16.gmra.mrb[0].mxu0 %v2778
        %v2895 = vpop.f32.mrb[0].mxu0
        %v2896 = vadd.f32 0.0, %v2895
        %v2897 = vpop.f32.mrb[0].mxu0
        %v2898 = vpop.f32.mrb[0].mxu0
        %v2899 = vadd.f32 0.0, %v2898
        %v2900 = vpop.f32.mrb[0].mxu0
        %2901 = vmatprep.mubr.bf16.mxu0 0
        %2902 = vmatmul.mubr.bf16.gmra.mrb[0].mxu0 %v2779
        %v2903 = vpop.f32.mrb[0].mxu0
        %v2904 = vadd.f32 0.0, %v2903
        %v2905 = vpop.f32.mrb[0].mxu0
        %v2906 = vpop.f32.mrb[0].mxu0
        %v2907 = vadd.f32 0.0, %v2906
        %v2908 = vpop.f32.mrb[0].mxu0
        %2909 = vdwg.mxu0
        %v2926 = vunpack.c.l.b16 %v2760
        %v2927 = vunpack.c.l.b16 %v2761
        %v2928 = vunpack.c.l.b16 %v2762
        %v2929 = vunpack.c.l.b16 %v2763
        %v2930 = vunpack.c.l.b16 %v2764
        %v2931 = vunpack.c.l.b16 %v2765
        %v2932 = vunpack.c.l.b16 %v2766
        %v2933 = vunpack.c.l.b16 %v2767
        %v2934 = vunpack.c.l.b16 %v2768
        %v2935 = vunpack.c.l.b16 %v2769
        %v2936 = vunpack.c.l.b16 %v2770
        %v2937 = vunpack.c.l.b16 %v2771
        %v2938 = vunpack.c.l.b16 %v2772
        %v2939 = vunpack.c.l.b16 %v2773
        %v2940 = vunpack.c.l.b16 %v2774
        %v2941 = vunpack.c.l.b16 %v2775
        %v2942 = vpack.c.b16 %v2927, %v2926
        %v2943 = vpack.c.b16 %v2929, %v2928
        %v2944 = vpack.c.b16 %v2931, %v2930
        %v2945 = vpack.c.b16 %v2933, %v2932
        %v2946 = vpack.c.b16 %v2935, %v2934
        %v2947 = vpack.c.b16 %v2937, %v2936
        %v2948 = vpack.c.b16 %v2939, %v2938
        %v2949 = vpack.c.b16 %v2941, %v2940
        %2958 = vmatprep.subr.bf16.mxu0 0
        %2959 = vmatpush1.bf16.msra.mxu0 %v2942
        %2960 = vmatprep.subr.bf16.mxu0 0
        %2961 = vmatpush1.bf16.msra.mxu0 %v2943
        %2962 = vmatprep.subr.bf16.mxu0 0
        %2963 = vmatpush1.bf16.msra.mxu0 %v2944
        %2964 = vmatprep.subr.bf16.mxu0 0
        %2965 = vmatpush1.bf16.msra.mxu0 %v2945
        %2966 = vmatprep.subr.bf16.mxu0 0
        %2967 = vmatpush1.bf16.msra.mxu0 %v2946
        %2968 = vmatprep.subr.bf16.mxu0 0
        %2969 = vmatpush1.bf16.msra.mxu0 %v2947
        %2970 = vmatprep.subr.bf16.mxu0 0
        %2971 = vmatpush1.bf16.msra.mxu0 %v2948
        %2972 = vmatprep.subr.bf16.mxu0 0
        %2973 = vmatpush1.bf16.msra.mxu0 %v2949
        %2974 = vmatprep.subr.bf16.mxu0 0
        %2975 = vmatpush1.bf16.msra.mxu0 0
        %2976 = vmatprep.subr.bf16.mxu0 0
        %2977 = vmatpush1.bf16.msra.mxu0 0
        %2978 = vmatprep.subr.bf16.mxu0 0
        %2979 = vmatpush1.bf16.msra.mxu0 0
        %2980 = vmatprep.subr.bf16.mxu0 0
        %2981 = vmatpush1.bf16.msra.mxu0 0
        %2982 = vmatprep.subr.bf16.mxu0 0
        %2983 = vmatpush1.bf16.msra.mxu0 0
        %2984 = vmatprep.subr.bf16.mxu0 0
        %2985 = vmatpush1.bf16.msra.mxu0 0
        %2986 = vmatprep.subr.bf16.mxu0 0
        %2987 = vmatpush1.bf16.msra.mxu0 0
        %2988 = vmatprep.subr.bf16.mxu0 0
        %2989 = vmatpush1.bf16.msra.mxu0 0
        %2990 = vmatprep.mubr.bf16.mxu0 0
        %2991 = vmatmul.mubr.bf16.gmra.mrb[0].mxu0 %v2756
        %v2992 = vpop.f32.mrb[0].mxu0
        %v2993 = vadd.f32 %v2880, %v2992
        %v2994 = vpop.f32.mrb[0].mxu0
        %v2995 = vpop.f32.mrb[0].mxu0
        %v2996 = vadd.f32 %v2883, %v2995
        %v2997 = vpop.f32.mrb[0].mxu0
        %2998 = vmatprep.mubr.bf16.mxu0 0
        %2999 = vmatmul.mubr.bf16.gmra.mrb[0].mxu0 %v2757
        %v3000 = vpop.f32.mrb[0].mxu0
        %v3001 = vadd.f32 %v2888, %v3000
        %v3002 = vpop.f32.mrb[0].mxu0
        %v3003 = vpop.f32.mrb[0].mxu0
        %v3004 = vadd.f32 %v2891, %v3003
        %v3005 = vpop.f32.mrb[0].mxu0
        %3006 = vmatprep.mubr.bf16.mxu0 0
        %3007 = vmatmul.mubr.bf16.gmra.mrb[0].mxu0 %v2758
        %v3008 = vpop.f32.mrb[0].mxu0
        %v3009 = vadd.f32 %v2896, %v3008
        %v3010 = vpop.f32.mrb[0].mxu0
        %v3011 = vpop.f32.mrb[0].mxu0
        %v3012 = vadd.f32 %v2899, %v3011
        %v3013 = vpop.f32.mrb[0].mxu0
        %3014 = vmatprep.mubr.bf16.mxu0 0
        %3015 = vmatmul.mubr.bf16.gmra.mrb[0].mxu0 %v2759
        %v3016 = vpop.f32.mrb[0].mxu0
        %v3017 = vadd.f32 %v2904, %v3016
        %v3018 = vpop.f32.mrb[0].mxu0
        %v3019 = vpop.f32.mrb[0].mxu0
        %v3020 = vadd.f32 %v2907, %v3019
        %v3021 = vpop.f32.mrb[0].mxu0
        %3022 = vdwg.mxu0
        %v3023 = vrot.slane %v2724, 1
        %v3024 = vrot.slane %v2725, 1
        %v3025 = vrot.slane %v2726, 1
        %v3026 = vrot.slane %v2727, 1
        %v3027 = vrot.slane %v2728, 1
        %v3028 = vrot.slane %v2729, 1
        %v3029 = vrot.slane %v2730, 1
        %v3030 = vrot.slane %v2731, 1
        %v3031 = vsel %vm1129, %v3029, %v3030
        %v3032 = vsel %vm1129, %v3028, %v3029
        %v3033 = vsel %vm1129, %v3027, %v3028
        %v3034 = vsel %vm1129, %v3026, %v3027
        %v3035 = vsel %vm1129, %v3025, %v3026
        %v3036 = vsel %vm1129, %v3024, %v3025
        %v3037 = vsel %vm1129, %v3023, %v3024
        %v3038 = vsel %vm1129, %v3030, %v3023
        %v3039 = vsel %vm2571, %v3037, 0.0
        %v3040 = vsel %vm2572, %v3036, 0.0
        %v3041 = vsel %vm2573, %v3035, 0.0
        %v3042 = vsel %vm2574, %v3034, 0.0
        %v3043 = vsel %vm2575, %v3033, 0.0
        %v3044 = vsel %vm2576, %v3032, 0.0
        %v3045 = vsel %vm2577, %v3031, 0.0
        %v3046 = vsel %vm2578, %v3038, 0.0
        %v3047 = vpack.c.bf16 %v3040, %v3039
        %v3048 = vpack.c.bf16 %v3042, %v3041
        %v3049 = vpack.c.bf16 %v3044, %v3043
        %v3050 = vpack.c.bf16 %v3046, %v3045
        %s3051 = scalar_lea.vmem %s8, 128
        %v3052 = vld [vmem:[%s3051] sm:$0xf]
        %v3053 = vld [vmem:[%s3051 + $0x4] sm:$0xf]
        %v3054 = vld [vmem:[%s3051 + $0x8] sm:$0xf]
        %v3055 = vld [vmem:[%s3051 + $0xc] sm:$0xf]
        %v3056 = vld [vmem:[%s3051 + $0x10] sm:$0xf]
        %v3057 = vld [vmem:[%s3051 + $0x14] sm:$0xf]
        %v3058 = vld [vmem:[%s3051 + $0x18] sm:$0xf]
        %v3059 = vld [vmem:[%s3051 + $0x1c] sm:$0xf]
        %v3060 = vld [vmem:[%s3051 + $0x20] sm:$0xf]
        %v3061 = vld [vmem:[%s3051 + $0x24] sm:$0xf]
        %v3062 = vld [vmem:[%s3051 + $0x28] sm:$0xf]
        %v3063 = vld [vmem:[%s3051 + $0x2c] sm:$0xf]
        %v3064 = vld [vmem:[%s3051 + $0x30] sm:$0xf]
        %v3065 = vld [vmem:[%s3051 + $0x34] sm:$0xf]
        %v3066 = vld [vmem:[%s3051 + $0x38] sm:$0xf]
        %v3067 = vld [vmem:[%s3051 + $0x3c] sm:$0xf]
        %v3084 = vunpack.c.l.b16 %v3052
        %v3085 = vunpack.c.l.b16 %v3053
        %v3086 = vunpack.c.l.b16 %v3054
        %v3087 = vunpack.c.l.b16 %v3055
        %v3088 = vunpack.c.l.b16 %v3056
        %v3089 = vunpack.c.l.b16 %v3057
        %v3090 = vunpack.c.l.b16 %v3058
        %v3091 = vunpack.c.l.b16 %v3059
        %v3092 = vunpack.c.l.b16 %v3060
        %v3093 = vunpack.c.l.b16 %v3061
        %v3094 = vunpack.c.l.b16 %v3062
        %v3095 = vunpack.c.l.b16 %v3063
        %v3096 = vunpack.c.l.b16 %v3064
        %v3097 = vunpack.c.l.b16 %v3065
        %v3098 = vunpack.c.l.b16 %v3066
        %v3099 = vunpack.c.l.b16 %v3067
        %v3100 = vpack.c.b16 %v3085, %v3084
        %v3101 = vpack.c.b16 %v3087, %v3086
        %v3102 = vpack.c.b16 %v3089, %v3088
        %v3103 = vpack.c.b16 %v3091, %v3090
        %v3104 = vpack.c.b16 %v3093, %v3092
        %v3105 = vpack.c.b16 %v3095, %v3094
        %v3106 = vpack.c.b16 %v3097, %v3096
        %v3107 = vpack.c.b16 %v3099, %v3098
        %3116 = vmatprep.subr.bf16.mxu0 0
        %3117 = vmatpush1.bf16.msra.mxu0 %v3100
        %3118 = vmatprep.subr.bf16.mxu0 0
        %3119 = vmatpush1.bf16.msra.mxu0 %v3101
        %3120 = vmatprep.subr.bf16.mxu0 0
        %3121 = vmatpush1.bf16.msra.mxu0 %v3102
        %3122 = vmatprep.subr.bf16.mxu0 0
        %3123 = vmatpush1.bf16.msra.mxu0 %v3103
        %3124 = vmatprep.subr.bf16.mxu0 0
        %3125 = vmatpush1.bf16.msra.mxu0 %v3104
        %3126 = vmatprep.subr.bf16.mxu0 0
        %3127 = vmatpush1.bf16.msra.mxu0 %v3105
        %3128 = vmatprep.subr.bf16.mxu0 0
        %3129 = vmatpush1.bf16.msra.mxu0 %v3106
        %3130 = vmatprep.subr.bf16.mxu0 0
        %3131 = vmatpush1.bf16.msra.mxu0 %v3107
        %3132 = vmatprep.subr.bf16.mxu0 0
        %3133 = vmatpush1.bf16.msra.mxu0 0
        %3134 = vmatprep.subr.bf16.mxu0 0
        %3135 = vmatpush1.bf16.msra.mxu0 0
        %3136 = vmatprep.subr.bf16.mxu0 0
        %3137 = vmatpush1.bf16.msra.mxu0 0
        %3138 = vmatprep.subr.bf16.mxu0 0
        %3139 = vmatpush1.bf16.msra.mxu0 0
        %3140 = vmatprep.subr.bf16.mxu0 0
        %3141 = vmatpush1.bf16.msra.mxu0 0
        %3142 = vmatprep.subr.bf16.mxu0 0
        %3143 = vmatpush1.bf16.msra.mxu0 0
        %3144 = vmatprep.subr.bf16.mxu0 0
        %3145 = vmatpush1.bf16.msra.mxu0 0
        %3146 = vmatprep.subr.bf16.mxu0 0
        %3147 = vmatpush1.bf16.msra.mxu0 0
        %3148 = vmatprep.mubr.bf16.mxu0 0
        %3149 = vmatmul.mubr.bf16.gmra.mrb[0].mxu0 %v3047
        %v3150 = vpop.f32.mrb[0].mxu0
        %v3151 = vadd.f32 0.0, %v3150
        %v3152 = vpop.f32.mrb[0].mxu0
        %v3153 = vpop.f32.mrb[0].mxu0
        %v3154 = vadd.f32 0.0, %v3153
        %v3155 = vpop.f32.mrb[0].mxu0
        %3156 = vmatprep.mubr.bf16.mxu0 0
        %3157 = vmatmul.mubr.bf16.gmra.mrb[0].mxu0 %v3048
        %v3158 = vpop.f32.mrb[0].mxu0
        %v3159 = vadd.f32 0.0, %v3158
        %v3160 = vpop.f32.mrb[0].mxu0
        %v3161 = vpop.f32.mrb[0].mxu0
        %v3162 = vadd.f32 0.0, %v3161
        %v3163 = vpop.f32.mrb[0].mxu0
        %3164 = vmatprep.mubr.bf16.mxu0 0
        %3165 = vmatmul.mubr.bf16.gmra.mrb[0].mxu0 %v3049
        %v3166 = vpop.f32.mrb[0].mxu0
        %v3167 = vadd.f32 0.0, %v3166
        %v3168 = vpop.f32.mrb[0].mxu0
        %v3169 = vpop.f32.mrb[0].mxu0
        %v3170 = vadd.f32 0.0, %v3169
        %v3171 = vpop.f32.mrb[0].mxu0
        %3172 = vmatprep.mubr.bf16.mxu0 0
        %3173 = vmatmul.mubr.bf16.gmra.mrb[0].mxu0 %v3050
        %v3174 = vpop.f32.mrb[0].mxu0
        %v3175 = vadd.f32 0.0, %v3174
        %v3176 = vpop.f32.mrb[0].mxu0
        %v3177 = vpop.f32.mrb[0].mxu0
        %v3178 = vadd.f32 0.0, %v3177
        %v3179 = vpop.f32.mrb[0].mxu0
        %3180 = vdwg.mxu0
        %v3181 = vadd.f32 %v2993, %v3151
        %v3182 = vadd.f32 %v2996, %v3154
        %v3183 = vadd.f32 %v3001, %v3159
        %v3184 = vadd.f32 %v3004, %v3162
        %v3185 = vadd.f32 %v3009, %v3167
        %v3186 = vadd.f32 %v3012, %v3170
        %v3187 = vadd.f32 %v3017, %v3175
        %v3188 = vadd.f32 %v3020, %v3178
        %v3189 = vld [vmem:[%s9] sm:$0xff]
        %v3190 = vld [vmem:[%s9 + $0x8] sm:$0xff]
        %v3191 = vld [vmem:[%s9 + $0x10] sm:$0xff]
        %v3192 = vld [vmem:[%s9 + $0x18] sm:$0xff]
        %v3193 = vld [vmem:[%s10] sm:$0x1]
        %v3195 = vlaneseq
        %v3196 = vshrl.u32 %v3195, 7
        %v3197 = vsub.s32 0, %v3196
        %v3198 = vrot.slane %v3193, %v3197
        %v3201 = vsel %vm846, %v3189, 0
        %v3204 = vsel %vm846, %v3190, 0
        %v3207 = vsel %vm846, %v3191, 0
        %v3210 = vsel %vm846, %v3192, 0
        %3212 = vmatprep.subr.mxu0 0.0
        %3213 = vmatpush1.msra.mxu0 %v3181
        %3214 = vmatprep.subr.mxu0 0.0
        %3215 = vmatpush1.msra.mxu0 %v3182
        %3216 = vmatprep.subr.mxu0 0.0
        %3217 = vmatpush1.msra.mxu0 %v3183
        %3218 = vmatprep.subr.mxu0 0.0
        %3219 = vmatpush1.msra.mxu0 %v3184
        %3220 = vmatprep.subr.mxu0 0.0
        %3221 = vmatpush1.msra.mxu0 %v3185
        %3222 = vmatprep.subr.mxu0 0.0
        %3223 = vmatpush1.msra.mxu0 %v3186
        %3224 = vmatprep.subr.mxu0 0.0
        %3225 = vmatpush1.msra.mxu0 %v3187
        %3226 = vmatprep.subr.mxu0 0.0
        %3227 = vmatpush1.msra.mxu0 %v3188
        %3228 = vmatprep.subr.mxu0 0.0
        %3229 = vmatpush1.msra.mxu0 0.0
        %3230 = vmatprep.subr.mxu0 0.0
        %3231 = vmatpush1.msra.mxu0 0.0
        %3232 = vmatprep.subr.mxu0 0.0
        %3233 = vmatpush1.msra.mxu0 0.0
        %3234 = vmatprep.subr.mxu0 0.0
        %3235 = vmatpush1.msra.mxu0 0.0
        %3236 = vmatprep.subr.mxu0 0.0
        %3237 = vmatpush1.msra.mxu0 0.0
        %3238 = vmatprep.subr.mxu0 0.0
        %3239 = vmatpush1.msra.mxu0 0.0
        %3240 = vmatprep.subr.mxu0 0.0
        %3241 = vmatpush1.msra.mxu0 0.0
        %3242 = vmatprep.subr.mxu0 0.0
        %3243 = vmatpush1.msra.mxu0 0.0
        %3244 = vmatprep.subr.mxu0 0.0
        %3245 = vmatpush1.msra.mxu0 0.0
        %3246 = vmatprep.subr.mxu0 0.0
        %3247 = vmatpush1.msra.mxu0 0.0
        %3248 = vmatprep.subr.mxu0 0.0
        %3249 = vmatpush1.msra.mxu0 0.0
        %3250 = vmatprep.subr.mxu0 0.0
        %3251 = vmatpush1.msra.mxu0 0.0
        %3252 = vmatprep.subr.mxu0 0.0
        %3253 = vmatpush1.msra.mxu0 0.0
        %3254 = vmatprep.subr.mxu0 0.0
        %3255 = vmatpush1.msra.mxu0 0.0
        %3256 = vmatprep.subr.mxu0 0.0
        %3257 = vmatpush1.msra.mxu0 0.0
        %3258 = vmatprep.subr.mxu0 0.0
        %3259 = vmatpush1.msra.mxu0 0.0
        %3260 = vmatprep.subr.mxu0 0.0
        %3261 = vmatpush1.msra.mxu0 0.0
        %3262 = vmatprep.subr.mxu0 0.0
        %3263 = vmatpush1.msra.mxu0 0.0
        %3264 = vmatprep.subr.mxu0 0.0
        %3265 = vmatpush1.msra.mxu0 0.0
        %3266 = vmatprep.subr.mxu0 0.0
        %3267 = vmatpush1.msra.mxu0 0.0
        %3268 = vmatprep.subr.mxu0 0.0
        %3269 = vmatpush1.msra.mxu0 0.0
        %3270 = vmatprep.subr.mxu0 0.0
        %3271 = vmatpush1.msra.mxu0 0.0
        %3272 = vmatprep.subr.mxu0 0.0
        %3273 = vmatpush1.msra.mxu0 0.0
        %3274 = vmatprep.subr.mxu0 0.0
        %3275 = vmatpush1.msra.mxu0 0.0
        %3276 = vmatprep.mubr.f32.mxu0 0.0
        %3277 = vmatmul.mubr.f32.gmra.mrb[0].mxu0 %v3201
        %v3278 = vpop.f32.mrb[0].mxu0
        %v3279 = vadd.f32 %v3198, %v3278
        %v3280 = vpop.f32.mrb[0].mxu0
        %3281 = vmatprep.mubr.f32.mxu0 0.0
        %3282 = vmatmul.mubr.f32.gmra.mrb[0].mxu0 %v3204
        %v3283 = vpop.f32.mrb[0].mxu0
        %v3284 = vadd.f32 %v3198, %v3283
        %v3285 = vpop.f32.mrb[0].mxu0
        %3286 = vmatprep.mubr.f32.mxu0 0.0
        %3287 = vmatmul.mubr.f32.gmra.mrb[0].mxu0 %v3207
        %v3288 = vpop.f32.mrb[0].mxu0
        %v3289 = vadd.f32 %v3198, %v3288
        %v3290 = vpop.f32.mrb[0].mxu0
        %3291 = vmatprep.mubr.f32.mxu0 0.0
        %3292 = vmatmul.mubr.f32.gmra.mrb[0].mxu0 %v3210
        %v3293 = vpop.f32.mrb[0].mxu0
        %v3294 = vadd.f32 %v3198, %v3293
        %v3295 = vpop.f32.mrb[0].mxu0
        %3296 = vdwg.mxu0
        %v3297 = vld [vmem:[%s11] sm:$0xff]
        %v3298 = vld [vmem:[%s11 + $0x8] sm:$0xff]
        %v3299 = vld [vmem:[%s11 + $0x10] sm:$0xff]
        %v3300 = vld [vmem:[%s11 + $0x18] sm:$0xff]
        %v3301 = vld [vmem:[%s11 + $0x20] sm:$0xff]
        %v3302 = vld [vmem:[%s11 + $0x28] sm:$0xff]
        %v3303 = vld [vmem:[%s11 + $0x30] sm:$0xff]
        %v3304 = vld [vmem:[%s11 + $0x38] sm:$0xff]
        %v3305 = vrot.slane %v3279, 1
        %v3306 = vrot.slane %v3284, 1
        %v3307 = vrot.slane %v3289, 1
        %v3308 = vrot.slane %v3294, 1
        %v3309 = vsel %vm1129, %v3307, %v3308
        %v3310 = vsel %vm1129, %v3306, %v3307
        %v3311 = vsel %vm1129, %v3305, %v3306
        %v3312 = vsel %vm1129, %v3308, %v3305
        %s3313 = scalar_lea.vmem %s11, 64
        %v3314 = vld [vmem:[%s3313] sm:$0xff]
        %v3315 = vld [vmem:[%s3313 + $0x8] sm:$0xff]
        %v3316 = vld [vmem:[%s3313 + $0x10] sm:$0xff]
        %v3317 = vld [vmem:[%s3313 + $0x18] sm:$0xff]
        %v3318 = vld [vmem:[%s3313 + $0x20] sm:$0xff]
        %v3319 = vld [vmem:[%s3313 + $0x28] sm:$0xff]
        %v3320 = vld [vmem:[%s3313 + $0x30] sm:$0xff]
        %v3321 = vld [vmem:[%s3313 + $0x38] sm:$0xff]
        %v3323 = vsel %vm846, %v3311, 0
        %v3326 = vsel %vm846, %v3310, 0
        %v3329 = vsel %vm846, %v3309, 0
        %v3332 = vsel %vm846, %v3312, 0
        %3334 = vmatprep.subr.mxu0 0.0
        %3335 = vmatpush1.msra.mxu0 %v3314
        %3336 = vmatprep.subr.mxu0 0.0
        %3337 = vmatpush1.msra.mxu0 %v3315
        %3338 = vmatprep.subr.mxu0 0.0
        %3339 = vmatpush1.msra.mxu0 %v3316
        %3340 = vmatprep.subr.mxu0 0.0
        %3341 = vmatpush1.msra.mxu0 %v3317
        %3342 = vmatprep.subr.mxu0 0.0
        %3343 = vmatpush1.msra.mxu0 %v3318
        %3344 = vmatprep.subr.mxu0 0.0
        %3345 = vmatpush1.msra.mxu0 %v3319
        %3346 = vmatprep.subr.mxu0 0.0
        %3347 = vmatpush1.msra.mxu0 %v3320
        %3348 = vmatprep.subr.mxu0 0.0
        %3349 = vmatpush1.msra.mxu0 %v3321
        %3350 = vmatprep.subr.mxu0 0.0
        %3351 = vmatpush1.msra.mxu0 0.0
        %3352 = vmatprep.subr.mxu0 0.0
        %3353 = vmatpush1.msra.mxu0 0.0
        %3354 = vmatprep.subr.mxu0 0.0
        %3355 = vmatpush1.msra.mxu0 0.0
        %3356 = vmatprep.subr.mxu0 0.0
        %3357 = vmatpush1.msra.mxu0 0.0
        %3358 = vmatprep.subr.mxu0 0.0
        %3359 = vmatpush1.msra.mxu0 0.0
        %3360 = vmatprep.subr.mxu0 0.0
        %3361 = vmatpush1.msra.mxu0 0.0
        %3362 = vmatprep.subr.mxu0 0.0
        %3363 = vmatpush1.msra.mxu0 0.0
        %3364 = vmatprep.subr.mxu0 0.0
        %3365 = vmatpush1.msra.mxu0 0.0
        %3366 = vmatprep.subr.mxu0 0.0
        %3367 = vmatpush1.msra.mxu0 0.0
        %3368 = vmatprep.subr.mxu0 0.0
        %3369 = vmatpush1.msra.mxu0 0.0
        %3370 = vmatprep.subr.mxu0 0.0
        %3371 = vmatpush1.msra.mxu0 0.0
        %3372 = vmatprep.subr.mxu0 0.0
        %3373 = vmatpush1.msra.mxu0 0.0
        %3374 = vmatprep.subr.mxu0 0.0
        %3375 = vmatpush1.msra.mxu0 0.0
        %3376 = vmatprep.subr.mxu0 0.0
        %3377 = vmatpush1.msra.mxu0 0.0
        %3378 = vmatprep.subr.mxu0 0.0
        %3379 = vmatpush1.msra.mxu0 0.0
        %3380 = vmatprep.subr.mxu0 0.0
        %3381 = vmatpush1.msra.mxu0 0.0
        %3382 = vmatprep.subr.mxu0 0.0
        %3383 = vmatpush1.msra.mxu0 0.0
        %3384 = vmatprep.subr.mxu0 0.0
        %3385 = vmatpush1.msra.mxu0 0.0
        %3386 = vmatprep.subr.mxu0 0.0
        %3387 = vmatpush1.msra.mxu0 0.0
        %3388 = vmatprep.subr.mxu0 0.0
        %3389 = vmatpush1.msra.mxu0 0.0
        %3390 = vmatprep.subr.mxu0 0.0
        %3391 = vmatpush1.msra.mxu0 0.0
        %3392 = vmatprep.subr.mxu0 0.0
        %3393 = vmatpush1.msra.mxu0 0.0
        %3394 = vmatprep.subr.mxu0 0.0
        %3395 = vmatpush1.msra.mxu0 0.0
        %3396 = vmatprep.subr.mxu0 0.0
        %3397 = vmatpush1.msra.mxu0 0.0
        %3398 = vmatprep.mubr.f32.mxu0 0.0
        %3399 = vmatmul.mubr.f32.gmra.mrb[0].mxu0 %v3323
        %v3400 = vpop.f32.mrb[0].mxu0
        %v3401 = vadd.f32 0.0, %v3400
        %v3402 = vpop.f32.mrb[0].mxu0
        %3403 = vmatprep.mubr.f32.mxu0 0.0
        %3404 = vmatmul.mubr.f32.gmra.mrb[0].mxu0 %v3326
        %v3405 = vpop.f32.mrb[0].mxu0
        %v3406 = vadd.f32 0.0, %v3405
        %v3407 = vpop.f32.mrb[0].mxu0
        %3408 = vmatprep.mubr.f32.mxu0 0.0
        %3409 = vmatmul.mubr.f32.gmra.mrb[0].mxu0 %v3329
        %v3410 = vpop.f32.mrb[0].mxu0
        %v3411 = vadd.f32 0.0, %v3410
        %v3412 = vpop.f32.mrb[0].mxu0
        %3413 = vmatprep.mubr.f32.mxu0 0.0
        %3414 = vmatmul.mubr.f32.gmra.mrb[0].mxu0 %v3332
        %v3415 = vpop.f32.mrb[0].mxu0
        %v3416 = vadd.f32 0.0, %v3415
        %v3417 = vpop.f32.mrb[0].mxu0
        %3418 = vdwg.mxu0
        %v3420 = vsel %vm846, %v3279, 0
        %v3423 = vsel %vm846, %v3284, 0
        %v3426 = vsel %vm846, %v3289, 0
        %v3429 = vsel %vm846, %v3294, 0
        %3431 = vmatprep.subr.mxu0 0.0
        %3432 = vmatpush1.msra.mxu0 %v3297
        %3433 = vmatprep.subr.mxu0 0.0
        %3434 = vmatpush1.msra.mxu0 %v3298
        %3435 = vmatprep.subr.mxu0 0.0
        %3436 = vmatpush1.msra.mxu0 %v3299
        %3437 = vmatprep.subr.mxu0 0.0
        %3438 = vmatpush1.msra.mxu0 %v3300
        %3439 = vmatprep.subr.mxu0 0.0
        %3440 = vmatpush1.msra.mxu0 %v3301
        %3441 = vmatprep.subr.mxu0 0.0
        %3442 = vmatpush1.msra.mxu0 %v3302
        %3443 = vmatprep.subr.mxu0 0.0
        %3444 = vmatpush1.msra.mxu0 %v3303
        %3445 = vmatprep.subr.mxu0 0.0
        %3446 = vmatpush1.msra.mxu0 %v3304
        %3447 = vmatprep.subr.mxu0 0.0
        %3448 = vmatpush1.msra.mxu0 0.0
        %3449 = vmatprep.subr.mxu0 0.0
        %3450 = vmatpush1.msra.mxu0 0.0
        %3451 = vmatprep.subr.mxu0 0.0
        %3452 = vmatpush1.msra.mxu0 0.0
        %3453 = vmatprep.subr.mxu0 0.0
        %3454 = vmatpush1.msra.mxu0 0.0
        %3455 = vmatprep.subr.mxu0 0.0
        %3456 = vmatpush1.msra.mxu0 0.0
        %3457 = vmatprep.subr.mxu0 0.0
        %3458 = vmatpush1.msra.mxu0 0.0
        %3459 = vmatprep.subr.mxu0 0.0
        %3460 = vmatpush1.msra.mxu0 0.0
        %3461 = vmatprep.subr.mxu0 0.0
        %3462 = vmatpush1.msra.mxu0 0.0
        %3463 = vmatprep.subr.mxu0 0.0
        %3464 = vmatpush1.msra.mxu0 0.0
        %3465 = vmatprep.subr.mxu0 0.0
        %3466 = vmatpush1.msra.mxu0 0.0
        %3467 = vmatprep.subr.mxu0 0.0
        %3468 = vmatpush1.msra.mxu0 0.0
        %3469 = vmatprep.subr.mxu0 0.0
        %3470 = vmatpush1.msra.mxu0 0.0
        %3471 = vmatprep.subr.mxu0 0.0
        %3472 = vmatpush1.msra.mxu0 0.0
        %3473 = vmatprep.subr.mxu0 0.0
        %3474 = vmatpush1.msra.mxu0 0.0
        %3475 = vmatprep.subr.mxu0 0.0
        %3476 = vmatpush1.msra.mxu0 0.0
        %3477 = vmatprep.subr.mxu0 0.0
        %3478 = vmatpush1.msra.mxu0 0.0
        %3479 = vmatprep.subr.mxu0 0.0
        %3480 = vmatpush1.msra.mxu0 0.0
        %3481 = vmatprep.subr.mxu0 0.0
        %3482 = vmatpush1.msra.mxu0 0.0
        %3483 = vmatprep.subr.mxu0 0.0
        %3484 = vmatpush1.msra.mxu0 0.0
        %3485 = vmatprep.subr.mxu0 0.0
        %3486 = vmatpush1.msra.mxu0 0.0
        %3487 = vmatprep.subr.mxu0 0.0
        %3488 = vmatpush1.msra.mxu0 0.0
        %3489 = vmatprep.subr.mxu0 0.0
        %3490 = vmatpush1.msra.mxu0 0.0
        %3491 = vmatprep.subr.mxu0 0.0
        %3492 = vmatpush1.msra.mxu0 0.0
        %3493 = vmatprep.subr.mxu0 0.0
        %3494 = vmatpush1.msra.mxu0 0.0
        %3495 = vmatprep.mubr.f32.mxu0 0.0
        %3496 = vmatmul.mubr.f32.gmra.mrb[0].mxu0 %v3420
        %v3497 = vpop.f32.mrb[0].mxu0
        %v3498 = vadd.f32 %v3401, %v3497
        %v3499 = vpop.f32.mrb[0].mxu0
        %3500 = vmatprep.mubr.f32.mxu0 0.0
        %3501 = vmatmul.mubr.f32.gmra.mrb[0].mxu0 %v3423
        %v3502 = vpop.f32.mrb[0].mxu0
        %v3503 = vadd.f32 %v3406, %v3502
        %v3504 = vpop.f32.mrb[0].mxu0
        %3505 = vmatprep.mubr.f32.mxu0 0.0
        %3506 = vmatmul.mubr.f32.gmra.mrb[0].mxu0 %v3426
        %v3507 = vpop.f32.mrb[0].mxu0
        %v3508 = vadd.f32 %v3411, %v3507
        %v3509 = vpop.f32.mrb[0].mxu0
        %3510 = vmatprep.mubr.f32.mxu0 0.0
        %3511 = vmatmul.mubr.f32.gmra.mrb[0].mxu0 %v3429
        %v3512 = vpop.f32.mrb[0].mxu0
        %v3513 = vadd.f32 %v3416, %v3512
        %v3514 = vpop.f32.mrb[0].mxu0
        %3515 = vdwg.mxu0
        %v3516 = vrot.slane %v3279, 2
        %v3517 = vrot.slane %v3284, 2
        %v3518 = vrot.slane %v3289, 2
        %v3519 = vrot.slane %v3294, 2
        %vm3520 = vcmp.lt.s32.totalorder %v484, 6
        %v3521 = vsel %vm3520, %v3518, %v3519
        %v3522 = vsel %vm3520, %v3517, %v3518
        %v3523 = vsel %vm3520, %v3516, %v3517
        %v3524 = vsel %vm3520, %v3519, %v3516
        %s3525 = scalar_lea.vmem %s11, 128
        %v3526 = vld [vmem:[%s3525] sm:$0xff]
        %v3527 = vld [vmem:[%s3525 + $0x8] sm:$0xff]
        %v3528 = vld [vmem:[%s3525 + $0x10] sm:$0xff]
        %v3529 = vld [vmem:[%s3525 + $0x18] sm:$0xff]
        %v3530 = vld [vmem:[%s3525 + $0x20] sm:$0xff]
        %v3531 = vld [vmem:[%s3525 + $0x28] sm:$0xff]
        %v3532 = vld [vmem:[%s3525 + $0x30] sm:$0xff]
        %v3533 = vld [vmem:[%s3525 + $0x38] sm:$0xff]
        %v3535 = vsel %vm846, %v3523, 0
        %v3538 = vsel %vm846, %v3522, 0
        %v3541 = vsel %vm846, %v3521, 0
        %v3544 = vsel %vm846, %v3524, 0
        %3546 = vmatprep.subr.mxu0 0.0
        %3547 = vmatpush1.msra.mxu0 %v3526
        %3548 = vmatprep.subr.mxu0 0.0
        %3549 = vmatpush1.msra.mxu0 %v3527
        %3550 = vmatprep.subr.mxu0 0.0
        %3551 = vmatpush1.msra.mxu0 %v3528
        %3552 = vmatprep.subr.mxu0 0.0
        %3553 = vmatpush1.msra.mxu0 %v3529
        %3554 = vmatprep.subr.mxu0 0.0
        %3555 = vmatpush1.msra.mxu0 %v3530
        %3556 = vmatprep.subr.mxu0 0.0
        %3557 = vmatpush1.msra.mxu0 %v3531
        %3558 = vmatprep.subr.mxu0 0.0
        %3559 = vmatpush1.msra.mxu0 %v3532
        %3560 = vmatprep.subr.mxu0 0.0
        %3561 = vmatpush1.msra.mxu0 %v3533
        %3562 = vmatprep.subr.mxu0 0.0
        %3563 = vmatpush1.msra.mxu0 0.0
        %3564 = vmatprep.subr.mxu0 0.0
        %3565 = vmatpush1.msra.mxu0 0.0
        %3566 = vmatprep.subr.mxu0 0.0
        %3567 = vmatpush1.msra.mxu0 0.0
        %3568 = vmatprep.subr.mxu0 0.0
        %3569 = vmatpush1.msra.mxu0 0.0
        %3570 = vmatprep.subr.mxu0 0.0
        %3571 = vmatpush1.msra.mxu0 0.0
        %3572 = vmatprep.subr.mxu0 0.0
        %3573 = vmatpush1.msra.mxu0 0.0
        %3574 = vmatprep.subr.mxu0 0.0
        %3575 = vmatpush1.msra.mxu0 0.0
        %3576 = vmatprep.subr.mxu0 0.0
        %3577 = vmatpush1.msra.mxu0 0.0
        %3578 = vmatprep.subr.mxu0 0.0
        %3579 = vmatpush1.msra.mxu0 0.0
        %3580 = vmatprep.subr.mxu0 0.0
        %3581 = vmatpush1.msra.mxu0 0.0
        %3582 = vmatprep.subr.mxu0 0.0
        %3583 = vmatpush1.msra.mxu0 0.0
        %3584 = vmatprep.subr.mxu0 0.0
        %3585 = vmatpush1.msra.mxu0 0.0
        %3586 = vmatprep.subr.mxu0 0.0
        %3587 = vmatpush1.msra.mxu0 0.0
        %3588 = vmatprep.subr.mxu0 0.0
        %3589 = vmatpush1.msra.mxu0 0.0
        %3590 = vmatprep.subr.mxu0 0.0
        %3591 = vmatpush1.msra.mxu0 0.0
        %3592 = vmatprep.subr.mxu0 0.0
        %3593 = vmatpush1.msra.mxu0 0.0
        %3594 = vmatprep.subr.mxu0 0.0
        %3595 = vmatpush1.msra.mxu0 0.0
        %3596 = vmatprep.subr.mxu0 0.0
        %3597 = vmatpush1.msra.mxu0 0.0
        %3598 = vmatprep.subr.mxu0 0.0
        %3599 = vmatpush1.msra.mxu0 0.0
        %3600 = vmatprep.subr.mxu0 0.0
        %3601 = vmatpush1.msra.mxu0 0.0
        %3602 = vmatprep.subr.mxu0 0.0
        %3603 = vmatpush1.msra.mxu0 0.0
        %3604 = vmatprep.subr.mxu0 0.0
        %3605 = vmatpush1.msra.mxu0 0.0
        %3606 = vmatprep.subr.mxu0 0.0
        %3607 = vmatpush1.msra.mxu0 0.0
        %3608 = vmatprep.subr.mxu0 0.0
        %3609 = vmatpush1.msra.mxu0 0.0
        %3610 = vmatprep.mubr.f32.mxu0 0.0
        %3611 = vmatmul.mubr.f32.gmra.mrb[0].mxu0 %v3535
        %v3612 = vpop.f32.mrb[0].mxu0
        %v3613 = vadd.f32 0.0, %v3612
        %v3614 = vpop.f32.mrb[0].mxu0
        %3615 = vmatprep.mubr.f32.mxu0 0.0
        %3616 = vmatmul.mubr.f32.gmra.mrb[0].mxu0 %v3538
        %v3617 = vpop.f32.mrb[0].mxu0
        %v3618 = vadd.f32 0.0, %v3617
        %v3619 = vpop.f32.mrb[0].mxu0
        %3620 = vmatprep.mubr.f32.mxu0 0.0
        %3621 = vmatmul.mubr.f32.gmra.mrb[0].mxu0 %v3541
        %v3622 = vpop.f32.mrb[0].mxu0
        %v3623 = vadd.f32 0.0, %v3622
        %v3624 = vpop.f32.mrb[0].mxu0
        %3625 = vmatprep.mubr.f32.mxu0 0.0
        %3626 = vmatmul.mubr.f32.gmra.mrb[0].mxu0 %v3544
        %v3627 = vpop.f32.mrb[0].mxu0
        %v3628 = vadd.f32 0.0, %v3627
        %v3629 = vpop.f32.mrb[0].mxu0
        %3630 = vdwg.mxu0
        %v3631 = vadd.f32 %v3498, %v3613
        %v3632 = vadd.f32 %v3503, %v3618
        %v3633 = vadd.f32 %v3508, %v3623
        %v3634 = vadd.f32 %v3513, %v3628
        %v3635 = vrot.slane %v3279, 3
        %v3636 = vrot.slane %v3284, 3
        %v3637 = vrot.slane %v3289, 3
        %v3638 = vrot.slane %v3294, 3
        %vm3639 = vcmp.lt.s32.totalorder %v484, 5
        %v3640 = vsel %vm3639, %v3637, %v3638
        %v3641 = vsel %vm3639, %v3636, %v3637
        %v3642 = vsel %vm3639, %v3635, %v3636
        %v3643 = vsel %vm3639, %v3638, %v3635
        %s3644 = scalar_lea.vmem %s11, 192
        %v3645 = vld [vmem:[%s3644] sm:$0xff]
        %v3646 = vld [vmem:[%s3644 + $0x8] sm:$0xff]
        %v3647 = vld [vmem:[%s3644 + $0x10] sm:$0xff]
        %v3648 = vld [vmem:[%s3644 + $0x18] sm:$0xff]
        %v3649 = vld [vmem:[%s3644 + $0x20] sm:$0xff]
        %v3650 = vld [vmem:[%s3644 + $0x28] sm:$0xff]
        %v3651 = vld [vmem:[%s3644 + $0x30] sm:$0xff]
        %v3652 = vld [vmem:[%s3644 + $0x38] sm:$0xff]
        %v3654 = vsel %vm846, %v3642, 0
        %v3657 = vsel %vm846, %v3641, 0
        %v3660 = vsel %vm846, %v3640, 0
        %v3663 = vsel %vm846, %v3643, 0
        %3665 = vmatprep.subr.mxu0 0.0
        %3666 = vmatpush1.msra.mxu0 %v3645
        %3667 = vmatprep.subr.mxu0 0.0
        %3668 = vmatpush1.msra.mxu0 %v3646
        %3669 = vmatprep.subr.mxu0 0.0
        %3670 = vmatpush1.msra.mxu0 %v3647
        %3671 = vmatprep.subr.mxu0 0.0
        %3672 = vmatpush1.msra.mxu0 %v3648
        %3673 = vmatprep.subr.mxu0 0.0
        %3674 = vmatpush1.msra.mxu0 %v3649
        %3675 = vmatprep.subr.mxu0 0.0
        %3676 = vmatpush1.msra.mxu0 %v3650
        %3677 = vmatprep.subr.mxu0 0.0
        %3678 = vmatpush1.msra.mxu0 %v3651
        %3679 = vmatprep.subr.mxu0 0.0
        %3680 = vmatpush1.msra.mxu0 %v3652
        %3681 = vmatprep.subr.mxu0 0.0
        %3682 = vmatpush1.msra.mxu0 0.0
        %3683 = vmatprep.subr.mxu0 0.0
        %3684 = vmatpush1.msra.mxu0 0.0
        %3685 = vmatprep.subr.mxu0 0.0
        %3686 = vmatpush1.msra.mxu0 0.0
        %3687 = vmatprep.subr.mxu0 0.0
        %3688 = vmatpush1.msra.mxu0 0.0
        %3689 = vmatprep.subr.mxu0 0.0
        %3690 = vmatpush1.msra.mxu0 0.0
        %3691 = vmatprep.subr.mxu0 0.0
        %3692 = vmatpush1.msra.mxu0 0.0
        %3693 = vmatprep.subr.mxu0 0.0
        %3694 = vmatpush1.msra.mxu0 0.0
        %3695 = vmatprep.subr.mxu0 0.0
        %3696 = vmatpush1.msra.mxu0 0.0
        %3697 = vmatprep.subr.mxu0 0.0
        %3698 = vmatpush1.msra.mxu0 0.0
        %3699 = vmatprep.subr.mxu0 0.0
        %3700 = vmatpush1.msra.mxu0 0.0
        %3701 = vmatprep.subr.mxu0 0.0
        %3702 = vmatpush1.msra.mxu0 0.0
        %3703 = vmatprep.subr.mxu0 0.0
        %3704 = vmatpush1.msra.mxu0 0.0
        %3705 = vmatprep.subr.mxu0 0.0
        %3706 = vmatpush1.msra.mxu0 0.0
        %3707 = vmatprep.subr.mxu0 0.0
        %3708 = vmatpush1.msra.mxu0 0.0
        %3709 = vmatprep.subr.mxu0 0.0
        %3710 = vmatpush1.msra.mxu0 0.0
        %3711 = vmatprep.subr.mxu0 0.0
        %3712 = vmatpush1.msra.mxu0 0.0
        %3713 = vmatprep.subr.mxu0 0.0
        %3714 = vmatpush1.msra.mxu0 0.0
        %3715 = vmatprep.subr.mxu0 0.0
        %3716 = vmatpush1.msra.mxu0 0.0
        %3717 = vmatprep.subr.mxu0 0.0
        %3718 = vmatpush1.msra.mxu0 0.0
        %3719 = vmatprep.subr.mxu0 0.0
        %3720 = vmatpush1.msra.mxu0 0.0
        %3721 = vmatprep.subr.mxu0 0.0
        %3722 = vmatpush1.msra.mxu0 0.0
        %3723 = vmatprep.subr.mxu0 0.0
        %3724 = vmatpush1.msra.mxu0 0.0
        %3725 = vmatprep.subr.mxu0 0.0
        %3726 = vmatpush1.msra.mxu0 0.0
        %3727 = vmatprep.subr.mxu0 0.0
        %3728 = vmatpush1.msra.mxu0 0.0
        %3729 = vmatprep.mubr.f32.mxu0 0.0
        %3730 = vmatmul.mubr.f32.gmra.mrb[0].mxu0 %v3654
        %v3731 = vpop.f32.mrb[0].mxu0
        %v3732 = vadd.f32 0.0, %v3731
        %v3733 = vpop.f32.mrb[0].mxu0
        %3734 = vmatprep.mubr.f32.mxu0 0.0
        %3735 = vmatmul.mubr.f32.gmra.mrb[0].mxu0 %v3657
        %v3736 = vpop.f32.mrb[0].mxu0
        %v3737 = vadd.f32 0.0, %v3736
        %v3738 = vpop.f32.mrb[0].mxu0
        %3739 = vmatprep.mubr.f32.mxu0 0.0
        %3740 = vmatmul.mubr.f32.gmra.mrb[0].mxu0 %v3660
        %v3741 = vpop.f32.mrb[0].mxu0
        %v3742 = vadd.f32 0.0, %v3741
        %v3743 = vpop.f32.mrb[0].mxu0
        %3744 = vmatprep.mubr.f32.mxu0 0.0
        %3745 = vmatmul.mubr.f32.gmra.mrb[0].mxu0 %v3663
        %v3746 = vpop.f32.mrb[0].mxu0
        %v3747 = vadd.f32 0.0, %v3746
        %v3748 = vpop.f32.mrb[0].mxu0
        %3749 = vdwg.mxu0
        %v3750 = vadd.f32 %v3631, %v3732
        %v3751 = vadd.f32 %v3632, %v3737
        %v3752 = vadd.f32 %v3633, %v3742
        %v3753 = vadd.f32 %v3634, %v3747
        %v3754 = vld [vmem:[%s12] sm:$0xff]
        %v3755 = vld [vmem:[%s13] sm:$0x1]
        %v3757 = vlaneseq
        %v3758 = vshrl.u32 %v3757, 7
        %v3759 = vsub.s32 0, %v3758
        %v3760 = vrot.slane %v3755, %v3759
        %vm3762 = vcmask 261120
        %v3764 = vsel %vm3762, %v3754, 0
        %3766 = vmatprep.subr.mxu0 0.0
        %3767 = vmatpush1.msra.mxu0 %v3750
        %3768 = vmatprep.subr.mxu0 0.0
        %3769 = vmatpush1.msra.mxu0 %v3751
        %3770 = vmatprep.subr.mxu0 0.0
        %3771 = vmatpush1.msra.mxu0 %v3752
        %3772 = vmatprep.subr.mxu0 0.0
        %3773 = vmatpush1.msra.mxu0 %v3753
        %3774 = vmatprep.subr.mxu0 0.0
        %3775 = vmatpush1.msra.mxu0 0.0
        %3776 = vmatprep.subr.mxu0 0.0
        %3777 = vmatpush1.msra.mxu0 0.0
        %3778 = vmatprep.subr.mxu0 0.0
        %3779 = vmatpush1.msra.mxu0 0.0
        %3780 = vmatprep.subr.mxu0 0.0
        %3781 = vmatpush1.msra.mxu0 0.0
        %3782 = vmatprep.subr.mxu0 0.0
        %3783 = vmatpush1.msra.mxu0 0.0
        %3784 = vmatprep.subr.mxu0 0.0
        %3785 = vmatpush1.msra.mxu0 0.0
        %3786 = vmatprep.subr.mxu0 0.0
        %3787 = vmatpush1.msra.mxu0 0.0
        %3788 = vmatprep.subr.mxu0 0.0
        %3789 = vmatpush1.msra.mxu0 0.0
        %3790 = vmatprep.subr.mxu0 0.0
        %3791 = vmatpush1.msra.mxu0 0.0
        %3792 = vmatprep.subr.mxu0 0.0
        %3793 = vmatpush1.msra.mxu0 0.0
        %3794 = vmatprep.subr.mxu0 0.0
        %3795 = vmatpush1.msra.mxu0 0.0
        %3796 = vmatprep.subr.mxu0 0.0
        %3797 = vmatpush1.msra.mxu0 0.0
        %3798 = vmatprep.subr.mxu0 0.0
        %3799 = vmatpush1.msra.mxu0 0.0
        %3800 = vmatprep.subr.mxu0 0.0
        %3801 = vmatpush1.msra.mxu0 0.0
        %3802 = vmatprep.subr.mxu0 0.0
        %3803 = vmatpush1.msra.mxu0 0.0
        %3804 = vmatprep.subr.mxu0 0.0
        %3805 = vmatpush1.msra.mxu0 0.0
        %3806 = vmatprep.subr.mxu0 0.0
        %3807 = vmatpush1.msra.mxu0 0.0
        %3808 = vmatprep.subr.mxu0 0.0
        %3809 = vmatpush1.msra.mxu0 0.0
        %3810 = vmatprep.subr.mxu0 0.0
        %3811 = vmatpush1.msra.mxu0 0.0
        %3812 = vmatprep.subr.mxu0 0.0
        %3813 = vmatpush1.msra.mxu0 0.0
        %3814 = vmatprep.subr.mxu0 0.0
        %3815 = vmatpush1.msra.mxu0 0.0
        %3816 = vmatprep.subr.mxu0 0.0
        %3817 = vmatpush1.msra.mxu0 0.0
        %3818 = vmatprep.subr.mxu0 0.0
        %3819 = vmatpush1.msra.mxu0 0.0
        %3820 = vmatprep.subr.mxu0 0.0
        %3821 = vmatpush1.msra.mxu0 0.0
        %3822 = vmatprep.subr.mxu0 0.0
        %3823 = vmatpush1.msra.mxu0 0.0
        %3824 = vmatprep.subr.mxu0 0.0
        %3825 = vmatpush1.msra.mxu0 0.0
        %3826 = vmatprep.subr.mxu0 0.0
        %3827 = vmatpush1.msra.mxu0 0.0
        %3828 = vmatprep.subr.mxu0 0.0
        %3829 = vmatpush1.msra.mxu0 0.0
        %3830 = vmatprep.mubr.f32.mxu0 0.0
        %3831 = vmatmul.mubr.f32.gmra.mrb[0].mxu0 %v3764
        %v3832 = vpop.f32.mrb[0].mxu0
        %v3833 = vadd.f32 %v3760, %v3832
        %v3834 = vpop.f32.mrb[0].mxu0
        %3835 = vdwg.mxu0
        %3836 = vst.msk [vmem:[%s460] sm:$0xff] %vm3762, %v3833
        %s3837 = sand.u32 %s335, 1
        %s3838 = scalar_lea.sflag [#allocation3], %s3837
        %s3839 = sand.u32 %s335, 1
        %s3840 = smul.addr %s3839, 8
        %s3841 = scalar_lea.vmem [#allocation2], %s3840
        // Predicated region
        $region77: #{tpu_custom_call.1} parent=75 // pred_check
          %p3842 = pneg %p345
        $region78: #{tpu_custom_call.1} parent=75 // pred_check_branch
          %3844 = sbr.rel (%p3842) target = $region80
        $region79: #{tpu_custom_call.1} parent=75 // pred_region
          %s3846 = ssub.s32 128, 128
          %3847 = vsyncadd %s3838, %s3846
          %s3848 = smul.addr %s28, 128
          %s3849 = scalar_lea.hbm %s14, %s3848
          %s3851 = sshll.u32 %s3841, 4
          %s3852 = int_to_ptr.vmem [resolvable:$true] %s3851
          %3854 = dma.vmem_to_hbm [thread:$0]  %s3852, 128, %s3849, %s3838
        $region80: #{tpu_custom_call.1} parent=75 // pred_fallthru
          _
      $region76: #{tpu_custom_call.1} parent=5 // pred_fallthru
        _
      %p3855 = scmp.le.s32.totalorder 2, %s23
      // Predicated region
      $region81: #{tpu_custom_call.1} parent=5 // pred_check
        %p3856 = pneg %p3855
      $region82: #{tpu_custom_call.1} parent=5 // pred_check_branch
        %3858 = sbr.rel (%p3856) target = $region84
      $region83: #{tpu_custom_call.1} parent=5 // pred_region
        %s3859 = ssub.s32 %s23, 2
        // Predicated region
        $region85: #{tpu_custom_call.1} parent=83 // pred_check
          %p3860 = pneg %p351
        $region86: #{tpu_custom_call.1} parent=83 // pred_check_branch
          %3862 = sbr.rel (%p3860) target = $region88
        $region87: #{tpu_custom_call.1} parent=83 // pred_region
          %s3863 = sand.u32 %s336, 1
          %s3864 = scalar_lea.sflag [#allocation3], %s3863
          %s3865 = sand.u32 %s336, 1
          %s3866 = smul.addr %s3865, 8
          %s3867 = scalar_lea.vmem [#allocation2], %s3866
          %3868 = dma.done %s3864, 128
        $region88: #{tpu_custom_call.1} parent=83 // pred_fallthru
          _
      $region84: #{tpu_custom_call.1} parent=5 // pred_fallthru
        _
    $region6: #{tpu_custom_call.1} parent=1 // loop_footer
      %s27 = sadd.s32 1, %s23
    $region7: #{tpu_custom_call.1} parent=1 // loop_footer_branch
      %22 = sbr.rel target = $region3
    $region8: #{tpu_custom_call.1} parent=1 // loop_exit
      _
    %3869 = vsyncpa [#allocation3], 1
    %s3870 = scalar_lea.sflag [#allocation3], 1
    %3871 = vsyncpa %s3870, 1

</llo_original>
